<compile_context>
chip_gen: v6e
topology: v6e:2x2x1
jax: 0.10.0
libtpu: 0.0.40
codegen_flags: <defaults>
</compile_context>

<pallas_src>
import functools

import jax
import jax.numpy as jnp
from jax.experimental import pallas as pl
from jax.experimental.pallas import tpu as pltpu


def _round_up(x, m):
    return ((x + m - 1) // m) * m


def _strips_for_device():
    """2 output-row strips on dual-TensorCore chips, 1 on single-TC chips."""
    try:
        kind = jax.devices()[0].device_kind.lower()
    except Exception:
        return 1
    dual_tc = ("v4" in kind) or ("v5p" in kind) or ("7" in kind)
    return 2 if dual_tc else 1


def _pick_depthwise_chunk(hs, rw, K, n_taps, vregs=64, slack=10):
    """Largest per-chunk output-row count hb such that halo + rolled halo + f32 acc
    (plus the pre-splatted taps and some slack) fit the vreg file:
        (2*(hb+K-1) + hb) * rw / 8  <=  vregs - n_taps - slack
    """
    budget_rows = 8 * max(vregs - n_taps - slack, 8)
    hb = (budget_rows // rw - 2 * (K - 1)) // 3
    return max(1, min(hs, hb))


def _sepconv_kernel(x_ref, wdw_ref, wpw_ref, out_ref, acc_ref, *,
                    K, NB, hs, hb, Wp, Cp, mxu_dtype, mm_rows):
    # x_ref  : [Hp_in, NB, Wp, Cp] f32   whole padded input, resident across strips
    # wdw_ref: [KKp, Cp]           f32   row t = depthwise tap for (kh, kw) = divmod(t, K)
    # wpw_ref: [Cp, Pp]            bf16  pointwise weights (zero-padded)
    # out_ref: [R, Pp]             f32   flat output rows of this strip, R = hs*NB*Wp
    # acc_ref: [R, Cp]             bf16  VMEM scratch: depthwise result for the strip
    i = pl.program_id(0)
    row0 = i * hs                        # first output row of this strip
    RW = NB * Wp                         # flat rows per image row (flat order = (h, n, w))
    R = hs * RW

    # Pre-splat the K*K depthwise taps once (one vreg each, hoisted out of the loops).
    taps = [jnp.broadcast_to(wdw_ref[t, :], (1, 8, Cp)) for t in range(K * K)]

    # ---- depthwise KxK, stride 1, VALID — chunked over output rows -----------------
    c0 = 0
    while c0 < hs:                       # static Python loop -> fully unrolled
        hb_c = min(hb, hs - c0)
        Rh = (hb_c + K - 1) * RW         # halo rows of this chunk (flattened)
        Rc = hb_c * RW                   # output rows of this chunk (flattened)
        # Halo slab: H is the leading (untiled) dim, so this is a cheap dynamic slice;
        # the reshape is layout-preserving (Wp multiple of 8, Cp = 128 lanes).
        halo = x_ref[pl.ds(row0 + c0, hb_c + K - 1), :, :, :].reshape(Rh, Cp)
        acc = None
        for kw in range(K):              # ONE XLU roll per kw (hoisted out of kh loop)
            # rolled[r] = halo[(r + kw) mod Rh]; wrapped-in values only land in output
            # columns w >= Wo (since Wp >= Wo + K - 1), which are cropped in the wrapper.
            rolled = halo if kw == 0 else pltpu.roll(halo, shift=Rh - kw, axis=0)
            for kh in range(K):
                sl = rolled[kh * RW:kh * RW + Rc, :].reshape(Rc // 8, 8, Cp)
                term = sl * taps[kh * K + kw]          # f32 per-lane tap FMA
                acc = term if acc is None else acc + term
        acc_ref[pl.ds(c0 * RW, Rc), :] = acc.reshape(Rc, Cp).astype(mxu_dtype)
        c0 += hb_c

    # ---- pointwise 1x1 conv == lane-dense matmul on the MXU ------------------------
    m0 = 0
    while m0 < R:                        # <=224-row pieces bound the f32 result slab
        mc = min(mm_rows, R - m0)
        y = jnp.dot(acc_ref[pl.ds(m0, mc), :], wpw_ref[...],
                    preferred_element_type=jnp.float32)        # [mc, Pp] f32
        out_ref[pl.ds(m0, mc), :] = y.astype(out_ref.dtype)
        m0 += mc


def separable_conv2d(x_nchw, w_dw, w_pw, *, kernel_size=3, mxu_dtype=jnp.bfloat16,
                     num_strips=None):
    """x_nchw: [N, C, H, W]; w_dw: [K, K, C]; w_pw: [C, P] -> [N, P, Ho, Wo]."""
    N, C, H, W = x_nchw.shape
    K = kernel_size
    assert w_dw.shape == (K, K, C)
    P = w_pw.shape[1]
    Ho, Wo = H - (K - 1), W - (K - 1)
    assert Ho >= 1 and Wo >= 1

    LANES, SUBLANES = 128, 8
    Cp = _round_up(C, LANES)             # lane-dense channels
    Pp = _round_up(P, LANES)             # lane-dense output planes
    Wp = _round_up(W, SUBLANES)          # sublane-aligned width
    KKp = _round_up(K * K, SUBLANES)
    # Roll-wrap safety: shifted-in garbage must only land in cropped columns.
    assert Wp >= Wo + K - 1, "width padding too tight for the roll-based kw shift"

    if num_strips is None:
        num_strips = _strips_for_device()
    num_strips = max(1, min(num_strips, Ho))
    hs = -(-Ho // num_strips)            # ceil: output rows per strip
    Hp_out = num_strips * hs             # padded output rows (cropped below)
    Hp_in = Hp_out + K - 1               # padded input rows (zero rows -> cropped output)

    RW = N * Wp                          # flat rows per image row
    R = hs * RW                          # flat output rows per strip
    hb = _pick_depthwise_chunk(hs, RW, K, K * K)
    mm_rows = min(R, 224)

    # ---- wrapper-side layout plumbing (cheap XLA ops, done once) -------------------
    x_hnwc = jnp.transpose(x_nchw, (2, 0, 3, 1)).astype(jnp.float32)   # NCHW -> [H,N,W,C]
    x_pad = jnp.pad(x_hnwc, ((0, Hp_in - H), (0, 0), (0, Wp - W), (0, Cp - C)))
    wdw_packed = jnp.pad(w_dw.reshape(K * K, C).astype(jnp.float32),
                         ((0, KKp - K * K), (0, Cp - C)))
    wpw_pad = jnp.pad(w_pw.astype(jnp.float32),
                      ((0, Cp - C), (0, Pp - P))).astype(mxu_dtype)

    kernel = functools.partial(_sepconv_kernel, K=K, NB=N, hs=hs, hb=hb, Wp=Wp,
                               Cp=Cp, mxu_dtype=mxu_dtype, mm_rows=mm_rows)

    out_flat = pl.pallas_call(
        kernel,
        out_shape=jax.ShapeDtypeStruct((num_strips * R, Pp), x_nchw.dtype),
        grid=(num_strips,),
        in_specs=[
            pl.BlockSpec((Hp_in, N, Wp, Cp), lambda i: (0, 0, 0, 0)),  # resident image
            pl.BlockSpec((KKp, Cp), lambda i: (0, 0)),
            pl.BlockSpec((Cp, Pp), lambda i: (0, 0)),
        ],
        out_specs=pl.BlockSpec((R, Pp), lambda i: (i, 0)),
        scratch_shapes=[pltpu.VMEM((R, Cp), mxu_dtype)],
        compiler_params=pltpu.CompilerParams(
            dimension_semantics=("parallel",)),
    )(x_pad, wdw_packed, wpw_pad)

    out = out_flat.reshape(Hp_out, N, Wp, Pp)[:Ho, :, :Wo, :P]   # crop padded rows/cols
    return jnp.transpose(out, (1, 3, 0, 2)).astype(x_nchw.dtype)  # -> [N, P, Ho, Wo]


def _reference(x_nchw, w_dw, w_pw):
    """Pure-JAX f32 reference using lax.conv (matches the PyTorch module)."""
    C = x_nchw.shape[1]
    x = jnp.transpose(x_nchw, (0, 2, 3, 1))                         # NHWC
    dw = w_dw[:, :, None, :]                                        # [K, K, 1, C] depthwise
    y = jax.lax.conv_general_dilated(
        x, dw, window_strides=(1, 1), padding="VALID",
        dimension_numbers=("NHWC", "HWIO", "NHWC"),
        feature_group_count=C)
    pw = w_pw[None, None, :, :]                                     # [1, 1, C, P]
    z = jax.lax.conv_general_dilated(
        y, pw, window_strides=(1, 1), padding="VALID",
        dimension_numbers=("NHWC", "HWIO", "NHWC"))
    return jnp.transpose(z, (0, 3, 1, 2))                           # NCHW


if __name__ == "__main__":
    # SeparableConv2d(inplanes=4, planes=8, kernel_size=3, stride=1, padding=0, bias=False)
    N, C, H, W = 2, 4, 16, 16
    P, K = 8, 3

    key = jax.random.PRNGKey(0)
    kx, kdw, kpw = jax.random.split(key, 3)

    x = jax.random.normal(kx, (N, C, H, W), jnp.float32)
    # Deterministic scaled weights (shapes map 1:1 onto the PyTorch module's parameters:
    # conv1.weight[c,0,kh,kw] == w_dw[kh,kw,c]; pointwise.weight[p,c,0,0] == w_pw[c,p]).
    w_dw = jax.random.normal(kdw, (K, K, C), jnp.float32) * (1.0 / (K * K))
    w_pw = jax.random.normal(kpw, (C, P), jnp.float32) * (1.0 / C)

    out = jax.block_until_ready(separable_conv2d(x, w_dw, w_pw, kernel_size=K))
    ref = jax.block_until_ready(_reference(x, w_dw, w_pw))

    assert out.shape == (N, P, H - K + 1, W - K + 1), out.shape
    # bf16 MXU operands (and the bf16 depthwise-result staging) perturb the pointwise
    # products at the ~2^-9 relative level; depthwise math/accumulation stays f32.
    # Measured error is ~1e-3; 2e-2 bounds it comfortably at these magnitudes.
    max_err = float(jnp.max(jnp.abs(out - ref)))
    assert jnp.allclose(out, ref, atol=2e-2, rtol=2e-2), f"max|diff|={max_err}"

    print("KERNEL_OK")
</pallas_src>

<mosaic_0001>
module attributes {stable_mosaic.version = 11 : i64} {
  func.func @_sepconv_kernel(%arg0: i32, %arg1: memref<16x2x16x128xf32, #tpu.memory_space<vmem>>, %arg2: memref<16x128xf32, #tpu.memory_space<vmem>>, %arg3: memref<128x128xbf16, #tpu.memory_space<vmem>>, %arg4: memref<448x128xf32, #tpu.memory_space<vmem>>, %arg5: memref<448x128xbf16, #tpu.memory_space<vmem>>) attributes {dimension_semantics = [#tpu.dimension_semantics<parallel>], iteration_bounds = array<i64: 1>, scalar_prefetch = 0 : i64, scratch_operands = 1 : i64, tpu.core_type = #tpu.core_type<tc>, window_params = [{pipeline_mode = #tpu.pipeline_mode<synchronous>, transform_indices = @transform_0, window_bounds = array<i64: 16, 2, 16, 128>}, {pipeline_mode = #tpu.pipeline_mode<synchronous>, transform_indices = @transform_1, window_bounds = array<i64: 16, 128>}, {pipeline_mode = #tpu.pipeline_mode<synchronous>, transform_indices = @transform_2, window_bounds = array<i64: 128, 128>}, {transform_indices = @transform_3, window_bounds = array<i64: 448, 128>}]} {
    %c14_i32 = arith.constant 14 : i32
    %0 = arith.muli %arg0, %c14_i32 : i32
    %c0 = arith.constant 0 : index
    %c0_0 = arith.constant 0 : index
    %1 = vector.load %arg2[%c0, %c0_0] : memref<16x128xf32, #tpu.memory_space<vmem>>, vector<1x128xf32>
    %2 = vector.shape_cast %1 : vector<1x128xf32> to vector<128xf32>
    %3 = vector.shape_cast %2 : vector<128xf32> to vector<1x1x128xf32>
    %4 = vector.broadcast %3 : vector<1x1x128xf32> to vector<1x8x128xf32>
    %c1 = arith.constant 1 : index
    %c0_1 = arith.constant 0 : index
    %5 = vector.load %arg2[%c1, %c0_1] : memref<16x128xf32, #tpu.memory_space<vmem>>, vector<1x128xf32>
    %6 = vector.shape_cast %5 : vector<1x128xf32> to vector<128xf32>
    %7 = vector.shape_cast %6 : vector<128xf32> to vector<1x1x128xf32>
    %8 = vector.broadcast %7 : vector<1x1x128xf32> to vector<1x8x128xf32>
    %c2 = arith.constant 2 : index
    %c0_2 = arith.constant 0 : index
    %9 = vector.load %arg2[%c2, %c0_2] : memref<16x128xf32, #tpu.memory_space<vmem>>, vector<1x128xf32>
    %10 = vector.shape_cast %9 : vector<1x128xf32> to vector<128xf32>
    %11 = vector.shape_cast %10 : vector<128xf32> to vector<1x1x128xf32>
    %12 = vector.broadcast %11 : vector<1x1x128xf32> to vector<1x8x128xf32>
    %c3 = arith.constant 3 : index
    %c0_3 = arith.constant 0 : index
    %13 = vector.load %arg2[%c3, %c0_3] : memref<16x128xf32, #tpu.memory_space<vmem>>, vector<1x128xf32>
    %14 = vector.shape_cast %13 : vector<1x128xf32> to vector<128xf32>
    %15 = vector.shape_cast %14 : vector<128xf32> to vector<1x1x128xf32>
    %16 = vector.broadcast %15 : vector<1x1x128xf32> to vector<1x8x128xf32>
    %c4 = arith.constant 4 : index
    %c0_4 = arith.constant 0 : index
    %17 = vector.load %arg2[%c4, %c0_4] : memref<16x128xf32, #tpu.memory_space<vmem>>, vector<1x128xf32>
    %18 = vector.shape_cast %17 : vector<1x128xf32> to vector<128xf32>
    %19 = vector.shape_cast %18 : vector<128xf32> to vector<1x1x128xf32>
    %20 = vector.broadcast %19 : vector<1x1x128xf32> to vector<1x8x128xf32>
    %c5 = arith.constant 5 : index
    %c0_5 = arith.constant 0 : index
    %21 = vector.load %arg2[%c5, %c0_5] : memref<16x128xf32, #tpu.memory_space<vmem>>, vector<1x128xf32>
    %22 = vector.shape_cast %21 : vector<1x128xf32> to vector<128xf32>
    %23 = vector.shape_cast %22 : vector<128xf32> to vector<1x1x128xf32>
    %24 = vector.broadcast %23 : vector<1x1x128xf32> to vector<1x8x128xf32>
    %c6 = arith.constant 6 : index
    %c0_6 = arith.constant 0 : index
    %25 = vector.load %arg2[%c6, %c0_6] : memref<16x128xf32, #tpu.memory_space<vmem>>, vector<1x128xf32>
    %26 = vector.shape_cast %25 : vector<1x128xf32> to vector<128xf32>
    %27 = vector.shape_cast %26 : vector<128xf32> to vector<1x1x128xf32>
    %28 = vector.broadcast %27 : vector<1x1x128xf32> to vector<1x8x128xf32>
    %c7 = arith.constant 7 : index
    %c0_7 = arith.constant 0 : index
    %29 = vector.load %arg2[%c7, %c0_7] : memref<16x128xf32, #tpu.memory_space<vmem>>, vector<1x128xf32>
    %30 = vector.shape_cast %29 : vector<1x128xf32> to vector<128xf32>
    %31 = vector.shape_cast %30 : vector<128xf32> to vector<1x1x128xf32>
    %32 = vector.broadcast %31 : vector<1x1x128xf32> to vector<1x8x128xf32>
    %c8 = arith.constant 8 : index
    %c0_8 = arith.constant 0 : index
    %33 = vector.load %arg2[%c8, %c0_8] : memref<16x128xf32, #tpu.memory_space<vmem>>, vector<1x128xf32>
    %34 = vector.shape_cast %33 : vector<1x128xf32> to vector<128xf32>
    %35 = vector.shape_cast %34 : vector<128xf32> to vector<1x1x128xf32>
    %36 = vector.broadcast %35 : vector<1x1x128xf32> to vector<1x8x128xf32>
    %c0_i32 = arith.constant 0 : i32
    %37 = arith.addi %0, %c0_i32 : i32
    %38 = arith.index_cast %37 : i32 to index
    %c0_9 = arith.constant 0 : index
    %c0_10 = arith.constant 0 : index
    %c0_11 = arith.constant 0 : index
    %39 = vector.load %arg1[%38, %c0_9, %c0_10, %c0_11] : memref<16x2x16x128xf32, #tpu.memory_space<vmem>>, vector<4x2x16x128xf32>
    %40 = vector.shape_cast %39 : vector<4x2x16x128xf32> to vector<128x128xf32>
    %41 = vector.extract_strided_slice %40 {offsets = [0, 0], sizes = [64, 128], strides = [1, 1]} : vector<128x128xf32> to vector<64x128xf32>
    %42 = vector.shape_cast %41 : vector<64x128xf32> to vector<8x8x128xf32>
    %43 = vector.broadcast %4 : vector<1x8x128xf32> to vector<8x8x128xf32>
    %44 = arith.mulf %42, %43 : vector<8x8x128xf32>
    %45 = vector.extract_strided_slice %40 {offsets = [32, 0], sizes = [64, 128], strides = [1, 1]} : vector<128x128xf32> to vector<64x128xf32>
    %46 = vector.shape_cast %45 : vector<64x128xf32> to vector<8x8x128xf32>
    %47 = vector.broadcast %16 : vector<1x8x128xf32> to vector<8x8x128xf32>
    %48 = arith.mulf %46, %47 : vector<8x8x128xf32>
    %49 = arith.addf %44, %48 : vector<8x8x128xf32>
    %50 = vector.extract_strided_slice %40 {offsets = [64, 0], sizes = [64, 128], strides = [1, 1]} : vector<128x128xf32> to vector<64x128xf32>
    %51 = vector.shape_cast %50 : vector<64x128xf32> to vector<8x8x128xf32>
    %52 = vector.broadcast %28 : vector<1x8x128xf32> to vector<8x8x128xf32>
    %53 = arith.mulf %51, %52 : vector<8x8x128xf32>
    %54 = arith.addf %49, %53 : vector<8x8x128xf32>
    %c127_i32 = arith.constant 127 : i32
    %55 = tpu.dynamic_rotate %40 by %c127_i32 dim 0 : vector<128x128xf32>, i32 -> vector<128x128xf32>
    %56 = vector.extract_strided_slice %55 {offsets = [0, 0], sizes = [64, 128], strides = [1, 1]} : vector<128x128xf32> to vector<64x128xf32>
    %57 = vector.shape_cast %56 : vector<64x128xf32> to vector<8x8x128xf32>
    %58 = vector.broadcast %8 : vector<1x8x128xf32> to vector<8x8x128xf32>
    %59 = arith.mulf %57, %58 : vector<8x8x128xf32>
    %60 = arith.addf %54, %59 : vector<8x8x128xf32>
    %61 = vector.extract_strided_slice %55 {offsets = [32, 0], sizes = [64, 128], strides = [1, 1]} : vector<128x128xf32> to vector<64x128xf32>
    %62 = vector.shape_cast %61 : vector<64x128xf32> to vector<8x8x128xf32>
    %63 = vector.broadcast %20 : vector<1x8x128xf32> to vector<8x8x128xf32>
    %64 = arith.mulf %62, %63 : vector<8x8x128xf32>
    %65 = arith.addf %60, %64 : vector<8x8x128xf32>
    %66 = vector.extract_strided_slice %55 {offsets = [64, 0], sizes = [64, 128], strides = [1, 1]} : vector<128x128xf32> to vector<64x128xf32>
    %67 = vector.shape_cast %66 : vector<64x128xf32> to vector<8x8x128xf32>
    %68 = vector.broadcast %32 : vector<1x8x128xf32> to vector<8x8x128xf32>
    %69 = arith.mulf %67, %68 : vector<8x8x128xf32>
    %70 = arith.addf %65, %69 : vector<8x8x128xf32>
    %c126_i32 = arith.constant 126 : i32
    %71 = tpu.dynamic_rotate %40 by %c126_i32 dim 0 : vector<128x128xf32>, i32 -> vector<128x128xf32>
    %72 = vector.extract_strided_slice %71 {offsets = [0, 0], sizes = [64, 128], strides = [1, 1]} : vector<128x128xf32> to vector<64x128xf32>
    %73 = vector.shape_cast %72 : vector<64x128xf32> to vector<8x8x128xf32>
    %74 = vector.broadcast %12 : vector<1x8x128xf32> to vector<8x8x128xf32>
    %75 = arith.mulf %73, %74 : vector<8x8x128xf32>
    %76 = arith.addf %70, %75 : vector<8x8x128xf32>
    %77 = vector.extract_strided_slice %71 {offsets = [32, 0], sizes = [64, 128], strides = [1, 1]} : vector<128x128xf32> to vector<64x128xf32>
    %78 = vector.shape_cast %77 : vector<64x128xf32> to vector<8x8x128xf32>
    %79 = vector.broadcast %24 : vector<1x8x128xf32> to vector<8x8x128xf32>
    %80 = arith.mulf %78, %79 : vector<8x8x128xf32>
    %81 = arith.addf %76, %80 : vector<8x8x128xf32>
    %82 = vector.extract_strided_slice %71 {offsets = [64, 0], sizes = [64, 128], strides = [1, 1]} : vector<128x128xf32> to vector<64x128xf32>
    %83 = vector.shape_cast %82 : vector<64x128xf32> to vector<8x8x128xf32>
    %84 = vector.broadcast %36 : vector<1x8x128xf32> to vector<8x8x128xf32>
    %85 = arith.mulf %83, %84 : vector<8x8x128xf32>
    %86 = arith.addf %81, %85 : vector<8x8x128xf32>
    %87 = vector.shape_cast %86 : vector<8x8x128xf32> to vector<64x128xf32>
    %88 = arith.truncf %87 : vector<64x128xf32> to vector<64x128xbf16>
    %c0_12 = arith.constant 0 : index
    %c0_13 = arith.constant 0 : index
    %89 = vector.load %arg5[%c0_12, %c0_13] : memref<448x128xbf16, #tpu.memory_space<vmem>>, vector<64x128xbf16>
    tpu.vector_store %arg5[%c0_12, %c0_13], %88 {strides = array<i32>} : memref<448x128xbf16, #tpu.memory_space<vmem>>, vector<64x128xbf16>,
    %c2_i32 = arith.constant 2 : i32
    %90 = arith.addi %0, %c2_i32 : i32
    %91 = arith.index_cast %90 : i32 to index
    %c0_14 = arith.constant 0 : index
    %c0_15 = arith.constant 0 : index
    %c0_16 = arith.constant 0 : index
    %92 = vector.load %arg1[%91, %c0_14, %c0_15, %c0_16] : memref<16x2x16x128xf32, #tpu.memory_space<vmem>>, vector<4x2x16x128xf32>
    %93 = vector.shape_cast %92 : vector<4x2x16x128xf32> to vector<128x128xf32>
    %94 = vector.extract_strided_slice %93 {offsets = [0, 0], sizes = [64, 128], strides = [1, 1]} : vector<128x128xf32> to vector<64x128xf32>
    %95 = vector.shape_cast %94 : vector<64x128xf32> to vector<8x8x128xf32>
    %96 = vector.broadcast %4 : vector<1x8x128xf32> to vector<8x8x128xf32>
    %97 = arith.mulf %95, %96 : vector<8x8x128xf32>
    %98 = vector.extract_strided_slice %93 {offsets = [32, 0], sizes = [64, 128], strides = [1, 1]} : vector<128x128xf32> to vector<64x128xf32>
    %99 = vector.shape_cast %98 : vector<64x128xf32> to vector<8x8x128xf32>
    %100 = vector.broadcast %16 : vector<1x8x128xf32> to vector<8x8x128xf32>
    %101 = arith.mulf %99, %100 : vector<8x8x128xf32>
    %102 = arith.addf %97, %101 : vector<8x8x128xf32>
    %103 = vector.extract_strided_slice %93 {offsets = [64, 0], sizes = [64, 128], strides = [1, 1]} : vector<128x128xf32> to vector<64x128xf32>
    %104 = vector.shape_cast %103 : vector<64x128xf32> to vector<8x8x128xf32>
    %105 = vector.broadcast %28 : vector<1x8x128xf32> to vector<8x8x128xf32>
    %106 = arith.mulf %104, %105 : vector<8x8x128xf32>
    %107 = arith.addf %102, %106 : vector<8x8x128xf32>
    %c127_i32_17 = arith.constant 127 : i32
    %108 = tpu.dynamic_rotate %93 by %c127_i32_17 dim 0 : vector<128x128xf32>, i32 -> vector<128x128xf32>
    %109 = vector.extract_strided_slice %108 {offsets = [0, 0], sizes = [64, 128], strides = [1, 1]} : vector<128x128xf32> to vector<64x128xf32>
    %110 = vector.shape_cast %109 : vector<64x128xf32> to vector<8x8x128xf32>
    %111 = vector.broadcast %8 : vector<1x8x128xf32> to vector<8x8x128xf32>
    %112 = arith.mulf %110, %111 : vector<8x8x128xf32>
    %113 = arith.addf %107, %112 : vector<8x8x128xf32>
    %114 = vector.extract_strided_slice %108 {offsets = [32, 0], sizes = [64, 128], strides = [1, 1]} : vector<128x128xf32> to vector<64x128xf32>
    %115 = vector.shape_cast %114 : vector<64x128xf32> to vector<8x8x128xf32>
    %116 = vector.broadcast %20 : vector<1x8x128xf32> to vector<8x8x128xf32>
    %117 = arith.mulf %115, %116 : vector<8x8x128xf32>
    %118 = arith.addf %113, %117 : vector<8x8x128xf32>
    %119 = vector.extract_strided_slice %108 {offsets = [64, 0], sizes = [64, 128], strides = [1, 1]} : vector<128x128xf32> to vector<64x128xf32>
    %120 = vector.shape_cast %119 : vector<64x128xf32> to vector<8x8x128xf32>
    %121 = vector.broadcast %32 : vector<1x8x128xf32> to vector<8x8x128xf32>
    %122 = arith.mulf %120, %121 : vector<8x8x128xf32>
    %123 = arith.addf %118, %122 : vector<8x8x128xf32>
    %c126_i32_18 = arith.constant 126 : i32
    %124 = tpu.dynamic_rotate %93 by %c126_i32_18 dim 0 : vector<128x128xf32>, i32 -> vector<128x128xf32>
    %125 = vector.extract_strided_slice %124 {offsets = [0, 0], sizes = [64, 128], strides = [1, 1]} : vector<128x128xf32> to vector<64x128xf32>
    %126 = vector.shape_cast %125 : vector<64x128xf32> to vector<8x8x128xf32>
    %127 = vector.broadcast %12 : vector<1x8x128xf32> to vector<8x8x128xf32>
    %128 = arith.mulf %126, %127 : vector<8x8x128xf32>
    %129 = arith.addf %123, %128 : vector<8x8x128xf32>
    %130 = vector.extract_strided_slice %124 {offsets = [32, 0], sizes = [64, 128], strides = [1, 1]} : vector<128x128xf32> to vector<64x128xf32>
    %131 = vector.shape_cast %130 : vector<64x128xf32> to vector<8x8x128xf32>
    %132 = vector.broadcast %24 : vector<1x8x128xf32> to vector<8x8x128xf32>
    %133 = arith.mulf %131, %132 : vector<8x8x128xf32>
    %134 = arith.addf %129, %133 : vector<8x8x128xf32>
    %135 = vector.extract_strided_slice %124 {offsets = [64, 0], sizes = [64, 128], strides = [1, 1]} : vector<128x128xf32> to vector<64x128xf32>
    %136 = vector.shape_cast %135 : vector<64x128xf32> to vector<8x8x128xf32>
    %137 = vector.broadcast %36 : vector<1x8x128xf32> to vector<8x8x128xf32>
    %138 = arith.mulf %136, %137 : vector<8x8x128xf32>
    %139 = arith.addf %134, %138 : vector<8x8x128xf32>
    %140 = vector.shape_cast %139 : vector<8x8x128xf32> to vector<64x128xf32>
    %141 = arith.truncf %140 : vector<64x128xf32> to vector<64x128xbf16>
    %c64 = arith.constant 64 : index
    %c0_19 = arith.constant 0 : index
    %142 = vector.load %arg5[%c64, %c0_19] : memref<448x128xbf16, #tpu.memory_space<vmem>>, vector<64x128xbf16>
    tpu.vector_store %arg5[%c64, %c0_19], %141 {strides = array<i32>} : memref<448x128xbf16, #tpu.memory_space<vmem>>, vector<64x128xbf16>,
    %c4_i32 = arith.constant 4 : i32
    %143 = arith.addi %0, %c4_i32 : i32
    %144 = arith.index_cast %143 : i32 to index
    %c0_20 = arith.constant 0 : index
    %c0_21 = arith.constant 0 : index
    %c0_22 = arith.constant 0 : index
    %145 = vector.load %arg1[%144, %c0_20, %c0_21, %c0_22] : memref<16x2x16x128xf32, #tpu.memory_space<vmem>>, vector<4x2x16x128xf32>
    %146 = vector.shape_cast %145 : vector<4x2x16x128xf32> to vector<128x128xf32>
    %147 = vector.extract_strided_slice %146 {offsets = [0, 0], sizes = [64, 128], strides = [1, 1]} : vector<128x128xf32> to vector<64x128xf32>
    %148 = vector.shape_cast %147 : vector<64x128xf32> to vector<8x8x128xf32>
    %149 = vector.broadcast %4 : vector<1x8x128xf32> to vector<8x8x128xf32>
    %150 = arith.mulf %148, %149 : vector<8x8x128xf32>
    %151 = vector.extract_strided_slice %146 {offsets = [32, 0], sizes = [64, 128], strides = [1, 1]} : vector<128x128xf32> to vector<64x128xf32>
    %152 = vector.shape_cast %151 : vector<64x128xf32> to vector<8x8x128xf32>
    %153 = vector.broadcast %16 : vector<1x8x128xf32> to vector<8x8x128xf32>
    %154 = arith.mulf %152, %153 : vector<8x8x128xf32>
    %155 = arith.addf %150, %154 : vector<8x8x128xf32>
    %156 = vector.extract_strided_slice %146 {offsets = [64, 0], sizes = [64, 128], strides = [1, 1]} : vector<128x128xf32> to vector<64x128xf32>
    %157 = vector.shape_cast %156 : vector<64x128xf32> to vector<8x8x128xf32>
    %158 = vector.broadcast %28 : vector<1x8x128xf32> to vector<8x8x128xf32>
    %159 = arith.mulf %157, %158 : vector<8x8x128xf32>
    %160 = arith.addf %155, %159 : vector<8x8x128xf32>
    %c127_i32_23 = arith.constant 127 : i32
    %161 = tpu.dynamic_rotate %146 by %c127_i32_23 dim 0 : vector<128x128xf32>, i32 -> vector<128x128xf32>
    %162 = vector.extract_strided_slice %161 {offsets = [0, 0], sizes = [64, 128], strides = [1, 1]} : vector<128x128xf32> to vector<64x128xf32>
    %163 = vector.shape_cast %162 : vector<64x128xf32> to vector<8x8x128xf32>
    %164 = vector.broadcast %8 : vector<1x8x128xf32> to vector<8x8x128xf32>
    %165 = arith.mulf %163, %164 : vector<8x8x128xf32>
    %166 = arith.addf %160, %165 : vector<8x8x128xf32>
    %167 = vector.extract_strided_slice %161 {offsets = [32, 0], sizes = [64, 128], strides = [1, 1]} : vector<128x128xf32> to vector<64x128xf32>
    %168 = vector.shape_cast %167 : vector<64x128xf32> to vector<8x8x128xf32>
    %169 = vector.broadcast %20 : vector<1x8x128xf32> to vector<8x8x128xf32>
    %170 = arith.mulf %168, %169 : vector<8x8x128xf32>
    %171 = arith.addf %166, %170 : vector<8x8x128xf32>
    %172 = vector.extract_strided_slice %161 {offsets = [64, 0], sizes = [64, 128], strides = [1, 1]} : vector<128x128xf32> to vector<64x128xf32>
    %173 = vector.shape_cast %172 : vector<64x128xf32> to vector<8x8x128xf32>
    %174 = vector.broadcast %32 : vector<1x8x128xf32> to vector<8x8x128xf32>
    %175 = arith.mulf %173, %174 : vector<8x8x128xf32>
    %176 = arith.addf %171, %175 : vector<8x8x128xf32>
    %c126_i32_24 = arith.constant 126 : i32
    %177 = tpu.dynamic_rotate %146 by %c126_i32_24 dim 0 : vector<128x128xf32>, i32 -> vector<128x128xf32>
    %178 = vector.extract_strided_slice %177 {offsets = [0, 0], sizes = [64, 128], strides = [1, 1]} : vector<128x128xf32> to vector<64x128xf32>
    %179 = vector.shape_cast %178 : vector<64x128xf32> to vector<8x8x128xf32>
    %180 = vector.broadcast %12 : vector<1x8x128xf32> to vector<8x8x128xf32>
    %181 = arith.mulf %179, %180 : vector<8x8x128xf32>
    %182 = arith.addf %176, %181 : vector<8x8x128xf32>
    %183 = vector.extract_strided_slice %177 {offsets = [32, 0], sizes = [64, 128], strides = [1, 1]} : vector<128x128xf32> to vector<64x128xf32>
    %184 = vector.shape_cast %183 : vector<64x128xf32> to vector<8x8x128xf32>
    %185 = vector.broadcast %24 : vector<1x8x128xf32> to vector<8x8x128xf32>
    %186 = arith.mulf %184, %185 : vector<8x8x128xf32>
    %187 = arith.addf %182, %186 : vector<8x8x128xf32>
    %188 = vector.extract_strided_slice %177 {offsets = [64, 0], sizes = [64, 128], strides = [1, 1]} : vector<128x128xf32> to vector<64x128xf32>
    %189 = vector.shape_cast %188 : vector<64x128xf32> to vector<8x8x128xf32>
    %190 = vector.broadcast %36 : vector<1x8x128xf32> to vector<8x8x128xf32>
    %191 = arith.mulf %189, %190 : vector<8x8x128xf32>
    %192 = arith.addf %187, %191 : vector<8x8x128xf32>
    %193 = vector.shape_cast %192 : vector<8x8x128xf32> to vector<64x128xf32>
    %194 = arith.truncf %193 : vector<64x128xf32> to vector<64x128xbf16>
    %c128 = arith.constant 128 : index
    %c0_25 = arith.constant 0 : index
    %195 = vector.load %arg5[%c128, %c0_25] : memref<448x128xbf16, #tpu.memory_space<vmem>>, vector<64x128xbf16>
    tpu.vector_store %arg5[%c128, %c0_25], %194 {strides = array<i32>} : memref<448x128xbf16, #tpu.memory_space<vmem>>, vector<64x128xbf16>,
    %c6_i32 = arith.constant 6 : i32
    %196 = arith.addi %0, %c6_i32 : i32
    %197 = arith.index_cast %196 : i32 to index
    %c0_26 = arith.constant 0 : index
    %c0_27 = arith.constant 0 : index
    %c0_28 = arith.constant 0 : index
    %198 = vector.load %arg1[%197, %c0_26, %c0_27, %c0_28] : memref<16x2x16x128xf32, #tpu.memory_space<vmem>>, vector<4x2x16x128xf32>
    %199 = vector.shape_cast %198 : vector<4x2x16x128xf32> to vector<128x128xf32>
    %200 = vector.extract_strided_slice %199 {offsets = [0, 0], sizes = [64, 128], strides = [1, 1]} : vector<128x128xf32> to vector<64x128xf32>
    %201 = vector.shape_cast %200 : vector<64x128xf32> to vector<8x8x128xf32>
    %202 = vector.broadcast %4 : vector<1x8x128xf32> to vector<8x8x128xf32>
    %203 = arith.mulf %201, %202 : vector<8x8x128xf32>
    %204 = vector.extract_strided_slice %199 {offsets = [32, 0], sizes = [64, 128], strides = [1, 1]} : vector<128x128xf32> to vector<64x128xf32>
    %205 = vector.shape_cast %204 : vector<64x128xf32> to vector<8x8x128xf32>
    %206 = vector.broadcast %16 : vector<1x8x128xf32> to vector<8x8x128xf32>
    %207 = arith.mulf %205, %206 : vector<8x8x128xf32>
    %208 = arith.addf %203, %207 : vector<8x8x128xf32>
    %209 = vector.extract_strided_slice %199 {offsets = [64, 0], sizes = [64, 128], strides = [1, 1]} : vector<128x128xf32> to vector<64x128xf32>
    %210 = vector.shape_cast %209 : vector<64x128xf32> to vector<8x8x128xf32>
    %211 = vector.broadcast %28 : vector<1x8x128xf32> to vector<8x8x128xf32>
    %212 = arith.mulf %210, %211 : vector<8x8x128xf32>
    %213 = arith.addf %208, %212 : vector<8x8x128xf32>
    %c127_i32_29 = arith.constant 127 : i32
    %214 = tpu.dynamic_rotate %199 by %c127_i32_29 dim 0 : vector<128x128xf32>, i32 -> vector<128x128xf32>
    %215 = vector.extract_strided_slice %214 {offsets = [0, 0], sizes = [64, 128], strides = [1, 1]} : vector<128x128xf32> to vector<64x128xf32>
    %216 = vector.shape_cast %215 : vector<64x128xf32> to vector<8x8x128xf32>
    %217 = vector.broadcast %8 : vector<1x8x128xf32> to vector<8x8x128xf32>
    %218 = arith.mulf %216, %217 : vector<8x8x128xf32>
    %219 = arith.addf %213, %218 : vector<8x8x128xf32>
    %220 = vector.extract_strided_slice %214 {offsets = [32, 0], sizes = [64, 128], strides = [1, 1]} : vector<128x128xf32> to vector<64x128xf32>
    %221 = vector.shape_cast %220 : vector<64x128xf32> to vector<8x8x128xf32>
    %222 = vector.broadcast %20 : vector<1x8x128xf32> to vector<8x8x128xf32>
    %223 = arith.mulf %221, %222 : vector<8x8x128xf32>
    %224 = arith.addf %219, %223 : vector<8x8x128xf32>
    %225 = vector.extract_strided_slice %214 {offsets = [64, 0], sizes = [64, 128], strides = [1, 1]} : vector<128x128xf32> to vector<64x128xf32>
    %226 = vector.shape_cast %225 : vector<64x128xf32> to vector<8x8x128xf32>
    %227 = vector.broadcast %32 : vector<1x8x128xf32> to vector<8x8x128xf32>
    %228 = arith.mulf %226, %227 : vector<8x8x128xf32>
    %229 = arith.addf %224, %228 : vector<8x8x128xf32>
    %c126_i32_30 = arith.constant 126 : i32
    %230 = tpu.dynamic_rotate %199 by %c126_i32_30 dim 0 : vector<128x128xf32>, i32 -> vector<128x128xf32>
    %231 = vector.extract_strided_slice %230 {offsets = [0, 0], sizes = [64, 128], strides = [1, 1]} : vector<128x128xf32> to vector<64x128xf32>
    %232 = vector.shape_cast %231 : vector<64x128xf32> to vector<8x8x128xf32>
    %233 = vector.broadcast %12 : vector<1x8x128xf32> to vector<8x8x128xf32>
    %234 = arith.mulf %232, %233 : vector<8x8x128xf32>
    %235 = arith.addf %229, %234 : vector<8x8x128xf32>
    %236 = vector.extract_strided_slice %230 {offsets = [32, 0], sizes = [64, 128], strides = [1, 1]} : vector<128x128xf32> to vector<64x128xf32>
    %237 = vector.shape_cast %236 : vector<64x128xf32> to vector<8x8x128xf32>
    %238 = vector.broadcast %24 : vector<1x8x128xf32> to vector<8x8x128xf32>
    %239 = arith.mulf %237, %238 : vector<8x8x128xf32>
    %240 = arith.addf %235, %239 : vector<8x8x128xf32>
    %241 = vector.extract_strided_slice %230 {offsets = [64, 0], sizes = [64, 128], strides = [1, 1]} : vector<128x128xf32> to vector<64x128xf32>
    %242 = vector.shape_cast %241 : vector<64x128xf32> to vector<8x8x128xf32>
    %243 = vector.broadcast %36 : vector<1x8x128xf32> to vector<8x8x128xf32>
    %244 = arith.mulf %242, %243 : vector<8x8x128xf32>
    %245 = arith.addf %240, %244 : vector<8x8x128xf32>
    %246 = vector.shape_cast %245 : vector<8x8x128xf32> to vector<64x128xf32>
    %247 = arith.truncf %246 : vector<64x128xf32> to vector<64x128xbf16>
    %c192 = arith.constant 192 : index
    %c0_31 = arith.constant 0 : index
    %248 = vector.load %arg5[%c192, %c0_31] : memref<448x128xbf16, #tpu.memory_space<vmem>>, vector<64x128xbf16>
    tpu.vector_store %arg5[%c192, %c0_31], %247 {strides = array<i32>} : memref<448x128xbf16, #tpu.memory_space<vmem>>, vector<64x128xbf16>,
    %c8_i32 = arith.constant 8 : i32
    %249 = arith.addi %0, %c8_i32 : i32
    %250 = arith.index_cast %249 : i32 to index
    %c0_32 = arith.constant 0 : index
    %c0_33 = arith.constant 0 : index
    %c0_34 = arith.constant 0 : index
    %251 = vector.load %arg1[%250, %c0_32, %c0_33, %c0_34] : memref<16x2x16x128xf32, #tpu.memory_space<vmem>>, vector<4x2x16x128xf32>
    %252 = vector.shape_cast %251 : vector<4x2x16x128xf32> to vector<128x128xf32>
    %253 = vector.extract_strided_slice %252 {offsets = [0, 0], sizes = [64, 128], strides = [1, 1]} : vector<128x128xf32> to vector<64x128xf32>
    %254 = vector.shape_cast %253 : vector<64x128xf32> to vector<8x8x128xf32>
    %255 = vector.broadcast %4 : vector<1x8x128xf32> to vector<8x8x128xf32>
    %256 = arith.mulf %254, %255 : vector<8x8x128xf32>
    %257 = vector.extract_strided_slice %252 {offsets = [32, 0], sizes = [64, 128], strides = [1, 1]} : vector<128x128xf32> to vector<64x128xf32>
    %258 = vector.shape_cast %257 : vector<64x128xf32> to vector<8x8x128xf32>
    %259 = vector.broadcast %16 : vector<1x8x128xf32> to vector<8x8x128xf32>
    %260 = arith.mulf %258, %259 : vector<8x8x128xf32>
    %261 = arith.addf %256, %260 : vector<8x8x128xf32>
    %262 = vector.extract_strided_slice %252 {offsets = [64, 0], sizes = [64, 128], strides = [1, 1]} : vector<128x128xf32> to vector<64x128xf32>
    %263 = vector.shape_cast %262 : vector<64x128xf32> to vector<8x8x128xf32>
    %264 = vector.broadcast %28 : vector<1x8x128xf32> to vector<8x8x128xf32>
    %265 = arith.mulf %263, %264 : vector<8x8x128xf32>
    %266 = arith.addf %261, %265 : vector<8x8x128xf32>
    %c127_i32_35 = arith.constant 127 : i32
    %267 = tpu.dynamic_rotate %252 by %c127_i32_35 dim 0 : vector<128x128xf32>, i32 -> vector<128x128xf32>
    %268 = vector.extract_strided_slice %267 {offsets = [0, 0], sizes = [64, 128], strides = [1, 1]} : vector<128x128xf32> to vector<64x128xf32>
    %269 = vector.shape_cast %268 : vector<64x128xf32> to vector<8x8x128xf32>
    %270 = vector.broadcast %8 : vector<1x8x128xf32> to vector<8x8x128xf32>
    %271 = arith.mulf %269, %270 : vector<8x8x128xf32>
    %272 = arith.addf %266, %271 : vector<8x8x128xf32>
    %273 = vector.extract_strided_slice %267 {offsets = [32, 0], sizes = [64, 128], strides = [1, 1]} : vector<128x128xf32> to vector<64x128xf32>
    %274 = vector.shape_cast %273 : vector<64x128xf32> to vector<8x8x128xf32>
    %275 = vector.broadcast %20 : vector<1x8x128xf32> to vector<8x8x128xf32>
    %276 = arith.mulf %274, %275 : vector<8x8x128xf32>
    %277 = arith.addf %272, %276 : vector<8x8x128xf32>
    %278 = vector.extract_strided_slice %267 {offsets = [64, 0], sizes = [64, 128], strides = [1, 1]} : vector<128x128xf32> to vector<64x128xf32>
    %279 = vector.shape_cast %278 : vector<64x128xf32> to vector<8x8x128xf32>
    %280 = vector.broadcast %32 : vector<1x8x128xf32> to vector<8x8x128xf32>
    %281 = arith.mulf %279, %280 : vector<8x8x128xf32>
    %282 = arith.addf %277, %281 : vector<8x8x128xf32>
    %c126_i32_36 = arith.constant 126 : i32
    %283 = tpu.dynamic_rotate %252 by %c126_i32_36 dim 0 : vector<128x128xf32>, i32 -> vector<128x128xf32>
    %284 = vector.extract_strided_slice %283 {offsets = [0, 0], sizes = [64, 128], strides = [1, 1]} : vector<128x128xf32> to vector<64x128xf32>
    %285 = vector.shape_cast %284 : vector<64x128xf32> to vector<8x8x128xf32>
    %286 = vector.broadcast %12 : vector<1x8x128xf32> to vector<8x8x128xf32>
    %287 = arith.mulf %285, %286 : vector<8x8x128xf32>
    %288 = arith.addf %282, %287 : vector<8x8x128xf32>
    %289 = vector.extract_strided_slice %283 {offsets = [32, 0], sizes = [64, 128], strides = [1, 1]} : vector<128x128xf32> to vector<64x128xf32>
    %290 = vector.shape_cast %289 : vector<64x128xf32> to vector<8x8x128xf32>
    %291 = vector.broadcast %24 : vector<1x8x128xf32> to vector<8x8x128xf32>
    %292 = arith.mulf %290, %291 : vector<8x8x128xf32>
    %293 = arith.addf %288, %292 : vector<8x8x128xf32>
    %294 = vector.extract_strided_slice %283 {offsets = [64, 0], sizes = [64, 128], strides = [1, 1]} : vector<128x128xf32> to vector<64x128xf32>
    %295 = vector.shape_cast %294 : vector<64x128xf32> to vector<8x8x128xf32>
    %296 = vector.broadcast %36 : vector<1x8x128xf32> to vector<8x8x128xf32>
    %297 = arith.mulf %295, %296 : vector<8x8x128xf32>
    %298 = arith.addf %293, %297 : vector<8x8x128xf32>
    %299 = vector.shape_cast %298 : vector<8x8x128xf32> to vector<64x128xf32>
    %300 = arith.truncf %299 : vector<64x128xf32> to vector<64x128xbf16>
    %c256 = arith.constant 256 : index
    %c0_37 = arith.constant 0 : index
    %301 = vector.load %arg5[%c256, %c0_37] : memref<448x128xbf16, #tpu.memory_space<vmem>>, vector<64x128xbf16>
    tpu.vector_store %arg5[%c256, %c0_37], %300 {strides = array<i32>} : memref<448x128xbf16, #tpu.memory_space<vmem>>, vector<64x128xbf16>,
    %c10_i32 = arith.constant 10 : i32
    %302 = arith.addi %0, %c10_i32 : i32
    %303 = arith.index_cast %302 : i32 to index
    %c0_38 = arith.constant 0 : index
    %c0_39 = arith.constant 0 : index
    %c0_40 = arith.constant 0 : index
    %304 = vector.load %arg1[%303, %c0_38, %c0_39, %c0_40] : memref<16x2x16x128xf32, #tpu.memory_space<vmem>>, vector<4x2x16x128xf32>
    %305 = vector.shape_cast %304 : vector<4x2x16x128xf32> to vector<128x128xf32>
    %306 = vector.extract_strided_slice %305 {offsets = [0, 0], sizes = [64, 128], strides = [1, 1]} : vector<128x128xf32> to vector<64x128xf32>
    %307 = vector.shape_cast %306 : vector<64x128xf32> to vector<8x8x128xf32>
    %308 = vector.broadcast %4 : vector<1x8x128xf32> to vector<8x8x128xf32>
    %309 = arith.mulf %307, %308 : vector<8x8x128xf32>
    %310 = vector.extract_strided_slice %305 {offsets = [32, 0], sizes = [64, 128], strides = [1, 1]} : vector<128x128xf32> to vector<64x128xf32>
    %311 = vector.shape_cast %310 : vector<64x128xf32> to vector<8x8x128xf32>
    %312 = vector.broadcast %16 : vector<1x8x128xf32> to vector<8x8x128xf32>
    %313 = arith.mulf %311, %312 : vector<8x8x128xf32>
    %314 = arith.addf %309, %313 : vector<8x8x128xf32>
    %315 = vector.extract_strided_slice %305 {offsets = [64, 0], sizes = [64, 128], strides = [1, 1]} : vector<128x128xf32> to vector<64x128xf32>
    %316 = vector.shape_cast %315 : vector<64x128xf32> to vector<8x8x128xf32>
    %317 = vector.broadcast %28 : vector<1x8x128xf32> to vector<8x8x128xf32>
    %318 = arith.mulf %316, %317 : vector<8x8x128xf32>
    %319 = arith.addf %314, %318 : vector<8x8x128xf32>
    %c127_i32_41 = arith.constant 127 : i32
    %320 = tpu.dynamic_rotate %305 by %c127_i32_41 dim 0 : vector<128x128xf32>, i32 -> vector<128x128xf32>
    %321 = vector.extract_strided_slice %320 {offsets = [0, 0], sizes = [64, 128], strides = [1, 1]} : vector<128x128xf32> to vector<64x128xf32>
    %322 = vector.shape_cast %321 : vector<64x128xf32> to vector<8x8x128xf32>
    %323 = vector.broadcast %8 : vector<1x8x128xf32> to vector<8x8x128xf32>
    %324 = arith.mulf %322, %323 : vector<8x8x128xf32>
    %325 = arith.addf %319, %324 : vector<8x8x128xf32>
    %326 = vector.extract_strided_slice %320 {offsets = [32, 0], sizes = [64, 128], strides = [1, 1]} : vector<128x128xf32> to vector<64x128xf32>
    %327 = vector.shape_cast %326 : vector<64x128xf32> to vector<8x8x128xf32>
    %328 = vector.broadcast %20 : vector<1x8x128xf32> to vector<8x8x128xf32>
    %329 = arith.mulf %327, %328 : vector<8x8x128xf32>
    %330 = arith.addf %325, %329 : vector<8x8x128xf32>
    %331 = vector.extract_strided_slice %320 {offsets = [64, 0], sizes = [64, 128], strides = [1, 1]} : vector<128x128xf32> to vector<64x128xf32>
    %332 = vector.shape_cast %331 : vector<64x128xf32> to vector<8x8x128xf32>
    %333 = vector.broadcast %32 : vector<1x8x128xf32> to vector<8x8x128xf32>
    %334 = arith.mulf %332, %333 : vector<8x8x128xf32>
    %335 = arith.addf %330, %334 : vector<8x8x128xf32>
    %c126_i32_42 = arith.constant 126 : i32
    %336 = tpu.dynamic_rotate %305 by %c126_i32_42 dim 0 : vector<128x128xf32>, i32 -> vector<128x128xf32>
    %337 = vector.extract_strided_slice %336 {offsets = [0, 0], sizes = [64, 128], strides = [1, 1]} : vector<128x128xf32> to vector<64x128xf32>
    %338 = vector.shape_cast %337 : vector<64x128xf32> to vector<8x8x128xf32>
    %339 = vector.broadcast %12 : vector<1x8x128xf32> to vector<8x8x128xf32>
    %340 = arith.mulf %338, %339 : vector<8x8x128xf32>
    %341 = arith.addf %335, %340 : vector<8x8x128xf32>
    %342 = vector.extract_strided_slice %336 {offsets = [32, 0], sizes = [64, 128], strides = [1, 1]} : vector<128x128xf32> to vector<64x128xf32>
    %343 = vector.shape_cast %342 : vector<64x128xf32> to vector<8x8x128xf32>
    %344 = vector.broadcast %24 : vector<1x8x128xf32> to vector<8x8x128xf32>
    %345 = arith.mulf %343, %344 : vector<8x8x128xf32>
    %346 = arith.addf %341, %345 : vector<8x8x128xf32>
    %347 = vector.extract_strided_slice %336 {offsets = [64, 0], sizes = [64, 128], strides = [1, 1]} : vector<128x128xf32> to vector<64x128xf32>
    %348 = vector.shape_cast %347 : vector<64x128xf32> to vector<8x8x128xf32>
    %349 = vector.broadcast %36 : vector<1x8x128xf32> to vector<8x8x128xf32>
    %350 = arith.mulf %348, %349 : vector<8x8x128xf32>
    %351 = arith.addf %346, %350 : vector<8x8x128xf32>
    %352 = vector.shape_cast %351 : vector<8x8x128xf32> to vector<64x128xf32>
    %353 = arith.truncf %352 : vector<64x128xf32> to vector<64x128xbf16>
    %c320 = arith.constant 320 : index
    %c0_43 = arith.constant 0 : index
    %354 = vector.load %arg5[%c320, %c0_43] : memref<448x128xbf16, #tpu.memory_space<vmem>>, vector<64x128xbf16>
    tpu.vector_store %arg5[%c320, %c0_43], %353 {strides = array<i32>} : memref<448x128xbf16, #tpu.memory_space<vmem>>, vector<64x128xbf16>,
    %c12_i32 = arith.constant 12 : i32
    %355 = arith.addi %0, %c12_i32 : i32
    %356 = arith.index_cast %355 : i32 to index
    %c0_44 = arith.constant 0 : index
    %c0_45 = arith.constant 0 : index
    %c0_46 = arith.constant 0 : index
    %357 = vector.load %arg1[%356, %c0_44, %c0_45, %c0_46] : memref<16x2x16x128xf32, #tpu.memory_space<vmem>>, vector<4x2x16x128xf32>
    %358 = vector.shape_cast %357 : vector<4x2x16x128xf32> to vector<128x128xf32>
    %359 = vector.extract_strided_slice %358 {offsets = [0, 0], sizes = [64, 128], strides = [1, 1]} : vector<128x128xf32> to vector<64x128xf32>
    %360 = vector.shape_cast %359 : vector<64x128xf32> to vector<8x8x128xf32>
    %361 = vector.broadcast %4 : vector<1x8x128xf32> to vector<8x8x128xf32>
    %362 = arith.mulf %360, %361 : vector<8x8x128xf32>
    %363 = vector.extract_strided_slice %358 {offsets = [32, 0], sizes = [64, 128], strides = [1, 1]} : vector<128x128xf32> to vector<64x128xf32>
    %364 = vector.shape_cast %363 : vector<64x128xf32> to vector<8x8x128xf32>
    %365 = vector.broadcast %16 : vector<1x8x128xf32> to vector<8x8x128xf32>
    %366 = arith.mulf %364, %365 : vector<8x8x128xf32>
    %367 = arith.addf %362, %366 : vector<8x8x128xf32>
    %368 = vector.extract_strided_slice %358 {offsets = [64, 0], sizes = [64, 128], strides = [1, 1]} : vector<128x128xf32> to vector<64x128xf32>
    %369 = vector.shape_cast %368 : vector<64x128xf32> to vector<8x8x128xf32>
    %370 = vector.broadcast %28 : vector<1x8x128xf32> to vector<8x8x128xf32>
    %371 = arith.mulf %369, %370 : vector<8x8x128xf32>
    %372 = arith.addf %367, %371 : vector<8x8x128xf32>
    %c127_i32_47 = arith.constant 127 : i32
    %373 = tpu.dynamic_rotate %358 by %c127_i32_47 dim 0 : vector<128x128xf32>, i32 -> vector<128x128xf32>
    %374 = vector.extract_strided_slice %373 {offsets = [0, 0], sizes = [64, 128], strides = [1, 1]} : vector<128x128xf32> to vector<64x128xf32>
    %375 = vector.shape_cast %374 : vector<64x128xf32> to vector<8x8x128xf32>
    %376 = vector.broadcast %8 : vector<1x8x128xf32> to vector<8x8x128xf32>
    %377 = arith.mulf %375, %376 : vector<8x8x128xf32>
    %378 = arith.addf %372, %377 : vector<8x8x128xf32>
    %379 = vector.extract_strided_slice %373 {offsets = [32, 0], sizes = [64, 128], strides = [1, 1]} : vector<128x128xf32> to vector<64x128xf32>
    %380 = vector.shape_cast %379 : vector<64x128xf32> to vector<8x8x128xf32>
    %381 = vector.broadcast %20 : vector<1x8x128xf32> to vector<8x8x128xf32>
    %382 = arith.mulf %380, %381 : vector<8x8x128xf32>
    %383 = arith.addf %378, %382 : vector<8x8x128xf32>
    %384 = vector.extract_strided_slice %373 {offsets = [64, 0], sizes = [64, 128], strides = [1, 1]} : vector<128x128xf32> to vector<64x128xf32>
    %385 = vector.shape_cast %384 : vector<64x128xf32> to vector<8x8x128xf32>
    %386 = vector.broadcast %32 : vector<1x8x128xf32> to vector<8x8x128xf32>
    %387 = arith.mulf %385, %386 : vector<8x8x128xf32>
    %388 = arith.addf %383, %387 : vector<8x8x128xf32>
    %c126_i32_48 = arith.constant 126 : i32
    %389 = tpu.dynamic_rotate %358 by %c126_i32_48 dim 0 : vector<128x128xf32>, i32 -> vector<128x128xf32>
    %390 = vector.extract_strided_slice %389 {offsets = [0, 0], sizes = [64, 128], strides = [1, 1]} : vector<128x128xf32> to vector<64x128xf32>
    %391 = vector.shape_cast %390 : vector<64x128xf32> to vector<8x8x128xf32>
    %392 = vector.broadcast %12 : vector<1x8x128xf32> to vector<8x8x128xf32>
    %393 = arith.mulf %391, %392 : vector<8x8x128xf32>
    %394 = arith.addf %388, %393 : vector<8x8x128xf32>
    %395 = vector.extract_strided_slice %389 {offsets = [32, 0], sizes = [64, 128], strides = [1, 1]} : vector<128x128xf32> to vector<64x128xf32>
    %396 = vector.shape_cast %395 : vector<64x128xf32> to vector<8x8x128xf32>
    %397 = vector.broadcast %24 : vector<1x8x128xf32> to vector<8x8x128xf32>
    %398 = arith.mulf %396, %397 : vector<8x8x128xf32>
    %399 = arith.addf %394, %398 : vector<8x8x128xf32>
    %400 = vector.extract_strided_slice %389 {offsets = [64, 0], sizes = [64, 128], strides = [1, 1]} : vector<128x128xf32> to vector<64x128xf32>
    %401 = vector.shape_cast %400 : vector<64x128xf32> to vector<8x8x128xf32>
    %402 = vector.broadcast %36 : vector<1x8x128xf32> to vector<8x8x128xf32>
    %403 = arith.mulf %401, %402 : vector<8x8x128xf32>
    %404 = arith.addf %399, %403 : vector<8x8x128xf32>
    %405 = vector.shape_cast %404 : vector<8x8x128xf32> to vector<64x128xf32>
    %406 = arith.truncf %405 : vector<64x128xf32> to vector<64x128xbf16>
    %c384 = arith.constant 384 : index
    %c0_49 = arith.constant 0 : index
    %407 = vector.load %arg5[%c384, %c0_49] : memref<448x128xbf16, #tpu.memory_space<vmem>>, vector<64x128xbf16>
    tpu.vector_store %arg5[%c384, %c0_49], %406 {strides = array<i32>} : memref<448x128xbf16, #tpu.memory_space<vmem>>, vector<64x128xbf16>,
    %c0_50 = arith.constant 0 : index
    %c0_51 = arith.constant 0 : index
    %408 = vector.load %arg5[%c0_50, %c0_51] : memref<448x128xbf16, #tpu.memory_space<vmem>>, vector<224x128xbf16>
    %c0_52 = arith.constant 0 : index
    %c0_53 = arith.constant 0 : index
    %409 = vector.load %arg3[%c0_52, %c0_53] : memref<128x128xbf16, #tpu.memory_space<vmem>>, vector<128x128xbf16>
    %cst = arith.constant dense<0.000000e+00> : vector<224x128xf32>
    %410 = tpu.matmul %408, %409, %cst {dimension_numbers = #tpu.dot_dimension_numbers<[1], [0], [0], [1], [0, 0, 1, 1], [], []>} : vector<224x128xbf16>, vector<128x128xbf16>, vector<224x128xf32> -> vector<224x128xf32>
    %c0_54 = arith.constant 0 : index
    %c0_55 = arith.constant 0 : index
    %411 = vector.load %arg4[%c0_54, %c0_55] : memref<448x128xf32, #tpu.memory_space<vmem>>, vector<224x128xf32>
    tpu.vector_store %arg4[%c0_54, %c0_55], %410 {strides = array<i32>} : memref<448x128xf32, #tpu.memory_space<vmem>>, vector<224x128xf32>,
    %c224 = arith.constant 224 : index
    %c0_56 = arith.constant 0 : index
    %412 = vector.load %arg5[%c224, %c0_56] : memref<448x128xbf16, #tpu.memory_space<vmem>>, vector<224x128xbf16>
    %c0_57 = arith.constant 0 : index
    %c0_58 = arith.constant 0 : index
    %413 = vector.load %arg3[%c0_57, %c0_58] : memref<128x128xbf16, #tpu.memory_space<vmem>>, vector<128x128xbf16>
    %cst_59 = arith.constant dense<0.000000e+00> : vector<224x128xf32>
    %414 = tpu.matmul %412, %413, %cst_59 {dimension_numbers = #tpu.dot_dimension_numbers<[1], [0], [0], [1], [0, 0, 1, 1], [], []>} : vector<224x128xbf16>, vector<128x128xbf16>, vector<224x128xf32> -> vector<224x128xf32>
    %c224_60 = arith.constant 224 : index
    %c0_61 = arith.constant 0 : index
    %415 = vector.load %arg4[%c224_60, %c0_61] : memref<448x128xf32, #tpu.memory_space<vmem>>, vector<224x128xf32>
    tpu.vector_store %arg4[%c224_60, %c0_61], %414 {strides = array<i32>} : memref<448x128xf32, #tpu.memory_space<vmem>>, vector<224x128xf32>,
    return
  }
  func.func @transform_0(%arg0: i32) -> (i32, i32, i32, i32) {
    %c0_i32 = arith.constant 0 : i32
    %c0_i32_0 = arith.constant 0 : i32
    %c0_i32_1 = arith.constant 0 : i32
    %c0_i32_2 = arith.constant 0 : i32
    %c0_i32_3 = arith.constant 0 : i32
    return %c0_i32, %c0_i32_0, %c0_i32_1, %c0_i32_2 : i32, i32, i32, i32
  }
  func.func @transform_1(%arg0: i32) -> (i32, i32) {
    %c0_i32 = arith.constant 0 : i32
    %c0_i32_0 = arith.constant 0 : i32
    %c0_i32_1 = arith.constant 0 : i32
    return %c0_i32, %c0_i32_0 : i32, i32
  }
  func.func @transform_2(%arg0: i32) -> (i32, i32) {
    %c0_i32 = arith.constant 0 : i32
    %c0_i32_0 = arith.constant 0 : i32
    %c0_i32_1 = arith.constant 0 : i32
    return %c0_i32, %c0_i32_0 : i32, i32
  }
  func.func @transform_3(%arg0: i32) -> (i32, i32) {
    %c0_i32 = arith.constant 0 : i32
    %c0_i32_0 = arith.constant 0 : i32
    return %arg0, %c0_i32 : i32, i32
  }
}

</mosaic_0001>

<llo_original>
// kernel: tpu_custom_call.1
$region0: #{tpu_custom_call.1}
  #allocation0 [shape = 'u32[]', space=smem, size = 0x4, offset = 0x4, fixed_abs, tag = 'smem constant byte address 0x4 - core index']
  #allocation1 [shape = 'u32[144,128]{1,0:T(1,128)}', space=vmem, size = 0x12000, scoped, tag = 'internal scratch']
  #allocation2 [shape = 'bf16[448,128]{1,0:T(8,128)(2,1)}', space=vmem, size = 0x1c000, scoped, tag = 'scratch operand']
  %s0 = inlined_call_operand.hbm [shape: f32[16,2,16,128], index: 0, kind: input, shape index: {}]
  %s1 = inlined_call_operand.hbm [shape: f32[16,128], index: 1, kind: input, shape index: {}]
  %s2 = inlined_call_operand.hbm [shape: bf16[128,128], index: 2, kind: input, shape index: {}]
  %s3 = inlined_call_operand.hbm [shape: f32[448,128], index: 3, kind: output, shape index: {}]
  %s4 = sld [smem:[#allocation0]]
  $region34: #{tpu_custom_call.1} parent=0
    _
  %s6 = ssub.s32 1, %s4
  %s7 = scalar_select 0, %s6, %s4
  $region1: #{tpu_custom_call.1} parent=0
    #allocation3 [shape = 'u8[262144]{0}', space=vmem, size = 0x40000, scoped, tag = 'input window, operand 0, single buffered']
    #allocation4 [shape = 's32[1]{0}', space=sflag, size = 0x4, scoped, tag = 'scoped memory for tpu_custom_call.1']
    #allocation5 [shape = 's32[1]{0}', space=sflag, size = 0x4, scoped, tag = 'scoped memory for tpu_custom_call.1']
    #allocation6 [shape = 'u8[8192]{0}', space=vmem, size = 0x2000, scoped, tag = 'input window, operand 1, single buffered']
    #allocation7 [shape = 's32[1]{0}', space=sflag, size = 0x4, scoped, tag = 'scoped memory for tpu_custom_call.1']
    #allocation8 [shape = 'u8[32768]{0}', space=vmem, size = 0x8000, scoped, tag = 'input window, operand 2, single buffered']
    #allocation9 [shape = 'u8[229376]{0}', space=vmem, size = 0x38000, scoped, tag = 'output window, operand 0, single buffered']
    %8 = vsyncpa [#allocation4], 0
    %9 = vsyncpa [#allocation7], 0
    %10 = vsyncpa [#allocation5], 0
    // Predicated region
    $region2: #{tpu_custom_call.1} parent=1 // pred_check
      _
    $region3: #{tpu_custom_call.1} parent=1 // pred_check_branch
      %12 = sbr.rel (0) target = $region5
    $region4: #{tpu_custom_call.1} parent=1 // pred_region
      %s14 = ssub.s32 8192, 8192
      %15 = vsyncadd [#allocation4], %s14
      %s16 = sshll.u32 [#allocation3], 4
      %s17 = int_to_ptr.vmem [resolvable:$true] %s16
      %22 = dma.hbm_to_vmem [thread:$0]  %s0, 8192, %s17, [#allocation4], 128, 128, 8
    $region5: #{tpu_custom_call.1} parent=1 // pred_fallthru
      _
    // Predicated region
    $region6: #{tpu_custom_call.1} parent=1 // pred_check
      _
    $region7: #{tpu_custom_call.1} parent=1 // pred_check_branch
      %24 = sbr.rel (0) target = $region9
    $region8: #{tpu_custom_call.1} parent=1 // pred_region
      %s26 = ssub.s32 256, 256
      %27 = vsyncadd [#allocation7], %s26
      %s28 = sshll.u32 [#allocation6], 4
      %s29 = int_to_ptr.vmem [resolvable:$true] %s28
      %34 = dma.hbm_to_vmem [thread:$0]  %s1, 256, %s29, [#allocation7], 128, 128, 8
    $region9: #{tpu_custom_call.1} parent=1 // pred_fallthru
      _
    // Predicated region
    $region10: #{tpu_custom_call.1} parent=1 // pred_check
      _
    $region11: #{tpu_custom_call.1} parent=1 // pred_check_branch
      %36 = sbr.rel (0) target = $region13
    $region12: #{tpu_custom_call.1} parent=1 // pred_region
      %s38 = ssub.s32 1024, 1024
      %39 = vsyncadd [#allocation7], %s38
      %s40 = sshll.u32 [#allocation8], 4
      %s41 = int_to_ptr.vmem [resolvable:$true] %s40
      %46 = dma.hbm_to_vmem [thread:$0]  %s2, 1024, %s41, [#allocation7], 64, 64, 4
    $region13: #{tpu_custom_call.1} parent=1 // pred_fallthru
      _
    // Predicated region
    $region14: #{tpu_custom_call.1} parent=1 // pred_check
      _
    $region15: #{tpu_custom_call.1} parent=1 // pred_check_branch
      %48 = sbr.rel (0) target = $region17
    $region16: #{tpu_custom_call.1} parent=1 // pred_region
      %49 = dma.done [#allocation4], 8192
    $region17: #{tpu_custom_call.1} parent=1 // pred_fallthru
      _
    // Predicated region
    $region18: #{tpu_custom_call.1} parent=1 // pred_check
      _
    $region19: #{tpu_custom_call.1} parent=1 // pred_check_branch
      %51 = sbr.rel (0) target = $region21
    $region20: #{tpu_custom_call.1} parent=1 // pred_region
      %52 = dma.done [#allocation7], 256
    $region21: #{tpu_custom_call.1} parent=1 // pred_fallthru
      _
    // Predicated region
    $region22: #{tpu_custom_call.1} parent=1 // pred_check
      _
    $region23: #{tpu_custom_call.1} parent=1 // pred_check_branch
      %54 = sbr.rel (0) target = $region25
    $region24: #{tpu_custom_call.1} parent=1 // pred_region
      %55 = dma.done [#allocation7], 1024
    $region25: #{tpu_custom_call.1} parent=1 // pred_fallthru
      _
    %s57 = smul.u32 0, 14
    %v58 = vld [vmem:[#allocation6] sm:$0x1]
    %v59 = vld [vmem:[#allocation6 + $0x1] sm:$0x1]
    %v60 = vld [vmem:[#allocation6 + $0x2] sm:$0x1]
    %v61 = vld [vmem:[#allocation6 + $0x3] sm:$0x1]
    %v62 = vld [vmem:[#allocation6 + $0x4] sm:$0x1]
    %v63 = vld [vmem:[#allocation6 + $0x5] sm:$0x1]
    %v64 = vld [vmem:[#allocation6 + $0x6] sm:$0x1]
    %v65 = vld [vmem:[#allocation6 + $0x7] sm:$0x1]
    %v66 = vld [vmem:[#allocation6 + $0x8] sm:$0x1]
    %s67 = smul.u32 %s57, 32
    %s68 = scalar_lea.vmem [#allocation3], %s67
    %v69 = vld [vmem:[%s68] sm:$0xff]
    %v70 = vld [vmem:[%s68 + $0x8] sm:$0xff]
    %v71 = vld [vmem:[%s68 + $0x10] sm:$0xff]
    %v72 = vld [vmem:[%s68 + $0x18] sm:$0xff]
    %v73 = vld [vmem:[%s68 + $0x20] sm:$0xff]
    %v74 = vld [vmem:[%s68 + $0x28] sm:$0xff]
    %v75 = vld [vmem:[%s68 + $0x30] sm:$0xff]
    %v76 = vld [vmem:[%s68 + $0x38] sm:$0xff]
    %v77 = vld [vmem:[%s68 + $0x40] sm:$0xff]
    %v78 = vld [vmem:[%s68 + $0x48] sm:$0xff]
    %v79 = vld [vmem:[%s68 + $0x50] sm:$0xff]
    %v80 = vld [vmem:[%s68 + $0x58] sm:$0xff]
    %v81 = vld [vmem:[%s68 + $0x60] sm:$0xff]
    %v82 = vld [vmem:[%s68 + $0x68] sm:$0xff]
    %v83 = vld [vmem:[%s68 + $0x70] sm:$0xff]
    %v84 = vld [vmem:[%s68 + $0x78] sm:$0xff]
    %v85 = vlaneseq
    %v86 = vshrl.u32 %v85, 7
    %v87 = vsub.s32 0, %v86
    %v88 = vrot.slane %v58, %v87
    %v89 = vmul.f32 %v69, %v88
    %v90 = vmul.f32 %v70, %v88
    %v91 = vmul.f32 %v71, %v88
    %v92 = vmul.f32 %v72, %v88
    %v93 = vmul.f32 %v73, %v88
    %v94 = vmul.f32 %v74, %v88
    %v95 = vmul.f32 %v75, %v88
    %v96 = vmul.f32 %v76, %v88
    %v97 = vlaneseq
    %v98 = vshrl.u32 %v97, 7
    %v99 = vsub.s32 0, %v98
    %v100 = vrot.slane %v61, %v99
    %v101 = vmul.f32 %v73, %v100
    %v102 = vmul.f32 %v74, %v100
    %v103 = vmul.f32 %v75, %v100
    %v104 = vmul.f32 %v76, %v100
    %v105 = vmul.f32 %v77, %v100
    %v106 = vmul.f32 %v78, %v100
    %v107 = vmul.f32 %v79, %v100
    %v108 = vmul.f32 %v80, %v100
    %v109 = vadd.f32 %v89, %v101
    %v110 = vadd.f32 %v90, %v102
    %v111 = vadd.f32 %v91, %v103
    %v112 = vadd.f32 %v92, %v104
    %v113 = vadd.f32 %v93, %v105
    %v114 = vadd.f32 %v94, %v106
    %v115 = vadd.f32 %v95, %v107
    %v116 = vadd.f32 %v96, %v108
    %v117 = vlaneseq
    %v118 = vshrl.u32 %v117, 7
    %v119 = vsub.s32 0, %v118
    %v120 = vrot.slane %v64, %v119
    %v121 = vmul.f32 %v77, %v120
    %v122 = vmul.f32 %v78, %v120
    %v123 = vmul.f32 %v79, %v120
    %v124 = vmul.f32 %v80, %v120
    %v125 = vmul.f32 %v81, %v120
    %v126 = vmul.f32 %v82, %v120
    %v127 = vmul.f32 %v83, %v120
    %v128 = vmul.f32 %v84, %v120
    %v129 = vadd.f32 %v109, %v121
    %v130 = vadd.f32 %v110, %v122
    %v131 = vadd.f32 %v111, %v123
    %v132 = vadd.f32 %v112, %v124
    %v133 = vadd.f32 %v113, %v125
    %v134 = vadd.f32 %v114, %v126
    %v135 = vadd.f32 %v115, %v127
    %v136 = vadd.f32 %v116, %v128
    %v137 = vrot.slane %v69, 1
    %v138 = vrot.slane %v70, 1
    %v139 = vrot.slane %v71, 1
    %v140 = vrot.slane %v72, 1
    %v141 = vrot.slane %v73, 1
    %v142 = vrot.slane %v74, 1
    %v143 = vrot.slane %v75, 1
    %v144 = vrot.slane %v76, 1
    %v145 = vrot.slane %v77, 1
    %v146 = vrot.slane %v78, 1
    %v147 = vrot.slane %v79, 1
    %v148 = vrot.slane %v80, 1
    %v149 = vrot.slane %v81, 1
    %v150 = vrot.slane %v82, 1
    %v151 = vrot.slane %v83, 1
    %v152 = vrot.slane %v84, 1
    %v153 = vlaneseq
    %v154 = vshrl.u32 %v153, 7
    %vm155 = vcmp.lt.s32.totalorder %v154, 7
    %v156 = vsel %vm155, %v151, %v152
    %v157 = vsel %vm155, %v150, %v151
    %v158 = vsel %vm155, %v149, %v150
    %v159 = vsel %vm155, %v148, %v149
    %v160 = vsel %vm155, %v147, %v148
    %v161 = vsel %vm155, %v146, %v147
    %v162 = vsel %vm155, %v145, %v146
    %v163 = vsel %vm155, %v144, %v145
    %v164 = vsel %vm155, %v143, %v144
    %v165 = vsel %vm155, %v142, %v143
    %v166 = vsel %vm155, %v141, %v142
    %v167 = vsel %vm155, %v140, %v141
    %v168 = vsel %vm155, %v139, %v140
    %v169 = vsel %vm155, %v138, %v139
    %v170 = vsel %vm155, %v137, %v138
    %v171 = vsel %vm155, %v152, %v137
    %v172 = vlaneseq
    %v173 = vshrl.u32 %v172, 7
    %v174 = vsub.s32 0, %v173
    %v175 = vrot.slane %v59, %v174
    %v176 = vmul.f32 %v170, %v175
    %v177 = vmul.f32 %v169, %v175
    %v178 = vmul.f32 %v168, %v175
    %v179 = vmul.f32 %v167, %v175
    %v180 = vmul.f32 %v166, %v175
    %v181 = vmul.f32 %v165, %v175
    %v182 = vmul.f32 %v164, %v175
    %v183 = vmul.f32 %v163, %v175
    %v184 = vadd.f32 %v129, %v176
    %v185 = vadd.f32 %v130, %v177
    %v186 = vadd.f32 %v131, %v178
    %v187 = vadd.f32 %v132, %v179
    %v188 = vadd.f32 %v133, %v180
    %v189 = vadd.f32 %v134, %v181
    %v190 = vadd.f32 %v135, %v182
    %v191 = vadd.f32 %v136, %v183
    %v192 = vlaneseq
    %v193 = vshrl.u32 %v192, 7
    %v194 = vsub.s32 0, %v193
    %v195 = vrot.slane %v62, %v194
    %v196 = vmul.f32 %v166, %v195
    %v197 = vmul.f32 %v165, %v195
    %v198 = vmul.f32 %v164, %v195
    %v199 = vmul.f32 %v163, %v195
    %v200 = vmul.f32 %v162, %v195
    %v201 = vmul.f32 %v161, %v195
    %v202 = vmul.f32 %v160, %v195
    %v203 = vmul.f32 %v159, %v195
    %v204 = vadd.f32 %v184, %v196
    %v205 = vadd.f32 %v185, %v197
    %v206 = vadd.f32 %v186, %v198
    %v207 = vadd.f32 %v187, %v199
    %v208 = vadd.f32 %v188, %v200
    %v209 = vadd.f32 %v189, %v201
    %v210 = vadd.f32 %v190, %v202
    %v211 = vadd.f32 %v191, %v203
    %v212 = vlaneseq
    %v213 = vshrl.u32 %v212, 7
    %v214 = vsub.s32 0, %v213
    %v215 = vrot.slane %v65, %v214
    %v216 = vmul.f32 %v162, %v215
    %v217 = vmul.f32 %v161, %v215
    %v218 = vmul.f32 %v160, %v215
    %v219 = vmul.f32 %v159, %v215
    %v220 = vmul.f32 %v158, %v215
    %v221 = vmul.f32 %v157, %v215
    %v222 = vmul.f32 %v156, %v215
    %v223 = vmul.f32 %v171, %v215
    %v224 = vadd.f32 %v204, %v216
    %v225 = vadd.f32 %v205, %v217
    %v226 = vadd.f32 %v206, %v218
    %v227 = vadd.f32 %v207, %v219
    %v228 = vadd.f32 %v208, %v220
    %v229 = vadd.f32 %v209, %v221
    %v230 = vadd.f32 %v210, %v222
    %v231 = vadd.f32 %v211, %v223
    %v232 = vrot.slane %v69, 2
    %v233 = vrot.slane %v70, 2
    %v234 = vrot.slane %v71, 2
    %v235 = vrot.slane %v72, 2
    %v236 = vrot.slane %v73, 2
    %v237 = vrot.slane %v74, 2
    %v238 = vrot.slane %v75, 2
    %v239 = vrot.slane %v76, 2
    %v240 = vrot.slane %v77, 2
    %v241 = vrot.slane %v78, 2
    %v242 = vrot.slane %v79, 2
    %v243 = vrot.slane %v80, 2
    %v244 = vrot.slane %v81, 2
    %v245 = vrot.slane %v82, 2
    %v246 = vrot.slane %v83, 2
    %v247 = vrot.slane %v84, 2
    %vm248 = vcmp.lt.s32.totalorder %v154, 6
    %v249 = vsel %vm248, %v246, %v247
    %v250 = vsel %vm248, %v245, %v246
    %v251 = vsel %vm248, %v244, %v245
    %v252 = vsel %vm248, %v243, %v244
    %v253 = vsel %vm248, %v242, %v243
    %v254 = vsel %vm248, %v241, %v242
    %v255 = vsel %vm248, %v240, %v241
    %v256 = vsel %vm248, %v239, %v240
    %v257 = vsel %vm248, %v238, %v239
    %v258 = vsel %vm248, %v237, %v238
    %v259 = vsel %vm248, %v236, %v237
    %v260 = vsel %vm248, %v235, %v236
    %v261 = vsel %vm248, %v234, %v235
    %v262 = vsel %vm248, %v233, %v234
    %v263 = vsel %vm248, %v232, %v233
    %v264 = vsel %vm248, %v247, %v232
    %v265 = vlaneseq
    %v266 = vshrl.u32 %v265, 7
    %v267 = vsub.s32 0, %v266
    %v268 = vrot.slane %v60, %v267
    %v269 = vmul.f32 %v263, %v268
    %v270 = vmul.f32 %v262, %v268
    %v271 = vmul.f32 %v261, %v268
    %v272 = vmul.f32 %v260, %v268
    %v273 = vmul.f32 %v259, %v268
    %v274 = vmul.f32 %v258, %v268
    %v275 = vmul.f32 %v257, %v268
    %v276 = vmul.f32 %v256, %v268
    %v277 = vadd.f32 %v224, %v269
    %v278 = vadd.f32 %v225, %v270
    %v279 = vadd.f32 %v226, %v271
    %v280 = vadd.f32 %v227, %v272
    %v281 = vadd.f32 %v228, %v273
    %v282 = vadd.f32 %v229, %v274
    %v283 = vadd.f32 %v230, %v275
    %v284 = vadd.f32 %v231, %v276
    %v285 = vlaneseq
    %v286 = vshrl.u32 %v285, 7
    %v287 = vsub.s32 0, %v286
    %v288 = vrot.slane %v63, %v287
    %v289 = vmul.f32 %v259, %v288
    %v290 = vmul.f32 %v258, %v288
    %v291 = vmul.f32 %v257, %v288
    %v292 = vmul.f32 %v256, %v288
    %v293 = vmul.f32 %v255, %v288
    %v294 = vmul.f32 %v254, %v288
    %v295 = vmul.f32 %v253, %v288
    %v296 = vmul.f32 %v252, %v288
    %v297 = vadd.f32 %v277, %v289
    %v298 = vadd.f32 %v278, %v290
    %v299 = vadd.f32 %v279, %v291
    %v300 = vadd.f32 %v280, %v292
    %v301 = vadd.f32 %v281, %v293
    %v302 = vadd.f32 %v282, %v294
    %v303 = vadd.f32 %v283, %v295
    %v304 = vadd.f32 %v284, %v296
    %v305 = vlaneseq
    %v306 = vshrl.u32 %v305, 7
    %v307 = vsub.s32 0, %v306
    %v308 = vrot.slane %v66, %v307
    %v309 = vmul.f32 %v255, %v308
    %v310 = vmul.f32 %v254, %v308
    %v311 = vmul.f32 %v253, %v308
    %v312 = vmul.f32 %v252, %v308
    %v313 = vmul.f32 %v251, %v308
    %v314 = vmul.f32 %v250, %v308
    %v315 = vmul.f32 %v249, %v308
    %v316 = vmul.f32 %v264, %v308
    %v317 = vadd.f32 %v297, %v309
    %v318 = vadd.f32 %v298, %v310
    %v319 = vadd.f32 %v299, %v311
    %v320 = vadd.f32 %v300, %v312
    %v321 = vadd.f32 %v301, %v313
    %v322 = vadd.f32 %v302, %v314
    %v323 = vadd.f32 %v303, %v315
    %v324 = vadd.f32 %v304, %v316
    %v325 = vpack.c.bf16 %v318, %v317
    %v326 = vpack.c.bf16 %v320, %v319
    %v327 = vpack.c.bf16 %v322, %v321
    %v328 = vpack.c.bf16 %v324, %v323
    %v333 = vunpack.c.l.b16 %v325
    %v334 = vunpack.c.h.b16 %v325
    %v335 = vunpack.c.l.b16 %v326
    %v336 = vunpack.c.h.b16 %v326
    %v337 = vunpack.c.l.b16 %v327
    %v338 = vunpack.c.h.b16 %v327
    %v339 = vunpack.c.l.b16 %v328
    %v340 = vunpack.c.h.b16 %v328
    %v341 = vpack.c.b16 %v333, %v333
    %v342 = vpack.c.b16 %v334, %v334
    %v343 = vpack.c.b16 %v335, %v335
    %v344 = vpack.c.b16 %v336, %v336
    %v345 = vpack.c.b16 %v337, %v337
    %v346 = vpack.c.b16 %v338, %v338
    %v347 = vpack.c.b16 %v339, %v339
    %v348 = vpack.c.b16 %v340, %v340
    %357 = vst [vmem:[#allocation2] sm:$0xf] %v341
    %358 = vst [vmem:[#allocation2 + $0x4] sm:$0xf] %v342
    %359 = vst [vmem:[#allocation2 + $0x8] sm:$0xf] %v343
    %360 = vst [vmem:[#allocation2 + $0xc] sm:$0xf] %v344
    %361 = vst [vmem:[#allocation2 + $0x10] sm:$0xf] %v345
    %362 = vst [vmem:[#allocation2 + $0x14] sm:$0xf] %v346
    %363 = vst [vmem:[#allocation2 + $0x18] sm:$0xf] %v347
    %364 = vst [vmem:[#allocation2 + $0x1c] sm:$0xf] %v348
    %s365 = sadd.s32 %s57, 2
    %s366 = smul.u32 %s365, 32
    %s367 = scalar_lea.vmem [#allocation3], %s366
    %v368 = vld [vmem:[%s367] sm:$0xff]
    %v369 = vld [vmem:[%s367 + $0x8] sm:$0xff]
    %v370 = vld [vmem:[%s367 + $0x10] sm:$0xff]
    %v371 = vld [vmem:[%s367 + $0x18] sm:$0xff]
    %v372 = vld [vmem:[%s367 + $0x20] sm:$0xff]
    %v373 = vld [vmem:[%s367 + $0x28] sm:$0xff]
    %v374 = vld [vmem:[%s367 + $0x30] sm:$0xff]
    %v375 = vld [vmem:[%s367 + $0x38] sm:$0xff]
    %v376 = vld [vmem:[%s367 + $0x40] sm:$0xff]
    %v377 = vld [vmem:[%s367 + $0x48] sm:$0xff]
    %v378 = vld [vmem:[%s367 + $0x50] sm:$0xff]
    %v379 = vld [vmem:[%s367 + $0x58] sm:$0xff]
    %v380 = vld [vmem:[%s367 + $0x60] sm:$0xff]
    %v381 = vld [vmem:[%s367 + $0x68] sm:$0xff]
    %v382 = vld [vmem:[%s367 + $0x70] sm:$0xff]
    %v383 = vld [vmem:[%s367 + $0x78] sm:$0xff]
    %v384 = vmul.f32 %v368, %v88
    %v385 = vmul.f32 %v369, %v88
    %v386 = vmul.f32 %v370, %v88
    %v387 = vmul.f32 %v371, %v88
    %v388 = vmul.f32 %v372, %v88
    %v389 = vmul.f32 %v373, %v88
    %v390 = vmul.f32 %v374, %v88
    %v391 = vmul.f32 %v375, %v88
    %v392 = vmul.f32 %v372, %v100
    %v393 = vmul.f32 %v373, %v100
    %v394 = vmul.f32 %v374, %v100
    %v395 = vmul.f32 %v375, %v100
    %v396 = vmul.f32 %v376, %v100
    %v397 = vmul.f32 %v377, %v100
    %v398 = vmul.f32 %v378, %v100
    %v399 = vmul.f32 %v379, %v100
    %v400 = vadd.f32 %v384, %v392
    %v401 = vadd.f32 %v385, %v393
    %v402 = vadd.f32 %v386, %v394
    %v403 = vadd.f32 %v387, %v395
    %v404 = vadd.f32 %v388, %v396
    %v405 = vadd.f32 %v389, %v397
    %v406 = vadd.f32 %v390, %v398
    %v407 = vadd.f32 %v391, %v399
    %v408 = vmul.f32 %v376, %v120
    %v409 = vmul.f32 %v377, %v120
    %v410 = vmul.f32 %v378, %v120
    %v411 = vmul.f32 %v379, %v120
    %v412 = vmul.f32 %v380, %v120
    %v413 = vmul.f32 %v381, %v120
    %v414 = vmul.f32 %v382, %v120
    %v415 = vmul.f32 %v383, %v120
    %v416 = vadd.f32 %v400, %v408
    %v417 = vadd.f32 %v401, %v409
    %v418 = vadd.f32 %v402, %v410
    %v419 = vadd.f32 %v403, %v411
    %v420 = vadd.f32 %v404, %v412
    %v421 = vadd.f32 %v405, %v413
    %v422 = vadd.f32 %v406, %v414
    %v423 = vadd.f32 %v407, %v415
    %v424 = vrot.slane %v368, 1
    %v425 = vrot.slane %v369, 1
    %v426 = vrot.slane %v370, 1
    %v427 = vrot.slane %v371, 1
    %v428 = vrot.slane %v372, 1
    %v429 = vrot.slane %v373, 1
    %v430 = vrot.slane %v374, 1
    %v431 = vrot.slane %v375, 1
    %v432 = vrot.slane %v376, 1
    %v433 = vrot.slane %v377, 1
    %v434 = vrot.slane %v378, 1
    %v435 = vrot.slane %v379, 1
    %v436 = vrot.slane %v380, 1
    %v437 = vrot.slane %v381, 1
    %v438 = vrot.slane %v382, 1
    %v439 = vrot.slane %v383, 1
    %v440 = vsel %vm155, %v438, %v439
    %v441 = vsel %vm155, %v437, %v438
    %v442 = vsel %vm155, %v436, %v437
    %v443 = vsel %vm155, %v435, %v436
    %v444 = vsel %vm155, %v434, %v435
    %v445 = vsel %vm155, %v433, %v434
    %v446 = vsel %vm155, %v432, %v433
    %v447 = vsel %vm155, %v431, %v432
    %v448 = vsel %vm155, %v430, %v431
    %v449 = vsel %vm155, %v429, %v430
    %v450 = vsel %vm155, %v428, %v429
    %v451 = vsel %vm155, %v427, %v428
    %v452 = vsel %vm155, %v426, %v427
    %v453 = vsel %vm155, %v425, %v426
    %v454 = vsel %vm155, %v424, %v425
    %v455 = vsel %vm155, %v439, %v424
    %v456 = vmul.f32 %v454, %v175
    %v457 = vmul.f32 %v453, %v175
    %v458 = vmul.f32 %v452, %v175
    %v459 = vmul.f32 %v451, %v175
    %v460 = vmul.f32 %v450, %v175
    %v461 = vmul.f32 %v449, %v175
    %v462 = vmul.f32 %v448, %v175
    %v463 = vmul.f32 %v447, %v175
    %v464 = vadd.f32 %v416, %v456
    %v465 = vadd.f32 %v417, %v457
    %v466 = vadd.f32 %v418, %v458
    %v467 = vadd.f32 %v419, %v459
    %v468 = vadd.f32 %v420, %v460
    %v469 = vadd.f32 %v421, %v461
    %v470 = vadd.f32 %v422, %v462
    %v471 = vadd.f32 %v423, %v463
    %v472 = vmul.f32 %v450, %v195
    %v473 = vmul.f32 %v449, %v195
    %v474 = vmul.f32 %v448, %v195
    %v475 = vmul.f32 %v447, %v195
    %v476 = vmul.f32 %v446, %v195
    %v477 = vmul.f32 %v445, %v195
    %v478 = vmul.f32 %v444, %v195
    %v479 = vmul.f32 %v443, %v195
    %v480 = vadd.f32 %v464, %v472
    %v481 = vadd.f32 %v465, %v473
    %v482 = vadd.f32 %v466, %v474
    %v483 = vadd.f32 %v467, %v475
    %v484 = vadd.f32 %v468, %v476
    %v485 = vadd.f32 %v469, %v477
    %v486 = vadd.f32 %v470, %v478
    %v487 = vadd.f32 %v471, %v479
    %v488 = vmul.f32 %v446, %v215
    %v489 = vmul.f32 %v445, %v215
    %v490 = vmul.f32 %v444, %v215
    %v491 = vmul.f32 %v443, %v215
    %v492 = vmul.f32 %v442, %v215
    %v493 = vmul.f32 %v441, %v215
    %v494 = vmul.f32 %v440, %v215
    %v495 = vmul.f32 %v455, %v215
    %v496 = vadd.f32 %v480, %v488
    %v497 = vadd.f32 %v481, %v489
    %v498 = vadd.f32 %v482, %v490
    %v499 = vadd.f32 %v483, %v491
    %v500 = vadd.f32 %v484, %v492
    %v501 = vadd.f32 %v485, %v493
    %v502 = vadd.f32 %v486, %v494
    %v503 = vadd.f32 %v487, %v495
    %v504 = vrot.slane %v368, 2
    %v505 = vrot.slane %v369, 2
    %v506 = vrot.slane %v370, 2
    %v507 = vrot.slane %v371, 2
    %v508 = vrot.slane %v372, 2
    %v509 = vrot.slane %v373, 2
    %v510 = vrot.slane %v374, 2
    %v511 = vrot.slane %v375, 2
    %v512 = vrot.slane %v376, 2
    %v513 = vrot.slane %v377, 2
    %v514 = vrot.slane %v378, 2
    %v515 = vrot.slane %v379, 2
    %v516 = vrot.slane %v380, 2
    %v517 = vrot.slane %v381, 2
    %v518 = vrot.slane %v382, 2
    %v519 = vrot.slane %v383, 2
    %v520 = vsel %vm248, %v518, %v519
    %v521 = vsel %vm248, %v517, %v518
    %v522 = vsel %vm248, %v516, %v517
    %v523 = vsel %vm248, %v515, %v516
    %v524 = vsel %vm248, %v514, %v515
    %v525 = vsel %vm248, %v513, %v514
    %v526 = vsel %vm248, %v512, %v513
    %v527 = vsel %vm248, %v511, %v512
    %v528 = vsel %vm248, %v510, %v511
    %v529 = vsel %vm248, %v509, %v510
    %v530 = vsel %vm248, %v508, %v509
    %v531 = vsel %vm248, %v507, %v508
    %v532 = vsel %vm248, %v506, %v507
    %v533 = vsel %vm248, %v505, %v506
    %v534 = vsel %vm248, %v504, %v505
    %v535 = vsel %vm248, %v519, %v504
    %v536 = vmul.f32 %v534, %v268
    %v537 = vmul.f32 %v533, %v268
    %v538 = vmul.f32 %v532, %v268
    %v539 = vmul.f32 %v531, %v268
    %v540 = vmul.f32 %v530, %v268
    %v541 = vmul.f32 %v529, %v268
    %v542 = vmul.f32 %v528, %v268
    %v543 = vmul.f32 %v527, %v268
    %v544 = vadd.f32 %v496, %v536
    %v545 = vadd.f32 %v497, %v537
    %v546 = vadd.f32 %v498, %v538
    %v547 = vadd.f32 %v499, %v539
    %v548 = vadd.f32 %v500, %v540
    %v549 = vadd.f32 %v501, %v541
    %v550 = vadd.f32 %v502, %v542
    %v551 = vadd.f32 %v503, %v543
    %v552 = vmul.f32 %v530, %v288
    %v553 = vmul.f32 %v529, %v288
    %v554 = vmul.f32 %v528, %v288
    %v555 = vmul.f32 %v527, %v288
    %v556 = vmul.f32 %v526, %v288
    %v557 = vmul.f32 %v525, %v288
    %v558 = vmul.f32 %v524, %v288
    %v559 = vmul.f32 %v523, %v288
    %v560 = vadd.f32 %v544, %v552
    %v561 = vadd.f32 %v545, %v553
    %v562 = vadd.f32 %v546, %v554
    %v563 = vadd.f32 %v547, %v555
    %v564 = vadd.f32 %v548, %v556
    %v565 = vadd.f32 %v549, %v557
    %v566 = vadd.f32 %v550, %v558
    %v567 = vadd.f32 %v551, %v559
    %v568 = vmul.f32 %v526, %v308
    %v569 = vmul.f32 %v525, %v308
    %v570 = vmul.f32 %v524, %v308
    %v571 = vmul.f32 %v523, %v308
    %v572 = vmul.f32 %v522, %v308
    %v573 = vmul.f32 %v521, %v308
    %v574 = vmul.f32 %v520, %v308
    %v575 = vmul.f32 %v535, %v308
    %v576 = vadd.f32 %v560, %v568
    %v577 = vadd.f32 %v561, %v569
    %v578 = vadd.f32 %v562, %v570
    %v579 = vadd.f32 %v563, %v571
    %v580 = vadd.f32 %v564, %v572
    %v581 = vadd.f32 %v565, %v573
    %v582 = vadd.f32 %v566, %v574
    %v583 = vadd.f32 %v567, %v575
    %v584 = vpack.c.bf16 %v577, %v576
    %v585 = vpack.c.bf16 %v579, %v578
    %v586 = vpack.c.bf16 %v581, %v580
    %v587 = vpack.c.bf16 %v583, %v582
    %v592 = vunpack.c.l.b16 %v584
    %v593 = vunpack.c.h.b16 %v584
    %v594 = vunpack.c.l.b16 %v585
    %v595 = vunpack.c.h.b16 %v585
    %v596 = vunpack.c.l.b16 %v586
    %v597 = vunpack.c.h.b16 %v586
    %v598 = vunpack.c.l.b16 %v587
    %v599 = vunpack.c.h.b16 %v587
    %v600 = vpack.c.b16 %v592, %v592
    %v601 = vpack.c.b16 %v593, %v593
    %v602 = vpack.c.b16 %v594, %v594
    %v603 = vpack.c.b16 %v595, %v595
    %v604 = vpack.c.b16 %v596, %v596
    %v605 = vpack.c.b16 %v597, %v597
    %v606 = vpack.c.b16 %v598, %v598
    %v607 = vpack.c.b16 %v599, %v599
    %616 = vst [vmem:[#allocation2 + $0x20] sm:$0xf] %v600
    %617 = vst [vmem:[#allocation2 + $0x24] sm:$0xf] %v601
    %618 = vst [vmem:[#allocation2 + $0x28] sm:$0xf] %v602
    %619 = vst [vmem:[#allocation2 + $0x2c] sm:$0xf] %v603
    %620 = vst [vmem:[#allocation2 + $0x30] sm:$0xf] %v604
    %621 = vst [vmem:[#allocation2 + $0x34] sm:$0xf] %v605
    %622 = vst [vmem:[#allocation2 + $0x38] sm:$0xf] %v606
    %623 = vst [vmem:[#allocation2 + $0x3c] sm:$0xf] %v607
    %s624 = sadd.s32 %s57, 4
    %s625 = smul.u32 %s624, 32
    %s626 = scalar_lea.vmem [#allocation3], %s625
    %v627 = vld [vmem:[%s626] sm:$0xff]
    %v628 = vld [vmem:[%s626 + $0x8] sm:$0xff]
    %v629 = vld [vmem:[%s626 + $0x10] sm:$0xff]
    %v630 = vld [vmem:[%s626 + $0x18] sm:$0xff]
    %v631 = vld [vmem:[%s626 + $0x20] sm:$0xff]
    %v632 = vld [vmem:[%s626 + $0x28] sm:$0xff]
    %v633 = vld [vmem:[%s626 + $0x30] sm:$0xff]
    %v634 = vld [vmem:[%s626 + $0x38] sm:$0xff]
    %v635 = vld [vmem:[%s626 + $0x40] sm:$0xff]
    %v636 = vld [vmem:[%s626 + $0x48] sm:$0xff]
    %v637 = vld [vmem:[%s626 + $0x50] sm:$0xff]
    %v638 = vld [vmem:[%s626 + $0x58] sm:$0xff]
    %v639 = vld [vmem:[%s626 + $0x60] sm:$0xff]
    %v640 = vld [vmem:[%s626 + $0x68] sm:$0xff]
    %v641 = vld [vmem:[%s626 + $0x70] sm:$0xff]
    %v642 = vld [vmem:[%s626 + $0x78] sm:$0xff]
    %v643 = vmul.f32 %v627, %v88
    %v644 = vmul.f32 %v628, %v88
    %v645 = vmul.f32 %v629, %v88
    %v646 = vmul.f32 %v630, %v88
    %v647 = vmul.f32 %v631, %v88
    %v648 = vmul.f32 %v632, %v88
    %v649 = vmul.f32 %v633, %v88
    %v650 = vmul.f32 %v634, %v88
    %v651 = vmul.f32 %v631, %v100
    %v652 = vmul.f32 %v632, %v100
    %v653 = vmul.f32 %v633, %v100
    %v654 = vmul.f32 %v634, %v100
    %v655 = vmul.f32 %v635, %v100
    %v656 = vmul.f32 %v636, %v100
    %v657 = vmul.f32 %v637, %v100
    %v658 = vmul.f32 %v638, %v100
    %v659 = vadd.f32 %v643, %v651
    %v660 = vadd.f32 %v644, %v652
    %v661 = vadd.f32 %v645, %v653
    %v662 = vadd.f32 %v646, %v654
    %v663 = vadd.f32 %v647, %v655
    %v664 = vadd.f32 %v648, %v656
    %v665 = vadd.f32 %v649, %v657
    %v666 = vadd.f32 %v650, %v658
    %v667 = vmul.f32 %v635, %v120
    %v668 = vmul.f32 %v636, %v120
    %v669 = vmul.f32 %v637, %v120
    %v670 = vmul.f32 %v638, %v120
    %v671 = vmul.f32 %v639, %v120
    %v672 = vmul.f32 %v640, %v120
    %v673 = vmul.f32 %v641, %v120
    %v674 = vmul.f32 %v642, %v120
    %v675 = vadd.f32 %v659, %v667
    %v676 = vadd.f32 %v660, %v668
    %v677 = vadd.f32 %v661, %v669
    %v678 = vadd.f32 %v662, %v670
    %v679 = vadd.f32 %v663, %v671
    %v680 = vadd.f32 %v664, %v672
    %v681 = vadd.f32 %v665, %v673
    %v682 = vadd.f32 %v666, %v674
    %v683 = vrot.slane %v627, 1
    %v684 = vrot.slane %v628, 1
    %v685 = vrot.slane %v629, 1
    %v686 = vrot.slane %v630, 1
    %v687 = vrot.slane %v631, 1
    %v688 = vrot.slane %v632, 1
    %v689 = vrot.slane %v633, 1
    %v690 = vrot.slane %v634, 1
    %v691 = vrot.slane %v635, 1
    %v692 = vrot.slane %v636, 1
    %v693 = vrot.slane %v637, 1
    %v694 = vrot.slane %v638, 1
    %v695 = vrot.slane %v639, 1
    %v696 = vrot.slane %v640, 1
    %v697 = vrot.slane %v641, 1
    %v698 = vrot.slane %v642, 1
    %v699 = vsel %vm155, %v697, %v698
    %v700 = vsel %vm155, %v696, %v697
    %v701 = vsel %vm155, %v695, %v696
    %v702 = vsel %vm155, %v694, %v695
    %v703 = vsel %vm155, %v693, %v694
    %v704 = vsel %vm155, %v692, %v693
    %v705 = vsel %vm155, %v691, %v692
    %v706 = vsel %vm155, %v690, %v691
    %v707 = vsel %vm155, %v689, %v690
    %v708 = vsel %vm155, %v688, %v689
    %v709 = vsel %vm155, %v687, %v688
    %v710 = vsel %vm155, %v686, %v687
    %v711 = vsel %vm155, %v685, %v686
    %v712 = vsel %vm155, %v684, %v685
    %v713 = vsel %vm155, %v683, %v684
    %v714 = vsel %vm155, %v698, %v683
    %v715 = vmul.f32 %v713, %v175
    %v716 = vmul.f32 %v712, %v175
    %v717 = vmul.f32 %v711, %v175
    %v718 = vmul.f32 %v710, %v175
    %v719 = vmul.f32 %v709, %v175
    %v720 = vmul.f32 %v708, %v175
    %v721 = vmul.f32 %v707, %v175
    %v722 = vmul.f32 %v706, %v175
    %v723 = vadd.f32 %v675, %v715
    %v724 = vadd.f32 %v676, %v716
    %v725 = vadd.f32 %v677, %v717
    %v726 = vadd.f32 %v678, %v718
    %v727 = vadd.f32 %v679, %v719
    %v728 = vadd.f32 %v680, %v720
    %v729 = vadd.f32 %v681, %v721
    %v730 = vadd.f32 %v682, %v722
    %v731 = vmul.f32 %v709, %v195
    %v732 = vmul.f32 %v708, %v195
    %v733 = vmul.f32 %v707, %v195
    %v734 = vmul.f32 %v706, %v195
    %v735 = vmul.f32 %v705, %v195
    %v736 = vmul.f32 %v704, %v195
    %v737 = vmul.f32 %v703, %v195
    %v738 = vmul.f32 %v702, %v195
    %v739 = vadd.f32 %v723, %v731
    %v740 = vadd.f32 %v724, %v732
    %v741 = vadd.f32 %v725, %v733
    %v742 = vadd.f32 %v726, %v734
    %v743 = vadd.f32 %v727, %v735
    %v744 = vadd.f32 %v728, %v736
    %v745 = vadd.f32 %v729, %v737
    %v746 = vadd.f32 %v730, %v738
    %v747 = vmul.f32 %v705, %v215
    %v748 = vmul.f32 %v704, %v215
    %v749 = vmul.f32 %v703, %v215
    %v750 = vmul.f32 %v702, %v215
    %v751 = vmul.f32 %v701, %v215
    %v752 = vmul.f32 %v700, %v215
    %v753 = vmul.f32 %v699, %v215
    %v754 = vmul.f32 %v714, %v215
    %v755 = vadd.f32 %v739, %v747
    %v756 = vadd.f32 %v740, %v748
    %v757 = vadd.f32 %v741, %v749
    %v758 = vadd.f32 %v742, %v750
    %v759 = vadd.f32 %v743, %v751
    %v760 = vadd.f32 %v744, %v752
    %v761 = vadd.f32 %v745, %v753
    %v762 = vadd.f32 %v746, %v754
    %v763 = vrot.slane %v627, 2
    %v764 = vrot.slane %v628, 2
    %v765 = vrot.slane %v629, 2
    %v766 = vrot.slane %v630, 2
    %v767 = vrot.slane %v631, 2
    %v768 = vrot.slane %v632, 2
    %v769 = vrot.slane %v633, 2
    %v770 = vrot.slane %v634, 2
    %v771 = vrot.slane %v635, 2
    %v772 = vrot.slane %v636, 2
    %v773 = vrot.slane %v637, 2
    %v774 = vrot.slane %v638, 2
    %v775 = vrot.slane %v639, 2
    %v776 = vrot.slane %v640, 2
    %v777 = vrot.slane %v641, 2
    %v778 = vrot.slane %v642, 2
    %v779 = vsel %vm248, %v777, %v778
    %v780 = vsel %vm248, %v776, %v777
    %v781 = vsel %vm248, %v775, %v776
    %v782 = vsel %vm248, %v774, %v775
    %v783 = vsel %vm248, %v773, %v774
    %v784 = vsel %vm248, %v772, %v773
    %v785 = vsel %vm248, %v771, %v772
    %v786 = vsel %vm248, %v770, %v771
    %v787 = vsel %vm248, %v769, %v770
    %v788 = vsel %vm248, %v768, %v769
    %v789 = vsel %vm248, %v767, %v768
    %v790 = vsel %vm248, %v766, %v767
    %v791 = vsel %vm248, %v765, %v766
    %v792 = vsel %vm248, %v764, %v765
    %v793 = vsel %vm248, %v763, %v764
    %v794 = vsel %vm248, %v778, %v763
    %v795 = vmul.f32 %v793, %v268
    %v796 = vmul.f32 %v792, %v268
    %v797 = vmul.f32 %v791, %v268
    %v798 = vmul.f32 %v790, %v268
    %v799 = vmul.f32 %v789, %v268
    %v800 = vmul.f32 %v788, %v268
    %v801 = vmul.f32 %v787, %v268
    %v802 = vmul.f32 %v786, %v268
    %v803 = vadd.f32 %v755, %v795
    %v804 = vadd.f32 %v756, %v796
    %v805 = vadd.f32 %v757, %v797
    %v806 = vadd.f32 %v758, %v798
    %v807 = vadd.f32 %v759, %v799
    %v808 = vadd.f32 %v760, %v800
    %v809 = vadd.f32 %v761, %v801
    %v810 = vadd.f32 %v762, %v802
    %v811 = vmul.f32 %v789, %v288
    %v812 = vmul.f32 %v788, %v288
    %v813 = vmul.f32 %v787, %v288
    %v814 = vmul.f32 %v786, %v288
    %v815 = vmul.f32 %v785, %v288
    %v816 = vmul.f32 %v784, %v288
    %v817 = vmul.f32 %v783, %v288
    %v818 = vmul.f32 %v782, %v288
    %v819 = vadd.f32 %v803, %v811
    %v820 = vadd.f32 %v804, %v812
    %v821 = vadd.f32 %v805, %v813
    %v822 = vadd.f32 %v806, %v814
    %v823 = vadd.f32 %v807, %v815
    %v824 = vadd.f32 %v808, %v816
    %v825 = vadd.f32 %v809, %v817
    %v826 = vadd.f32 %v810, %v818
    %v827 = vmul.f32 %v785, %v308
    %v828 = vmul.f32 %v784, %v308
    %v829 = vmul.f32 %v783, %v308
    %v830 = vmul.f32 %v782, %v308
    %v831 = vmul.f32 %v781, %v308
    %v832 = vmul.f32 %v780, %v308
    %v833 = vmul.f32 %v779, %v308
    %v834 = vmul.f32 %v794, %v308
    %v835 = vadd.f32 %v819, %v827
    %v836 = vadd.f32 %v820, %v828
    %v837 = vadd.f32 %v821, %v829
    %v838 = vadd.f32 %v822, %v830
    %v839 = vadd.f32 %v823, %v831
    %v840 = vadd.f32 %v824, %v832
    %v841 = vadd.f32 %v825, %v833
    %v842 = vadd.f32 %v826, %v834
    %v843 = vpack.c.bf16 %v836, %v835
    %v844 = vpack.c.bf16 %v838, %v837
    %v845 = vpack.c.bf16 %v840, %v839
    %v846 = vpack.c.bf16 %v842, %v841
    %v851 = vunpack.c.l.b16 %v843
    %v852 = vunpack.c.h.b16 %v843
    %v853 = vunpack.c.l.b16 %v844
    %v854 = vunpack.c.h.b16 %v844
    %v855 = vunpack.c.l.b16 %v845
    %v856 = vunpack.c.h.b16 %v845
    %v857 = vunpack.c.l.b16 %v846
    %v858 = vunpack.c.h.b16 %v846
    %v859 = vpack.c.b16 %v851, %v851
    %v860 = vpack.c.b16 %v852, %v852
    %v861 = vpack.c.b16 %v853, %v853
    %v862 = vpack.c.b16 %v854, %v854
    %v863 = vpack.c.b16 %v855, %v855
    %v864 = vpack.c.b16 %v856, %v856
    %v865 = vpack.c.b16 %v857, %v857
    %v866 = vpack.c.b16 %v858, %v858
    %875 = vst [vmem:[#allocation2 + $0x40] sm:$0xf] %v859
    %876 = vst [vmem:[#allocation2 + $0x44] sm:$0xf] %v860
    %877 = vst [vmem:[#allocation2 + $0x48] sm:$0xf] %v861
    %878 = vst [vmem:[#allocation2 + $0x4c] sm:$0xf] %v862
    %879 = vst [vmem:[#allocation2 + $0x50] sm:$0xf] %v863
    %880 = vst [vmem:[#allocation2 + $0x54] sm:$0xf] %v864
    %881 = vst [vmem:[#allocation2 + $0x58] sm:$0xf] %v865
    %882 = vst [vmem:[#allocation2 + $0x5c] sm:$0xf] %v866
    %s883 = sadd.s32 %s57, 6
    %s884 = smul.u32 %s883, 32
    %s885 = scalar_lea.vmem [#allocation3], %s884
    %v886 = vld [vmem:[%s885] sm:$0xff]
    %v887 = vld [vmem:[%s885 + $0x8] sm:$0xff]
    %v888 = vld [vmem:[%s885 + $0x10] sm:$0xff]
    %v889 = vld [vmem:[%s885 + $0x18] sm:$0xff]
    %v890 = vld [vmem:[%s885 + $0x20] sm:$0xff]
    %v891 = vld [vmem:[%s885 + $0x28] sm:$0xff]
    %v892 = vld [vmem:[%s885 + $0x30] sm:$0xff]
    %v893 = vld [vmem:[%s885 + $0x38] sm:$0xff]
    %v894 = vld [vmem:[%s885 + $0x40] sm:$0xff]
    %v895 = vld [vmem:[%s885 + $0x48] sm:$0xff]
    %v896 = vld [vmem:[%s885 + $0x50] sm:$0xff]
    %v897 = vld [vmem:[%s885 + $0x58] sm:$0xff]
    %v898 = vld [vmem:[%s885 + $0x60] sm:$0xff]
    %v899 = vld [vmem:[%s885 + $0x68] sm:$0xff]
    %v900 = vld [vmem:[%s885 + $0x70] sm:$0xff]
    %v901 = vld [vmem:[%s885 + $0x78] sm:$0xff]
    %v902 = vmul.f32 %v886, %v88
    %v903 = vmul.f32 %v887, %v88
    %v904 = vmul.f32 %v888, %v88
    %v905 = vmul.f32 %v889, %v88
    %v906 = vmul.f32 %v890, %v88
    %v907 = vmul.f32 %v891, %v88
    %v908 = vmul.f32 %v892, %v88
    %v909 = vmul.f32 %v893, %v88
    %v910 = vmul.f32 %v890, %v100
    %v911 = vmul.f32 %v891, %v100
    %v912 = vmul.f32 %v892, %v100
    %v913 = vmul.f32 %v893, %v100
    %v914 = vmul.f32 %v894, %v100
    %v915 = vmul.f32 %v895, %v100
    %v916 = vmul.f32 %v896, %v100
    %v917 = vmul.f32 %v897, %v100
    %v918 = vadd.f32 %v902, %v910
    %v919 = vadd.f32 %v903, %v911
    %v920 = vadd.f32 %v904, %v912
    %v921 = vadd.f32 %v905, %v913
    %v922 = vadd.f32 %v906, %v914
    %v923 = vadd.f32 %v907, %v915
    %v924 = vadd.f32 %v908, %v916
    %v925 = vadd.f32 %v909, %v917
    %v926 = vmul.f32 %v894, %v120
    %v927 = vmul.f32 %v895, %v120
    %v928 = vmul.f32 %v896, %v120
    %v929 = vmul.f32 %v897, %v120
    %v930 = vmul.f32 %v898, %v120
    %v931 = vmul.f32 %v899, %v120
    %v932 = vmul.f32 %v900, %v120
    %v933 = vmul.f32 %v901, %v120
    %v934 = vadd.f32 %v918, %v926
    %v935 = vadd.f32 %v919, %v927
    %v936 = vadd.f32 %v920, %v928
    %v937 = vadd.f32 %v921, %v929
    %v938 = vadd.f32 %v922, %v930
    %v939 = vadd.f32 %v923, %v931
    %v940 = vadd.f32 %v924, %v932
    %v941 = vadd.f32 %v925, %v933
    %v942 = vrot.slane %v886, 1
    %v943 = vrot.slane %v887, 1
    %v944 = vrot.slane %v888, 1
    %v945 = vrot.slane %v889, 1
    %v946 = vrot.slane %v890, 1
    %v947 = vrot.slane %v891, 1
    %v948 = vrot.slane %v892, 1
    %v949 = vrot.slane %v893, 1
    %v950 = vrot.slane %v894, 1
    %v951 = vrot.slane %v895, 1
    %v952 = vrot.slane %v896, 1
    %v953 = vrot.slane %v897, 1
    %v954 = vrot.slane %v898, 1
    %v955 = vrot.slane %v899, 1
    %v956 = vrot.slane %v900, 1
    %v957 = vrot.slane %v901, 1
    %v958 = vsel %vm155, %v956, %v957
    %v959 = vsel %vm155, %v955, %v956
    %v960 = vsel %vm155, %v954, %v955
    %v961 = vsel %vm155, %v953, %v954
    %v962 = vsel %vm155, %v952, %v953
    %v963 = vsel %vm155, %v951, %v952
    %v964 = vsel %vm155, %v950, %v951
    %v965 = vsel %vm155, %v949, %v950
    %v966 = vsel %vm155, %v948, %v949
    %v967 = vsel %vm155, %v947, %v948
    %v968 = vsel %vm155, %v946, %v947
    %v969 = vsel %vm155, %v945, %v946
    %v970 = vsel %vm155, %v944, %v945
    %v971 = vsel %vm155, %v943, %v944
    %v972 = vsel %vm155, %v942, %v943
    %v973 = vsel %vm155, %v957, %v942
    %v974 = vmul.f32 %v972, %v175
    %v975 = vmul.f32 %v971, %v175
    %v976 = vmul.f32 %v970, %v175
    %v977 = vmul.f32 %v969, %v175
    %v978 = vmul.f32 %v968, %v175
    %v979 = vmul.f32 %v967, %v175
    %v980 = vmul.f32 %v966, %v175
    %v981 = vmul.f32 %v965, %v175
    %v982 = vadd.f32 %v934, %v974
    %v983 = vadd.f32 %v935, %v975
    %v984 = vadd.f32 %v936, %v976
    %v985 = vadd.f32 %v937, %v977
    %v986 = vadd.f32 %v938, %v978
    %v987 = vadd.f32 %v939, %v979
    %v988 = vadd.f32 %v940, %v980
    %v989 = vadd.f32 %v941, %v981
    %v990 = vmul.f32 %v968, %v195
    %v991 = vmul.f32 %v967, %v195
    %v992 = vmul.f32 %v966, %v195
    %v993 = vmul.f32 %v965, %v195
    %v994 = vmul.f32 %v964, %v195
    %v995 = vmul.f32 %v963, %v195
    %v996 = vmul.f32 %v962, %v195
    %v997 = vmul.f32 %v961, %v195
    %v998 = vadd.f32 %v982, %v990
    %v999 = vadd.f32 %v983, %v991
    %v1000 = vadd.f32 %v984, %v992
    %v1001 = vadd.f32 %v985, %v993
    %v1002 = vadd.f32 %v986, %v994
    %v1003 = vadd.f32 %v987, %v995
    %v1004 = vadd.f32 %v988, %v996
    %v1005 = vadd.f32 %v989, %v997
    %v1006 = vmul.f32 %v964, %v215
    %v1007 = vmul.f32 %v963, %v215
    %v1008 = vmul.f32 %v962, %v215
    %v1009 = vmul.f32 %v961, %v215
    %v1010 = vmul.f32 %v960, %v215
    %v1011 = vmul.f32 %v959, %v215
    %v1012 = vmul.f32 %v958, %v215
    %v1013 = vmul.f32 %v973, %v215
    %v1014 = vadd.f32 %v998, %v1006
    %v1015 = vadd.f32 %v999, %v1007
    %v1016 = vadd.f32 %v1000, %v1008
    %v1017 = vadd.f32 %v1001, %v1009
    %v1018 = vadd.f32 %v1002, %v1010
    %v1019 = vadd.f32 %v1003, %v1011
    %v1020 = vadd.f32 %v1004, %v1012
    %v1021 = vadd.f32 %v1005, %v1013
    %v1022 = vrot.slane %v886, 2
    %v1023 = vrot.slane %v887, 2
    %v1024 = vrot.slane %v888, 2
    %v1025 = vrot.slane %v889, 2
    %v1026 = vrot.slane %v890, 2
    %v1027 = vrot.slane %v891, 2
    %v1028 = vrot.slane %v892, 2
    %v1029 = vrot.slane %v893, 2
    %v1030 = vrot.slane %v894, 2
    %v1031 = vrot.slane %v895, 2
    %v1032 = vrot.slane %v896, 2
    %v1033 = vrot.slane %v897, 2
    %v1034 = vrot.slane %v898, 2
    %v1035 = vrot.slane %v899, 2
    %v1036 = vrot.slane %v900, 2
    %v1037 = vrot.slane %v901, 2
    %v1038 = vsel %vm248, %v1036, %v1037
    %v1039 = vsel %vm248, %v1035, %v1036
    %v1040 = vsel %vm248, %v1034, %v1035
    %v1041 = vsel %vm248, %v1033, %v1034
    %v1042 = vsel %vm248, %v1032, %v1033
    %v1043 = vsel %vm248, %v1031, %v1032
    %v1044 = vsel %vm248, %v1030, %v1031
    %v1045 = vsel %vm248, %v1029, %v1030
    %v1046 = vsel %vm248, %v1028, %v1029
    %v1047 = vsel %vm248, %v1027, %v1028
    %v1048 = vsel %vm248, %v1026, %v1027
    %v1049 = vsel %vm248, %v1025, %v1026
    %v1050 = vsel %vm248, %v1024, %v1025
    %v1051 = vsel %vm248, %v1023, %v1024
    %v1052 = vsel %vm248, %v1022, %v1023
    %v1053 = vsel %vm248, %v1037, %v1022
    %v1054 = vmul.f32 %v1052, %v268
    %v1055 = vmul.f32 %v1051, %v268
    %v1056 = vmul.f32 %v1050, %v268
    %v1057 = vmul.f32 %v1049, %v268
    %v1058 = vmul.f32 %v1048, %v268
    %v1059 = vmul.f32 %v1047, %v268
    %v1060 = vmul.f32 %v1046, %v268
    %v1061 = vmul.f32 %v1045, %v268
    %v1062 = vadd.f32 %v1014, %v1054
    %v1063 = vadd.f32 %v1015, %v1055
    %v1064 = vadd.f32 %v1016, %v1056
    %v1065 = vadd.f32 %v1017, %v1057
    %v1066 = vadd.f32 %v1018, %v1058
    %v1067 = vadd.f32 %v1019, %v1059
    %v1068 = vadd.f32 %v1020, %v1060
    %v1069 = vadd.f32 %v1021, %v1061
    %v1070 = vmul.f32 %v1048, %v288
    %v1071 = vmul.f32 %v1047, %v288
    %v1072 = vmul.f32 %v1046, %v288
    %v1073 = vmul.f32 %v1045, %v288
    %v1074 = vmul.f32 %v1044, %v288
    %v1075 = vmul.f32 %v1043, %v288
    %v1076 = vmul.f32 %v1042, %v288
    %v1077 = vmul.f32 %v1041, %v288
    %v1078 = vadd.f32 %v1062, %v1070
    %v1079 = vadd.f32 %v1063, %v1071
    %v1080 = vadd.f32 %v1064, %v1072
    %v1081 = vadd.f32 %v1065, %v1073
    %v1082 = vadd.f32 %v1066, %v1074
    %v1083 = vadd.f32 %v1067, %v1075
    %v1084 = vadd.f32 %v1068, %v1076
    %v1085 = vadd.f32 %v1069, %v1077
    %v1086 = vmul.f32 %v1044, %v308
    %v1087 = vmul.f32 %v1043, %v308
    %v1088 = vmul.f32 %v1042, %v308
    %v1089 = vmul.f32 %v1041, %v308
    %v1090 = vmul.f32 %v1040, %v308
    %v1091 = vmul.f32 %v1039, %v308
    %v1092 = vmul.f32 %v1038, %v308
    %v1093 = vmul.f32 %v1053, %v308
    %v1094 = vadd.f32 %v1078, %v1086
    %v1095 = vadd.f32 %v1079, %v1087
    %v1096 = vadd.f32 %v1080, %v1088
    %v1097 = vadd.f32 %v1081, %v1089
    %v1098 = vadd.f32 %v1082, %v1090
    %v1099 = vadd.f32 %v1083, %v1091
    %v1100 = vadd.f32 %v1084, %v1092
    %v1101 = vadd.f32 %v1085, %v1093
    %v1102 = vpack.c.bf16 %v1095, %v1094
    %v1103 = vpack.c.bf16 %v1097, %v1096
    %v1104 = vpack.c.bf16 %v1099, %v1098
    %v1105 = vpack.c.bf16 %v1101, %v1100
    %v1110 = vunpack.c.l.b16 %v1102
    %v1111 = vunpack.c.h.b16 %v1102
    %v1112 = vunpack.c.l.b16 %v1103
    %v1113 = vunpack.c.h.b16 %v1103
    %v1114 = vunpack.c.l.b16 %v1104
    %v1115 = vunpack.c.h.b16 %v1104
    %v1116 = vunpack.c.l.b16 %v1105
    %v1117 = vunpack.c.h.b16 %v1105
    %v1118 = vpack.c.b16 %v1110, %v1110
    %v1119 = vpack.c.b16 %v1111, %v1111
    %v1120 = vpack.c.b16 %v1112, %v1112
    %v1121 = vpack.c.b16 %v1113, %v1113
    %v1122 = vpack.c.b16 %v1114, %v1114
    %v1123 = vpack.c.b16 %v1115, %v1115
    %v1124 = vpack.c.b16 %v1116, %v1116
    %v1125 = vpack.c.b16 %v1117, %v1117
    %1134 = vst [vmem:[#allocation2 + $0x60] sm:$0xf] %v1118
    %1135 = vst [vmem:[#allocation2 + $0x64] sm:$0xf] %v1119
    %1136 = vst [vmem:[#allocation2 + $0x68] sm:$0xf] %v1120
    %1137 = vst [vmem:[#allocation2 + $0x6c] sm:$0xf] %v1121
    %1138 = vst [vmem:[#allocation2 + $0x70] sm:$0xf] %v1122
    %1139 = vst [vmem:[#allocation2 + $0x74] sm:$0xf] %v1123
    %1140 = vst [vmem:[#allocation2 + $0x78] sm:$0xf] %v1124
    %1141 = vst [vmem:[#allocation2 + $0x7c] sm:$0xf] %v1125
    %s1142 = sadd.s32 %s57, 8
    %s1143 = smul.u32 %s1142, 32
    %s1144 = scalar_lea.vmem [#allocation3], %s1143
    %v1145 = vld [vmem:[%s1144] sm:$0xff]
    %v1146 = vld [vmem:[%s1144 + $0x8] sm:$0xff]
    %v1147 = vld [vmem:[%s1144 + $0x10] sm:$0xff]
    %v1148 = vld [vmem:[%s1144 + $0x18] sm:$0xff]
    %v1149 = vld [vmem:[%s1144 + $0x20] sm:$0xff]
    %v1150 = vld [vmem:[%s1144 + $0x28] sm:$0xff]
    %v1151 = vld [vmem:[%s1144 + $0x30] sm:$0xff]
    %v1152 = vld [vmem:[%s1144 + $0x38] sm:$0xff]
    %v1153 = vld [vmem:[%s1144 + $0x40] sm:$0xff]
    %v1154 = vld [vmem:[%s1144 + $0x48] sm:$0xff]
    %v1155 = vld [vmem:[%s1144 + $0x50] sm:$0xff]
    %v1156 = vld [vmem:[%s1144 + $0x58] sm:$0xff]
    %v1157 = vld [vmem:[%s1144 + $0x60] sm:$0xff]
    %v1158 = vld [vmem:[%s1144 + $0x68] sm:$0xff]
    %v1159 = vld [vmem:[%s1144 + $0x70] sm:$0xff]
    %v1160 = vld [vmem:[%s1144 + $0x78] sm:$0xff]
    %v1161 = vmul.f32 %v1145, %v88
    %v1162 = vmul.f32 %v1146, %v88
    %v1163 = vmul.f32 %v1147, %v88
    %v1164 = vmul.f32 %v1148, %v88
    %v1165 = vmul.f32 %v1149, %v88
    %v1166 = vmul.f32 %v1150, %v88
    %v1167 = vmul.f32 %v1151, %v88
    %v1168 = vmul.f32 %v1152, %v88
    %v1169 = vmul.f32 %v1149, %v100
    %v1170 = vmul.f32 %v1150, %v100
    %v1171 = vmul.f32 %v1151, %v100
    %v1172 = vmul.f32 %v1152, %v100
    %v1173 = vmul.f32 %v1153, %v100
    %v1174 = vmul.f32 %v1154, %v100
    %v1175 = vmul.f32 %v1155, %v100
    %v1176 = vmul.f32 %v1156, %v100
    %v1177 = vadd.f32 %v1161, %v1169
    %v1178 = vadd.f32 %v1162, %v1170
    %v1179 = vadd.f32 %v1163, %v1171
    %v1180 = vadd.f32 %v1164, %v1172
    %v1181 = vadd.f32 %v1165, %v1173
    %v1182 = vadd.f32 %v1166, %v1174
    %v1183 = vadd.f32 %v1167, %v1175
    %v1184 = vadd.f32 %v1168, %v1176
    %v1185 = vmul.f32 %v1153, %v120
    %v1186 = vmul.f32 %v1154, %v120
    %v1187 = vmul.f32 %v1155, %v120
    %v1188 = vmul.f32 %v1156, %v120
    %v1189 = vmul.f32 %v1157, %v120
    %v1190 = vmul.f32 %v1158, %v120
    %v1191 = vmul.f32 %v1159, %v120
    %v1192 = vmul.f32 %v1160, %v120
    %v1193 = vadd.f32 %v1177, %v1185
    %v1194 = vadd.f32 %v1178, %v1186
    %v1195 = vadd.f32 %v1179, %v1187
    %v1196 = vadd.f32 %v1180, %v1188
    %v1197 = vadd.f32 %v1181, %v1189
    %v1198 = vadd.f32 %v1182, %v1190
    %v1199 = vadd.f32 %v1183, %v1191
    %v1200 = vadd.f32 %v1184, %v1192
    %v1201 = vrot.slane %v1145, 1
    %v1202 = vrot.slane %v1146, 1
    %v1203 = vrot.slane %v1147, 1
    %v1204 = vrot.slane %v1148, 1
    %v1205 = vrot.slane %v1149, 1
    %v1206 = vrot.slane %v1150, 1
    %v1207 = vrot.slane %v1151, 1
    %v1208 = vrot.slane %v1152, 1
    %v1209 = vrot.slane %v1153, 1
    %v1210 = vrot.slane %v1154, 1
    %v1211 = vrot.slane %v1155, 1
    %v1212 = vrot.slane %v1156, 1
    %v1213 = vrot.slane %v1157, 1
    %v1214 = vrot.slane %v1158, 1
    %v1215 = vrot.slane %v1159, 1
    %v1216 = vrot.slane %v1160, 1
    %v1217 = vsel %vm155, %v1215, %v1216
    %v1218 = vsel %vm155, %v1214, %v1215
    %v1219 = vsel %vm155, %v1213, %v1214
    %v1220 = vsel %vm155, %v1212, %v1213
    %v1221 = vsel %vm155, %v1211, %v1212
    %v1222 = vsel %vm155, %v1210, %v1211
    %v1223 = vsel %vm155, %v1209, %v1210
    %v1224 = vsel %vm155, %v1208, %v1209
    %v1225 = vsel %vm155, %v1207, %v1208
    %v1226 = vsel %vm155, %v1206, %v1207
    %v1227 = vsel %vm155, %v1205, %v1206
    %v1228 = vsel %vm155, %v1204, %v1205
    %v1229 = vsel %vm155, %v1203, %v1204
    %v1230 = vsel %vm155, %v1202, %v1203
    %v1231 = vsel %vm155, %v1201, %v1202
    %v1232 = vsel %vm155, %v1216, %v1201
    %v1233 = vmul.f32 %v1231, %v175
    %v1234 = vmul.f32 %v1230, %v175
    %v1235 = vmul.f32 %v1229, %v175
    %v1236 = vmul.f32 %v1228, %v175
    %v1237 = vmul.f32 %v1227, %v175
    %v1238 = vmul.f32 %v1226, %v175
    %v1239 = vmul.f32 %v1225, %v175
    %v1240 = vmul.f32 %v1224, %v175
    %v1241 = vadd.f32 %v1193, %v1233
    %v1242 = vadd.f32 %v1194, %v1234
    %v1243 = vadd.f32 %v1195, %v1235
    %v1244 = vadd.f32 %v1196, %v1236
    %v1245 = vadd.f32 %v1197, %v1237
    %v1246 = vadd.f32 %v1198, %v1238
    %v1247 = vadd.f32 %v1199, %v1239
    %v1248 = vadd.f32 %v1200, %v1240
    %v1249 = vmul.f32 %v1227, %v195
    %v1250 = vmul.f32 %v1226, %v195
    %v1251 = vmul.f32 %v1225, %v195
    %v1252 = vmul.f32 %v1224, %v195
    %v1253 = vmul.f32 %v1223, %v195
    %v1254 = vmul.f32 %v1222, %v195
    %v1255 = vmul.f32 %v1221, %v195
    %v1256 = vmul.f32 %v1220, %v195
    %v1257 = vadd.f32 %v1241, %v1249
    %v1258 = vadd.f32 %v1242, %v1250
    %v1259 = vadd.f32 %v1243, %v1251
    %v1260 = vadd.f32 %v1244, %v1252
    %v1261 = vadd.f32 %v1245, %v1253
    %v1262 = vadd.f32 %v1246, %v1254
    %v1263 = vadd.f32 %v1247, %v1255
    %v1264 = vadd.f32 %v1248, %v1256
    %v1265 = vmul.f32 %v1223, %v215
    %v1266 = vmul.f32 %v1222, %v215
    %v1267 = vmul.f32 %v1221, %v215
    %v1268 = vmul.f32 %v1220, %v215
    %v1269 = vmul.f32 %v1219, %v215
    %v1270 = vmul.f32 %v1218, %v215
    %v1271 = vmul.f32 %v1217, %v215
    %v1272 = vmul.f32 %v1232, %v215
    %v1273 = vadd.f32 %v1257, %v1265
    %v1274 = vadd.f32 %v1258, %v1266
    %v1275 = vadd.f32 %v1259, %v1267
    %v1276 = vadd.f32 %v1260, %v1268
    %v1277 = vadd.f32 %v1261, %v1269
    %v1278 = vadd.f32 %v1262, %v1270
    %v1279 = vadd.f32 %v1263, %v1271
    %v1280 = vadd.f32 %v1264, %v1272
    %v1281 = vrot.slane %v1145, 2
    %v1282 = vrot.slane %v1146, 2
    %v1283 = vrot.slane %v1147, 2
    %v1284 = vrot.slane %v1148, 2
    %v1285 = vrot.slane %v1149, 2
    %v1286 = vrot.slane %v1150, 2
    %v1287 = vrot.slane %v1151, 2
    %v1288 = vrot.slane %v1152, 2
    %v1289 = vrot.slane %v1153, 2
    %v1290 = vrot.slane %v1154, 2
    %v1291 = vrot.slane %v1155, 2
    %v1292 = vrot.slane %v1156, 2
    %v1293 = vrot.slane %v1157, 2
    %v1294 = vrot.slane %v1158, 2
    %v1295 = vrot.slane %v1159, 2
    %v1296 = vrot.slane %v1160, 2
    %v1297 = vsel %vm248, %v1295, %v1296
    %v1298 = vsel %vm248, %v1294, %v1295
    %v1299 = vsel %vm248, %v1293, %v1294
    %v1300 = vsel %vm248, %v1292, %v1293
    %v1301 = vsel %vm248, %v1291, %v1292
    %v1302 = vsel %vm248, %v1290, %v1291
    %v1303 = vsel %vm248, %v1289, %v1290
    %v1304 = vsel %vm248, %v1288, %v1289
    %v1305 = vsel %vm248, %v1287, %v1288
    %v1306 = vsel %vm248, %v1286, %v1287
    %v1307 = vsel %vm248, %v1285, %v1286
    %v1308 = vsel %vm248, %v1284, %v1285
    %v1309 = vsel %vm248, %v1283, %v1284
    %v1310 = vsel %vm248, %v1282, %v1283
    %v1311 = vsel %vm248, %v1281, %v1282
    %v1312 = vsel %vm248, %v1296, %v1281
    %v1313 = vmul.f32 %v1311, %v268
    %v1314 = vmul.f32 %v1310, %v268
    %v1315 = vmul.f32 %v1309, %v268
    %v1316 = vmul.f32 %v1308, %v268
    %v1317 = vmul.f32 %v1307, %v268
    %v1318 = vmul.f32 %v1306, %v268
    %v1319 = vmul.f32 %v1305, %v268
    %v1320 = vmul.f32 %v1304, %v268
    %v1321 = vadd.f32 %v1273, %v1313
    %v1322 = vadd.f32 %v1274, %v1314
    %v1323 = vadd.f32 %v1275, %v1315
    %v1324 = vadd.f32 %v1276, %v1316
    %v1325 = vadd.f32 %v1277, %v1317
    %v1326 = vadd.f32 %v1278, %v1318
    %v1327 = vadd.f32 %v1279, %v1319
    %v1328 = vadd.f32 %v1280, %v1320
    %v1329 = vmul.f32 %v1307, %v288
    %v1330 = vmul.f32 %v1306, %v288
    %v1331 = vmul.f32 %v1305, %v288
    %v1332 = vmul.f32 %v1304, %v288
    %v1333 = vmul.f32 %v1303, %v288
    %v1334 = vmul.f32 %v1302, %v288
    %v1335 = vmul.f32 %v1301, %v288
    %v1336 = vmul.f32 %v1300, %v288
    %v1337 = vadd.f32 %v1321, %v1329
    %v1338 = vadd.f32 %v1322, %v1330
    %v1339 = vadd.f32 %v1323, %v1331
    %v1340 = vadd.f32 %v1324, %v1332
    %v1341 = vadd.f32 %v1325, %v1333
    %v1342 = vadd.f32 %v1326, %v1334
    %v1343 = vadd.f32 %v1327, %v1335
    %v1344 = vadd.f32 %v1328, %v1336
    %v1345 = vmul.f32 %v1303, %v308
    %v1346 = vmul.f32 %v1302, %v308
    %v1347 = vmul.f32 %v1301, %v308
    %v1348 = vmul.f32 %v1300, %v308
    %v1349 = vmul.f32 %v1299, %v308
    %v1350 = vmul.f32 %v1298, %v308
    %v1351 = vmul.f32 %v1297, %v308
    %v1352 = vmul.f32 %v1312, %v308
    %v1353 = vadd.f32 %v1337, %v1345
    %v1354 = vadd.f32 %v1338, %v1346
    %v1355 = vadd.f32 %v1339, %v1347
    %v1356 = vadd.f32 %v1340, %v1348
    %v1357 = vadd.f32 %v1341, %v1349
    %v1358 = vadd.f32 %v1342, %v1350
    %v1359 = vadd.f32 %v1343, %v1351
    %v1360 = vadd.f32 %v1344, %v1352
    %v1361 = vpack.c.bf16 %v1354, %v1353
    %v1362 = vpack.c.bf16 %v1356, %v1355
    %v1363 = vpack.c.bf16 %v1358, %v1357
    %v1364 = vpack.c.bf16 %v1360, %v1359
    %v1369 = vunpack.c.l.b16 %v1361
    %v1370 = vunpack.c.h.b16 %v1361
    %v1371 = vunpack.c.l.b16 %v1362
    %v1372 = vunpack.c.h.b16 %v1362
    %v1373 = vunpack.c.l.b16 %v1363
    %v1374 = vunpack.c.h.b16 %v1363
    %v1375 = vunpack.c.l.b16 %v1364
    %v1376 = vunpack.c.h.b16 %v1364
    %v1377 = vpack.c.b16 %v1369, %v1369
    %v1378 = vpack.c.b16 %v1370, %v1370
    %v1379 = vpack.c.b16 %v1371, %v1371
    %v1380 = vpack.c.b16 %v1372, %v1372
    %v1381 = vpack.c.b16 %v1373, %v1373
    %v1382 = vpack.c.b16 %v1374, %v1374
    %v1383 = vpack.c.b16 %v1375, %v1375
    %v1384 = vpack.c.b16 %v1376, %v1376
    %1393 = vst [vmem:[#allocation2 + $0x80] sm:$0xf] %v1377
    %1394 = vst [vmem:[#allocation2 + $0x84] sm:$0xf] %v1378
    %1395 = vst [vmem:[#allocation2 + $0x88] sm:$0xf] %v1379
    %1396 = vst [vmem:[#allocation2 + $0x8c] sm:$0xf] %v1380
    %1397 = vst [vmem:[#allocation2 + $0x90] sm:$0xf] %v1381
    %1398 = vst [vmem:[#allocation2 + $0x94] sm:$0xf] %v1382
    %1399 = vst [vmem:[#allocation2 + $0x98] sm:$0xf] %v1383
    %1400 = vst [vmem:[#allocation2 + $0x9c] sm:$0xf] %v1384
    %s1401 = sadd.s32 %s57, 10
    %s1402 = smul.u32 %s1401, 32
    %s1403 = scalar_lea.vmem [#allocation3], %s1402
    %v1404 = vld [vmem:[%s1403] sm:$0xff]
    %v1405 = vld [vmem:[%s1403 + $0x8] sm:$0xff]
    %v1406 = vld [vmem:[%s1403 + $0x10] sm:$0xff]
    %v1407 = vld [vmem:[%s1403 + $0x18] sm:$0xff]
    %v1408 = vld [vmem:[%s1403 + $0x20] sm:$0xff]
    %v1409 = vld [vmem:[%s1403 + $0x28] sm:$0xff]
    %v1410 = vld [vmem:[%s1403 + $0x30] sm:$0xff]
    %v1411 = vld [vmem:[%s1403 + $0x38] sm:$0xff]
    %v1412 = vld [vmem:[%s1403 + $0x40] sm:$0xff]
    %v1413 = vld [vmem:[%s1403 + $0x48] sm:$0xff]
    %v1414 = vld [vmem:[%s1403 + $0x50] sm:$0xff]
    %v1415 = vld [vmem:[%s1403 + $0x58] sm:$0xff]
    %v1416 = vld [vmem:[%s1403 + $0x60] sm:$0xff]
    %v1417 = vld [vmem:[%s1403 + $0x68] sm:$0xff]
    %v1418 = vld [vmem:[%s1403 + $0x70] sm:$0xff]
    %v1419 = vld [vmem:[%s1403 + $0x78] sm:$0xff]
    %v1420 = vmul.f32 %v1404, %v88
    %v1421 = vmul.f32 %v1405, %v88
    %v1422 = vmul.f32 %v1406, %v88
    %v1423 = vmul.f32 %v1407, %v88
    %v1424 = vmul.f32 %v1408, %v88
    %v1425 = vmul.f32 %v1409, %v88
    %v1426 = vmul.f32 %v1410, %v88
    %v1427 = vmul.f32 %v1411, %v88
    %v1428 = vmul.f32 %v1408, %v100
    %v1429 = vmul.f32 %v1409, %v100
    %v1430 = vmul.f32 %v1410, %v100
    %v1431 = vmul.f32 %v1411, %v100
    %v1432 = vmul.f32 %v1412, %v100
    %v1433 = vmul.f32 %v1413, %v100
    %v1434 = vmul.f32 %v1414, %v100
    %v1435 = vmul.f32 %v1415, %v100
    %v1436 = vadd.f32 %v1420, %v1428
    %v1437 = vadd.f32 %v1421, %v1429
    %v1438 = vadd.f32 %v1422, %v1430
    %v1439 = vadd.f32 %v1423, %v1431
    %v1440 = vadd.f32 %v1424, %v1432
    %v1441 = vadd.f32 %v1425, %v1433
    %v1442 = vadd.f32 %v1426, %v1434
    %v1443 = vadd.f32 %v1427, %v1435
    %v1444 = vmul.f32 %v1412, %v120
    %v1445 = vmul.f32 %v1413, %v120
    %v1446 = vmul.f32 %v1414, %v120
    %v1447 = vmul.f32 %v1415, %v120
    %v1448 = vmul.f32 %v1416, %v120
    %v1449 = vmul.f32 %v1417, %v120
    %v1450 = vmul.f32 %v1418, %v120
    %v1451 = vmul.f32 %v1419, %v120
    %v1452 = vadd.f32 %v1436, %v1444
    %v1453 = vadd.f32 %v1437, %v1445
    %v1454 = vadd.f32 %v1438, %v1446
    %v1455 = vadd.f32 %v1439, %v1447
    %v1456 = vadd.f32 %v1440, %v1448
    %v1457 = vadd.f32 %v1441, %v1449
    %v1458 = vadd.f32 %v1442, %v1450
    %v1459 = vadd.f32 %v1443, %v1451
    %v1460 = vrot.slane %v1404, 1
    %v1461 = vrot.slane %v1405, 1
    %v1462 = vrot.slane %v1406, 1
    %v1463 = vrot.slane %v1407, 1
    %v1464 = vrot.slane %v1408, 1
    %v1465 = vrot.slane %v1409, 1
    %v1466 = vrot.slane %v1410, 1
    %v1467 = vrot.slane %v1411, 1
    %v1468 = vrot.slane %v1412, 1
    %v1469 = vrot.slane %v1413, 1
    %v1470 = vrot.slane %v1414, 1
    %v1471 = vrot.slane %v1415, 1
    %v1472 = vrot.slane %v1416, 1
    %v1473 = vrot.slane %v1417, 1
    %v1474 = vrot.slane %v1418, 1
    %v1475 = vrot.slane %v1419, 1
    %v1476 = vsel %vm155, %v1474, %v1475
    %v1477 = vsel %vm155, %v1473, %v1474
    %v1478 = vsel %vm155, %v1472, %v1473
    %v1479 = vsel %vm155, %v1471, %v1472
    %v1480 = vsel %vm155, %v1470, %v1471
    %v1481 = vsel %vm155, %v1469, %v1470
    %v1482 = vsel %vm155, %v1468, %v1469
    %v1483 = vsel %vm155, %v1467, %v1468
    %v1484 = vsel %vm155, %v1466, %v1467
    %v1485 = vsel %vm155, %v1465, %v1466
    %v1486 = vsel %vm155, %v1464, %v1465
    %v1487 = vsel %vm155, %v1463, %v1464
    %v1488 = vsel %vm155, %v1462, %v1463
    %v1489 = vsel %vm155, %v1461, %v1462
    %v1490 = vsel %vm155, %v1460, %v1461
    %v1491 = vsel %vm155, %v1475, %v1460
    %v1492 = vmul.f32 %v1490, %v175
    %v1493 = vmul.f32 %v1489, %v175
    %v1494 = vmul.f32 %v1488, %v175
    %v1495 = vmul.f32 %v1487, %v175
    %v1496 = vmul.f32 %v1486, %v175
    %v1497 = vmul.f32 %v1485, %v175
    %v1498 = vmul.f32 %v1484, %v175
    %v1499 = vmul.f32 %v1483, %v175
    %v1500 = vadd.f32 %v1452, %v1492
    %v1501 = vadd.f32 %v1453, %v1493
    %v1502 = vadd.f32 %v1454, %v1494
    %v1503 = vadd.f32 %v1455, %v1495
    %v1504 = vadd.f32 %v1456, %v1496
    %v1505 = vadd.f32 %v1457, %v1497
    %v1506 = vadd.f32 %v1458, %v1498
    %v1507 = vadd.f32 %v1459, %v1499
    %v1508 = vmul.f32 %v1486, %v195
    %v1509 = vmul.f32 %v1485, %v195
    %v1510 = vmul.f32 %v1484, %v195
    %v1511 = vmul.f32 %v1483, %v195
    %v1512 = vmul.f32 %v1482, %v195
    %v1513 = vmul.f32 %v1481, %v195
    %v1514 = vmul.f32 %v1480, %v195
    %v1515 = vmul.f32 %v1479, %v195
    %v1516 = vadd.f32 %v1500, %v1508
    %v1517 = vadd.f32 %v1501, %v1509
    %v1518 = vadd.f32 %v1502, %v1510
    %v1519 = vadd.f32 %v1503, %v1511
    %v1520 = vadd.f32 %v1504, %v1512
    %v1521 = vadd.f32 %v1505, %v1513
    %v1522 = vadd.f32 %v1506, %v1514
    %v1523 = vadd.f32 %v1507, %v1515
    %v1524 = vmul.f32 %v1482, %v215
    %v1525 = vmul.f32 %v1481, %v215
    %v1526 = vmul.f32 %v1480, %v215
    %v1527 = vmul.f32 %v1479, %v215
    %v1528 = vmul.f32 %v1478, %v215
    %v1529 = vmul.f32 %v1477, %v215
    %v1530 = vmul.f32 %v1476, %v215
    %v1531 = vmul.f32 %v1491, %v215
    %v1532 = vadd.f32 %v1516, %v1524
    %v1533 = vadd.f32 %v1517, %v1525
    %v1534 = vadd.f32 %v1518, %v1526
    %v1535 = vadd.f32 %v1519, %v1527
    %v1536 = vadd.f32 %v1520, %v1528
    %v1537 = vadd.f32 %v1521, %v1529
    %v1538 = vadd.f32 %v1522, %v1530
    %v1539 = vadd.f32 %v1523, %v1531
    %v1540 = vrot.slane %v1404, 2
    %v1541 = vrot.slane %v1405, 2
    %v1542 = vrot.slane %v1406, 2
    %v1543 = vrot.slane %v1407, 2
    %v1544 = vrot.slane %v1408, 2
    %v1545 = vrot.slane %v1409, 2
    %v1546 = vrot.slane %v1410, 2
    %v1547 = vrot.slane %v1411, 2
    %v1548 = vrot.slane %v1412, 2
    %v1549 = vrot.slane %v1413, 2
    %v1550 = vrot.slane %v1414, 2
    %v1551 = vrot.slane %v1415, 2
    %v1552 = vrot.slane %v1416, 2
    %v1553 = vrot.slane %v1417, 2
    %v1554 = vrot.slane %v1418, 2
    %v1555 = vrot.slane %v1419, 2
    %v1556 = vsel %vm248, %v1554, %v1555
    %v1557 = vsel %vm248, %v1553, %v1554
    %v1558 = vsel %vm248, %v1552, %v1553
    %v1559 = vsel %vm248, %v1551, %v1552
    %v1560 = vsel %vm248, %v1550, %v1551
    %v1561 = vsel %vm248, %v1549, %v1550
    %v1562 = vsel %vm248, %v1548, %v1549
    %v1563 = vsel %vm248, %v1547, %v1548
    %v1564 = vsel %vm248, %v1546, %v1547
    %v1565 = vsel %vm248, %v1545, %v1546
    %v1566 = vsel %vm248, %v1544, %v1545
    %v1567 = vsel %vm248, %v1543, %v1544
    %v1568 = vsel %vm248, %v1542, %v1543
    %v1569 = vsel %vm248, %v1541, %v1542
    %v1570 = vsel %vm248, %v1540, %v1541
    %v1571 = vsel %vm248, %v1555, %v1540
    %v1572 = vmul.f32 %v1570, %v268
    %v1573 = vmul.f32 %v1569, %v268
    %v1574 = vmul.f32 %v1568, %v268
    %v1575 = vmul.f32 %v1567, %v268
    %v1576 = vmul.f32 %v1566, %v268
    %v1577 = vmul.f32 %v1565, %v268
    %v1578 = vmul.f32 %v1564, %v268
    %v1579 = vmul.f32 %v1563, %v268
    %v1580 = vadd.f32 %v1532, %v1572
    %v1581 = vadd.f32 %v1533, %v1573
    %v1582 = vadd.f32 %v1534, %v1574
    %v1583 = vadd.f32 %v1535, %v1575
    %v1584 = vadd.f32 %v1536, %v1576
    %v1585 = vadd.f32 %v1537, %v1577
    %v1586 = vadd.f32 %v1538, %v1578
    %v1587 = vadd.f32 %v1539, %v1579
    %v1588 = vmul.f32 %v1566, %v288
    %v1589 = vmul.f32 %v1565, %v288
    %v1590 = vmul.f32 %v1564, %v288
    %v1591 = vmul.f32 %v1563, %v288
    %v1592 = vmul.f32 %v1562, %v288
    %v1593 = vmul.f32 %v1561, %v288
    %v1594 = vmul.f32 %v1560, %v288
    %v1595 = vmul.f32 %v1559, %v288
    %v1596 = vadd.f32 %v1580, %v1588
    %v1597 = vadd.f32 %v1581, %v1589
    %v1598 = vadd.f32 %v1582, %v1590
    %v1599 = vadd.f32 %v1583, %v1591
    %v1600 = vadd.f32 %v1584, %v1592
    %v1601 = vadd.f32 %v1585, %v1593
    %v1602 = vadd.f32 %v1586, %v1594
    %v1603 = vadd.f32 %v1587, %v1595
    %v1604 = vmul.f32 %v1562, %v308
    %v1605 = vmul.f32 %v1561, %v308
    %v1606 = vmul.f32 %v1560, %v308
    %v1607 = vmul.f32 %v1559, %v308
    %v1608 = vmul.f32 %v1558, %v308
    %v1609 = vmul.f32 %v1557, %v308
    %v1610 = vmul.f32 %v1556, %v308
    %v1611 = vmul.f32 %v1571, %v308
    %v1612 = vadd.f32 %v1596, %v1604
    %v1613 = vadd.f32 %v1597, %v1605
    %v1614 = vadd.f32 %v1598, %v1606
    %v1615 = vadd.f32 %v1599, %v1607
    %v1616 = vadd.f32 %v1600, %v1608
    %v1617 = vadd.f32 %v1601, %v1609
    %v1618 = vadd.f32 %v1602, %v1610
    %v1619 = vadd.f32 %v1603, %v1611
    %v1620 = vpack.c.bf16 %v1613, %v1612
    %v1621 = vpack.c.bf16 %v1615, %v1614
    %v1622 = vpack.c.bf16 %v1617, %v1616
    %v1623 = vpack.c.bf16 %v1619, %v1618
    %v1628 = vunpack.c.l.b16 %v1620
    %v1629 = vunpack.c.h.b16 %v1620
    %v1630 = vunpack.c.l.b16 %v1621
    %v1631 = vunpack.c.h.b16 %v1621
    %v1632 = vunpack.c.l.b16 %v1622
    %v1633 = vunpack.c.h.b16 %v1622
    %v1634 = vunpack.c.l.b16 %v1623
    %v1635 = vunpack.c.h.b16 %v1623
    %v1636 = vpack.c.b16 %v1628, %v1628
    %v1637 = vpack.c.b16 %v1629, %v1629
    %v1638 = vpack.c.b16 %v1630, %v1630
    %v1639 = vpack.c.b16 %v1631, %v1631
    %v1640 = vpack.c.b16 %v1632, %v1632
    %v1641 = vpack.c.b16 %v1633, %v1633
    %v1642 = vpack.c.b16 %v1634, %v1634
    %v1643 = vpack.c.b16 %v1635, %v1635
    %1652 = vst [vmem:[#allocation2 + $0xa0] sm:$0xf] %v1636
    %1653 = vst [vmem:[#allocation2 + $0xa4] sm:$0xf] %v1637
    %1654 = vst [vmem:[#allocation2 + $0xa8] sm:$0xf] %v1638
    %1655 = vst [vmem:[#allocation2 + $0xac] sm:$0xf] %v1639
    %1656 = vst [vmem:[#allocation2 + $0xb0] sm:$0xf] %v1640
    %1657 = vst [vmem:[#allocation2 + $0xb4] sm:$0xf] %v1641
    %1658 = vst [vmem:[#allocation2 + $0xb8] sm:$0xf] %v1642
    %1659 = vst [vmem:[#allocation2 + $0xbc] sm:$0xf] %v1643
    %s1660 = sadd.s32 %s57, 12
    %s1661 = smul.u32 %s1660, 32
    %s1662 = scalar_lea.vmem [#allocation3], %s1661
    %v1663 = vld [vmem:[%s1662] sm:$0xff]
    %v1664 = vld [vmem:[%s1662 + $0x8] sm:$0xff]
    %v1665 = vld [vmem:[%s1662 + $0x10] sm:$0xff]
    %v1666 = vld [vmem:[%s1662 + $0x18] sm:$0xff]
    %v1667 = vld [vmem:[%s1662 + $0x20] sm:$0xff]
    %v1668 = vld [vmem:[%s1662 + $0x28] sm:$0xff]
    %v1669 = vld [vmem:[%s1662 + $0x30] sm:$0xff]
    %v1670 = vld [vmem:[%s1662 + $0x38] sm:$0xff]
    %v1671 = vld [vmem:[%s1662 + $0x40] sm:$0xff]
    %v1672 = vld [vmem:[%s1662 + $0x48] sm:$0xff]
    %v1673 = vld [vmem:[%s1662 + $0x50] sm:$0xff]
    %v1674 = vld [vmem:[%s1662 + $0x58] sm:$0xff]
    %v1675 = vld [vmem:[%s1662 + $0x60] sm:$0xff]
    %v1676 = vld [vmem:[%s1662 + $0x68] sm:$0xff]
    %v1677 = vld [vmem:[%s1662 + $0x70] sm:$0xff]
    %v1678 = vld [vmem:[%s1662 + $0x78] sm:$0xff]
    %v1679 = vmul.f32 %v1663, %v88
    %v1680 = vmul.f32 %v1664, %v88
    %v1681 = vmul.f32 %v1665, %v88
    %v1682 = vmul.f32 %v1666, %v88
    %v1683 = vmul.f32 %v1667, %v88
    %v1684 = vmul.f32 %v1668, %v88
    %v1685 = vmul.f32 %v1669, %v88
    %v1686 = vmul.f32 %v1670, %v88
    %v1687 = vmul.f32 %v1667, %v100
    %v1688 = vmul.f32 %v1668, %v100
    %v1689 = vmul.f32 %v1669, %v100
    %v1690 = vmul.f32 %v1670, %v100
    %v1691 = vmul.f32 %v1671, %v100
    %v1692 = vmul.f32 %v1672, %v100
    %v1693 = vmul.f32 %v1673, %v100
    %v1694 = vmul.f32 %v1674, %v100
    %v1695 = vadd.f32 %v1679, %v1687
    %v1696 = vadd.f32 %v1680, %v1688
    %v1697 = vadd.f32 %v1681, %v1689
    %v1698 = vadd.f32 %v1682, %v1690
    %v1699 = vadd.f32 %v1683, %v1691
    %v1700 = vadd.f32 %v1684, %v1692
    %v1701 = vadd.f32 %v1685, %v1693
    %v1702 = vadd.f32 %v1686, %v1694
    %v1703 = vmul.f32 %v1671, %v120
    %v1704 = vmul.f32 %v1672, %v120
    %v1705 = vmul.f32 %v1673, %v120
    %v1706 = vmul.f32 %v1674, %v120
    %v1707 = vmul.f32 %v1675, %v120
    %v1708 = vmul.f32 %v1676, %v120
    %v1709 = vmul.f32 %v1677, %v120
    %v1710 = vmul.f32 %v1678, %v120
    %v1711 = vadd.f32 %v1695, %v1703
    %v1712 = vadd.f32 %v1696, %v1704
    %v1713 = vadd.f32 %v1697, %v1705
    %v1714 = vadd.f32 %v1698, %v1706
    %v1715 = vadd.f32 %v1699, %v1707
    %v1716 = vadd.f32 %v1700, %v1708
    %v1717 = vadd.f32 %v1701, %v1709
    %v1718 = vadd.f32 %v1702, %v1710
    %v1719 = vrot.slane %v1663, 1
    %v1720 = vrot.slane %v1664, 1
    %v1721 = vrot.slane %v1665, 1
    %v1722 = vrot.slane %v1666, 1
    %v1723 = vrot.slane %v1667, 1
    %v1724 = vrot.slane %v1668, 1
    %v1725 = vrot.slane %v1669, 1
    %v1726 = vrot.slane %v1670, 1
    %v1727 = vrot.slane %v1671, 1
    %v1728 = vrot.slane %v1672, 1
    %v1729 = vrot.slane %v1673, 1
    %v1730 = vrot.slane %v1674, 1
    %v1731 = vrot.slane %v1675, 1
    %v1732 = vrot.slane %v1676, 1
    %v1733 = vrot.slane %v1677, 1
    %v1734 = vrot.slane %v1678, 1
    %v1735 = vsel %vm155, %v1733, %v1734
    %v1736 = vsel %vm155, %v1732, %v1733
    %v1737 = vsel %vm155, %v1731, %v1732
    %v1738 = vsel %vm155, %v1730, %v1731
    %v1739 = vsel %vm155, %v1729, %v1730
    %v1740 = vsel %vm155, %v1728, %v1729
    %v1741 = vsel %vm155, %v1727, %v1728
    %v1742 = vsel %vm155, %v1726, %v1727
    %v1743 = vsel %vm155, %v1725, %v1726
    %v1744 = vsel %vm155, %v1724, %v1725
    %v1745 = vsel %vm155, %v1723, %v1724
    %v1746 = vsel %vm155, %v1722, %v1723
    %v1747 = vsel %vm155, %v1721, %v1722
    %v1748 = vsel %vm155, %v1720, %v1721
    %v1749 = vsel %vm155, %v1719, %v1720
    %v1750 = vsel %vm155, %v1734, %v1719
    %v1751 = vmul.f32 %v1749, %v175
    %v1752 = vmul.f32 %v1748, %v175
    %v1753 = vmul.f32 %v1747, %v175
    %v1754 = vmul.f32 %v1746, %v175
    %v1755 = vmul.f32 %v1745, %v175
    %v1756 = vmul.f32 %v1744, %v175
    %v1757 = vmul.f32 %v1743, %v175
    %v1758 = vmul.f32 %v1742, %v175
    %v1759 = vadd.f32 %v1711, %v1751
    %v1760 = vadd.f32 %v1712, %v1752
    %v1761 = vadd.f32 %v1713, %v1753
    %v1762 = vadd.f32 %v1714, %v1754
    %v1763 = vadd.f32 %v1715, %v1755
    %v1764 = vadd.f32 %v1716, %v1756
    %v1765 = vadd.f32 %v1717, %v1757
    %v1766 = vadd.f32 %v1718, %v1758
    %v1767 = vmul.f32 %v1745, %v195
    %v1768 = vmul.f32 %v1744, %v195
    %v1769 = vmul.f32 %v1743, %v195
    %v1770 = vmul.f32 %v1742, %v195
    %v1771 = vmul.f32 %v1741, %v195
    %v1772 = vmul.f32 %v1740, %v195
    %v1773 = vmul.f32 %v1739, %v195
    %v1774 = vmul.f32 %v1738, %v195
    %v1775 = vadd.f32 %v1759, %v1767
    %v1776 = vadd.f32 %v1760, %v1768
    %v1777 = vadd.f32 %v1761, %v1769
    %v1778 = vadd.f32 %v1762, %v1770
    %v1779 = vadd.f32 %v1763, %v1771
    %v1780 = vadd.f32 %v1764, %v1772
    %v1781 = vadd.f32 %v1765, %v1773
    %v1782 = vadd.f32 %v1766, %v1774
    %v1783 = vmul.f32 %v1741, %v215
    %v1784 = vmul.f32 %v1740, %v215
    %v1785 = vmul.f32 %v1739, %v215
    %v1786 = vmul.f32 %v1738, %v215
    %v1787 = vmul.f32 %v1737, %v215
    %v1788 = vmul.f32 %v1736, %v215
    %v1789 = vmul.f32 %v1735, %v215
    %v1790 = vmul.f32 %v1750, %v215
    %v1791 = vadd.f32 %v1775, %v1783
    %v1792 = vadd.f32 %v1776, %v1784
    %v1793 = vadd.f32 %v1777, %v1785
    %v1794 = vadd.f32 %v1778, %v1786
    %v1795 = vadd.f32 %v1779, %v1787
    %v1796 = vadd.f32 %v1780, %v1788
    %v1797 = vadd.f32 %v1781, %v1789
    %v1798 = vadd.f32 %v1782, %v1790
    %v1799 = vrot.slane %v1663, 2
    %v1800 = vrot.slane %v1664, 2
    %v1801 = vrot.slane %v1665, 2
    %v1802 = vrot.slane %v1666, 2
    %v1803 = vrot.slane %v1667, 2
    %v1804 = vrot.slane %v1668, 2
    %v1805 = vrot.slane %v1669, 2
    %v1806 = vrot.slane %v1670, 2
    %v1807 = vrot.slane %v1671, 2
    %v1808 = vrot.slane %v1672, 2
    %v1809 = vrot.slane %v1673, 2
    %v1810 = vrot.slane %v1674, 2
    %v1811 = vrot.slane %v1675, 2
    %v1812 = vrot.slane %v1676, 2
    %v1813 = vrot.slane %v1677, 2
    %v1814 = vrot.slane %v1678, 2
    %v1815 = vsel %vm248, %v1813, %v1814
    %v1816 = vsel %vm248, %v1812, %v1813
    %v1817 = vsel %vm248, %v1811, %v1812
    %v1818 = vsel %vm248, %v1810, %v1811
    %v1819 = vsel %vm248, %v1809, %v1810
    %v1820 = vsel %vm248, %v1808, %v1809
    %v1821 = vsel %vm248, %v1807, %v1808
    %v1822 = vsel %vm248, %v1806, %v1807
    %v1823 = vsel %vm248, %v1805, %v1806
    %v1824 = vsel %vm248, %v1804, %v1805
    %v1825 = vsel %vm248, %v1803, %v1804
    %v1826 = vsel %vm248, %v1802, %v1803
    %v1827 = vsel %vm248, %v1801, %v1802
    %v1828 = vsel %vm248, %v1800, %v1801
    %v1829 = vsel %vm248, %v1799, %v1800
    %v1830 = vsel %vm248, %v1814, %v1799
    %v1831 = vmul.f32 %v1829, %v268
    %v1832 = vmul.f32 %v1828, %v268
    %v1833 = vmul.f32 %v1827, %v268
    %v1834 = vmul.f32 %v1826, %v268
    %v1835 = vmul.f32 %v1825, %v268
    %v1836 = vmul.f32 %v1824, %v268
    %v1837 = vmul.f32 %v1823, %v268
    %v1838 = vmul.f32 %v1822, %v268
    %v1839 = vadd.f32 %v1791, %v1831
    %v1840 = vadd.f32 %v1792, %v1832
    %v1841 = vadd.f32 %v1793, %v1833
    %v1842 = vadd.f32 %v1794, %v1834
    %v1843 = vadd.f32 %v1795, %v1835
    %v1844 = vadd.f32 %v1796, %v1836
    %v1845 = vadd.f32 %v1797, %v1837
    %v1846 = vadd.f32 %v1798, %v1838
    %v1847 = vmul.f32 %v1825, %v288
    %v1848 = vmul.f32 %v1824, %v288
    %v1849 = vmul.f32 %v1823, %v288
    %v1850 = vmul.f32 %v1822, %v288
    %v1851 = vmul.f32 %v1821, %v288
    %v1852 = vmul.f32 %v1820, %v288
    %v1853 = vmul.f32 %v1819, %v288
    %v1854 = vmul.f32 %v1818, %v288
    %v1855 = vadd.f32 %v1839, %v1847
    %v1856 = vadd.f32 %v1840, %v1848
    %v1857 = vadd.f32 %v1841, %v1849
    %v1858 = vadd.f32 %v1842, %v1850
    %v1859 = vadd.f32 %v1843, %v1851
    %v1860 = vadd.f32 %v1844, %v1852
    %v1861 = vadd.f32 %v1845, %v1853
    %v1862 = vadd.f32 %v1846, %v1854
    %v1863 = vmul.f32 %v1821, %v308
    %v1864 = vmul.f32 %v1820, %v308
    %v1865 = vmul.f32 %v1819, %v308
    %v1866 = vmul.f32 %v1818, %v308
    %v1867 = vmul.f32 %v1817, %v308
    %v1868 = vmul.f32 %v1816, %v308
    %v1869 = vmul.f32 %v1815, %v308
    %v1870 = vmul.f32 %v1830, %v308
    %v1871 = vadd.f32 %v1855, %v1863
    %v1872 = vadd.f32 %v1856, %v1864
    %v1873 = vadd.f32 %v1857, %v1865
    %v1874 = vadd.f32 %v1858, %v1866
    %v1875 = vadd.f32 %v1859, %v1867
    %v1876 = vadd.f32 %v1860, %v1868
    %v1877 = vadd.f32 %v1861, %v1869
    %v1878 = vadd.f32 %v1862, %v1870
    %v1879 = vpack.c.bf16 %v1872, %v1871
    %v1880 = vpack.c.bf16 %v1874, %v1873
    %v1881 = vpack.c.bf16 %v1876, %v1875
    %v1882 = vpack.c.bf16 %v1878, %v1877
    %v1887 = vunpack.c.l.b16 %v1879
    %v1888 = vunpack.c.h.b16 %v1879
    %v1889 = vunpack.c.l.b16 %v1880
    %v1890 = vunpack.c.h.b16 %v1880
    %v1891 = vunpack.c.l.b16 %v1881
    %v1892 = vunpack.c.h.b16 %v1881
    %v1893 = vunpack.c.l.b16 %v1882
    %v1894 = vunpack.c.h.b16 %v1882
    %v1895 = vpack.c.b16 %v1887, %v1887
    %v1896 = vpack.c.b16 %v1888, %v1888
    %v1897 = vpack.c.b16 %v1889, %v1889
    %v1898 = vpack.c.b16 %v1890, %v1890
    %v1899 = vpack.c.b16 %v1891, %v1891
    %v1900 = vpack.c.b16 %v1892, %v1892
    %v1901 = vpack.c.b16 %v1893, %v1893
    %v1902 = vpack.c.b16 %v1894, %v1894
    %1911 = vst [vmem:[#allocation2 + $0xc0] sm:$0xf] %v1895
    %1912 = vst [vmem:[#allocation2 + $0xc4] sm:$0xf] %v1896
    %1913 = vst [vmem:[#allocation2 + $0xc8] sm:$0xf] %v1897
    %1914 = vst [vmem:[#allocation2 + $0xcc] sm:$0xf] %v1898
    %1915 = vst [vmem:[#allocation2 + $0xd0] sm:$0xf] %v1899
    %1916 = vst [vmem:[#allocation2 + $0xd4] sm:$0xf] %v1900
    %1917 = vst [vmem:[#allocation2 + $0xd8] sm:$0xf] %v1901
    %1918 = vst [vmem:[#allocation2 + $0xdc] sm:$0xf] %v1902
    %v1919 = vld [vmem:[#allocation2] sm:$0xf]
    %v1920 = vld [vmem:[#allocation2 + $0x4] sm:$0xf]
    %v1921 = vld [vmem:[#allocation2 + $0x8] sm:$0xf]
    %v1922 = vld [vmem:[#allocation2 + $0xc] sm:$0xf]
    %v1923 = vld [vmem:[#allocation2 + $0x10] sm:$0xf]
    %v1924 = vld [vmem:[#allocation2 + $0x14] sm:$0xf]
    %v1925 = vld [vmem:[#allocation2 + $0x18] sm:$0xf]
    %v1926 = vld [vmem:[#allocation2 + $0x1c] sm:$0xf]
    %v1927 = vld [vmem:[#allocation2 + $0x20] sm:$0xf]
    %v1928 = vld [vmem:[#allocation2 + $0x24] sm:$0xf]
    %v1929 = vld [vmem:[#allocation2 + $0x28] sm:$0xf]
    %v1930 = vld [vmem:[#allocation2 + $0x2c] sm:$0xf]
    %v1931 = vld [vmem:[#allocation2 + $0x30] sm:$0xf]
    %v1932 = vld [vmem:[#allocation2 + $0x34] sm:$0xf]
    %v1933 = vld [vmem:[#allocation2 + $0x38] sm:$0xf]
    %v1934 = vld [vmem:[#allocation2 + $0x3c] sm:$0xf]
    %v1935 = vld [vmem:[#allocation2 + $0x40] sm:$0xf]
    %v1936 = vld [vmem:[#allocation2 + $0x44] sm:$0xf]
    %v1937 = vld [vmem:[#allocation2 + $0x48] sm:$0xf]
    %v1938 = vld [vmem:[#allocation2 + $0x4c] sm:$0xf]
    %v1939 = vld [vmem:[#allocation2 + $0x50] sm:$0xf]
    %v1940 = vld [vmem:[#allocation2 + $0x54] sm:$0xf]
    %v1941 = vld [vmem:[#allocation2 + $0x58] sm:$0xf]
    %v1942 = vld [vmem:[#allocation2 + $0x5c] sm:$0xf]
    %v1943 = vld [vmem:[#allocation2 + $0x60] sm:$0xf]
    %v1944 = vld [vmem:[#allocation2 + $0x64] sm:$0xf]
    %v1945 = vld [vmem:[#allocation2 + $0x68] sm:$0xf]
    %v1946 = vld [vmem:[#allocation2 + $0x6c] sm:$0xf]
    %v1947 = vld [vmem:[#allocation8] sm:$0xf]
    %v1948 = vld [vmem:[#allocation8 + $0x4] sm:$0xf]
    %v1949 = vld [vmem:[#allocation8 + $0x8] sm:$0xf]
    %v1950 = vld [vmem:[#allocation8 + $0xc] sm:$0xf]
    %v1951 = vld [vmem:[#allocation8 + $0x10] sm:$0xf]
    %v1952 = vld [vmem:[#allocation8 + $0x14] sm:$0xf]
    %v1953 = vld [vmem:[#allocation8 + $0x18] sm:$0xf]
    %v1954 = vld [vmem:[#allocation8 + $0x1c] sm:$0xf]
    %v1955 = vld [vmem:[#allocation8 + $0x20] sm:$0xf]
    %v1956 = vld [vmem:[#allocation8 + $0x24] sm:$0xf]
    %v1957 = vld [vmem:[#allocation8 + $0x28] sm:$0xf]
    %v1958 = vld [vmem:[#allocation8 + $0x2c] sm:$0xf]
    %v1959 = vld [vmem:[#allocation8 + $0x30] sm:$0xf]
    %v1960 = vld [vmem:[#allocation8 + $0x34] sm:$0xf]
    %v1961 = vld [vmem:[#allocation8 + $0x38] sm:$0xf]
    %v1962 = vld [vmem:[#allocation8 + $0x3c] sm:$0xf]
    %v1991 = vunpack.c.l.b16 %v1919
    %v1992 = vunpack.c.l.b16 %v1920
    %v1993 = vunpack.c.l.b16 %v1921
    %v1994 = vunpack.c.l.b16 %v1922
    %v1995 = vunpack.c.l.b16 %v1923
    %v1996 = vunpack.c.l.b16 %v1924
    %v1997 = vunpack.c.l.b16 %v1925
    %v1998 = vunpack.c.l.b16 %v1926
    %v1999 = vunpack.c.l.b16 %v1927
    %v2000 = vunpack.c.l.b16 %v1928
    %v2001 = vunpack.c.l.b16 %v1929
    %v2002 = vunpack.c.l.b16 %v1930
    %v2003 = vunpack.c.l.b16 %v1931
    %v2004 = vunpack.c.l.b16 %v1932
    %v2005 = vunpack.c.l.b16 %v1933
    %v2006 = vunpack.c.l.b16 %v1934
    %v2007 = vunpack.c.l.b16 %v1935
    %v2008 = vunpack.c.l.b16 %v1936
    %v2009 = vunpack.c.l.b16 %v1937
    %v2010 = vunpack.c.l.b16 %v1938
    %v2011 = vunpack.c.l.b16 %v1939
    %v2012 = vunpack.c.l.b16 %v1940
    %v2013 = vunpack.c.l.b16 %v1941
    %v2014 = vunpack.c.l.b16 %v1942
    %v2015 = vunpack.c.l.b16 %v1943
    %v2016 = vunpack.c.l.b16 %v1944
    %v2017 = vunpack.c.l.b16 %v1945
    %v2018 = vunpack.c.l.b16 %v1946
    %v2019 = vpack.c.b16 %v1992, %v1991
    %v2020 = vpack.c.b16 %v1994, %v1993
    %v2021 = vpack.c.b16 %v1996, %v1995
    %v2022 = vpack.c.b16 %v1998, %v1997
    %v2023 = vpack.c.b16 %v2000, %v1999
    %v2024 = vpack.c.b16 %v2002, %v2001
    %v2025 = vpack.c.b16 %v2004, %v2003
    %v2026 = vpack.c.b16 %v2006, %v2005
    %v2027 = vpack.c.b16 %v2008, %v2007
    %v2028 = vpack.c.b16 %v2010, %v2009
    %v2029 = vpack.c.b16 %v2012, %v2011
    %v2030 = vpack.c.b16 %v2014, %v2013
    %v2031 = vpack.c.b16 %v2016, %v2015
    %v2032 = vpack.c.b16 %v2018, %v2017
    %v2063 = vunpack.c.l.b16 %v1947
    %v2064 = vunpack.c.l.b16 %v1948
    %v2065 = vunpack.c.l.b16 %v1949
    %v2066 = vunpack.c.l.b16 %v1950
    %v2067 = vunpack.c.l.b16 %v1951
    %v2068 = vunpack.c.l.b16 %v1952
    %v2069 = vunpack.c.l.b16 %v1953
    %v2070 = vunpack.c.l.b16 %v1954
    %v2071 = vunpack.c.l.b16 %v1955
    %v2072 = vunpack.c.l.b16 %v1956
    %v2073 = vunpack.c.l.b16 %v1957
    %v2074 = vunpack.c.l.b16 %v1958
    %v2075 = vunpack.c.l.b16 %v1959
    %v2076 = vunpack.c.l.b16 %v1960
    %v2077 = vunpack.c.l.b16 %v1961
    %v2078 = vunpack.c.l.b16 %v1962
    %v2079 = vpack.c.b16 %v2064, %v2063
    %v2080 = vpack.c.b16 %v2066, %v2065
    %v2081 = vpack.c.b16 %v2068, %v2067
    %v2082 = vpack.c.b16 %v2070, %v2069
    %v2083 = vpack.c.b16 %v2072, %v2071
    %v2084 = vpack.c.b16 %v2074, %v2073
    %v2085 = vpack.c.b16 %v2076, %v2075
    %v2086 = vpack.c.b16 %v2078, %v2077
    %2095 = vmatprep.subr.bf16.mxu0 0
    %2096 = vmatpush1.bf16.msra.mxu0 %v2086
    %2097 = vmatprep.subr.bf16.mxu0 0
    %2098 = vmatpush1.bf16.msra.mxu0 %v2085
    %2099 = vmatprep.subr.bf16.mxu0 0
    %2100 = vmatpush1.bf16.msra.mxu0 %v2084
    %2101 = vmatprep.subr.bf16.mxu0 0
    %2102 = vmatpush1.bf16.msra.mxu0 %v2083
    %2103 = vmatprep.subr.bf16.mxu0 0
    %2104 = vmatpush1.bf16.msra.mxu0 %v2082
    %2105 = vmatprep.subr.bf16.mxu0 0
    %2106 = vmatpush1.bf16.msra.mxu0 %v2081
    %2107 = vmatprep.subr.bf16.mxu0 0
    %2108 = vmatpush1.bf16.msra.mxu0 %v2080
    %2109 = vmatprep.subr.bf16.mxu0 0
    %2110 = vmatpush1.bf16.msra.mxu0 %v2079
    %2111 = vmatprep.subr.bf16.mxu0 0
    %2112 = vmatpush2.bf16.msra.mxu0 0
    %2113 = vmatprep.subr.bf16.mxu0 0
    %2114 = vmatpush2.bf16.msra.mxu0 0
    %2115 = vmatprep.subr.bf16.mxu0 0
    %2116 = vmatpush2.bf16.msra.mxu0 0
    %2117 = vmatprep.subr.bf16.mxu0 0
    %2118 = vmatpush2.bf16.msra.mxu0 0
    %2119 = vmatprep.subr.bf16.mxu0 0
    %2120 = vmatpush2.bf16.msra.mxu0 0
    %2121 = vmatprep.subr.bf16.mxu0 0
    %2122 = vmatpush2.bf16.msra.mxu0 0
    %2123 = vmatprep.subr.bf16.mxu0 0
    %2124 = vmatpush2.bf16.msra.mxu0 0
    %2125 = vmatprep.subr.bf16.mxu0 0
    %2126 = vmatpush2.bf16.msra.mxu0 0
    %2127 = vmatprep.mubr.bf16.mxu0 0
    %2128 = vmatmul.mubr.bf16.gmra.mxu0 %v2019
    %v2129 = vpop.f32.mrf.mxu0
    %v2130 = vadd.f32 0.0, %v2129
    %v2131 = vpop.f32.mrf.mxu0
    %v2132 = vpop.f32.mrf.mxu0
    %v2133 = vadd.f32 0.0, %v2132
    %v2134 = vpop.f32.mrf.mxu0
    %2135 = vmatprep.mubr.bf16.mxu0 0
    %2136 = vmatmul.mubr.bf16.gmra.mxu0 %v2020
    %v2137 = vpop.f32.mrf.mxu0
    %v2138 = vadd.f32 0.0, %v2137
    %v2139 = vpop.f32.mrf.mxu0
    %v2140 = vpop.f32.mrf.mxu0
    %v2141 = vadd.f32 0.0, %v2140
    %v2142 = vpop.f32.mrf.mxu0
    %2143 = vmatprep.mubr.bf16.mxu0 0
    %2144 = vmatmul.mubr.bf16.gmra.mxu0 %v2021
    %v2145 = vpop.f32.mrf.mxu0
    %v2146 = vadd.f32 0.0, %v2145
    %v2147 = vpop.f32.mrf.mxu0
    %v2148 = vpop.f32.mrf.mxu0
    %v2149 = vadd.f32 0.0, %v2148
    %v2150 = vpop.f32.mrf.mxu0
    %2151 = vmatprep.mubr.bf16.mxu0 0
    %2152 = vmatmul.mubr.bf16.gmra.mxu0 %v2022
    %v2153 = vpop.f32.mrf.mxu0
    %v2154 = vadd.f32 0.0, %v2153
    %v2155 = vpop.f32.mrf.mxu0
    %v2156 = vpop.f32.mrf.mxu0
    %v2157 = vadd.f32 0.0, %v2156
    %v2158 = vpop.f32.mrf.mxu0
    %2159 = vmatprep.mubr.bf16.mxu0 0
    %2160 = vmatmul.mubr.bf16.gmra.mxu0 %v2023
    %v2161 = vpop.f32.mrf.mxu0
    %v2162 = vadd.f32 0.0, %v2161
    %v2163 = vpop.f32.mrf.mxu0
    %v2164 = vpop.f32.mrf.mxu0
    %v2165 = vadd.f32 0.0, %v2164
    %v2166 = vpop.f32.mrf.mxu0
    %2167 = vmatprep.mubr.bf16.mxu0 0
    %2168 = vmatmul.mubr.bf16.gmra.mxu0 %v2024
    %v2169 = vpop.f32.mrf.mxu0
    %v2170 = vadd.f32 0.0, %v2169
    %v2171 = vpop.f32.mrf.mxu0
    %v2172 = vpop.f32.mrf.mxu0
    %v2173 = vadd.f32 0.0, %v2172
    %v2174 = vpop.f32.mrf.mxu0
    %2175 = vmatprep.mubr.bf16.mxu0 0
    %2176 = vmatmul.mubr.bf16.gmra.mxu0 %v2025
    %v2177 = vpop.f32.mrf.mxu0
    %v2178 = vadd.f32 0.0, %v2177
    %v2179 = vpop.f32.mrf.mxu0
    %v2180 = vpop.f32.mrf.mxu0
    %v2181 = vadd.f32 0.0, %v2180
    %v2182 = vpop.f32.mrf.mxu0
    %2183 = vmatprep.mubr.bf16.mxu0 0
    %2184 = vmatmul.mubr.bf16.gmra.mxu0 %v2026
    %v2185 = vpop.f32.mrf.mxu0
    %v2186 = vadd.f32 0.0, %v2185
    %v2187 = vpop.f32.mrf.mxu0
    %v2188 = vpop.f32.mrf.mxu0
    %v2189 = vadd.f32 0.0, %v2188
    %v2190 = vpop.f32.mrf.mxu0
    %2191 = vmatprep.mubr.bf16.mxu0 0
    %2192 = vmatmul.mubr.bf16.gmra.mxu0 %v2027
    %v2193 = vpop.f32.mrf.mxu0
    %v2194 = vadd.f32 0.0, %v2193
    %v2195 = vpop.f32.mrf.mxu0
    %v2196 = vpop.f32.mrf.mxu0
    %v2197 = vadd.f32 0.0, %v2196
    %v2198 = vpop.f32.mrf.mxu0
    %2199 = vmatprep.mubr.bf16.mxu0 0
    %2200 = vmatmul.mubr.bf16.gmra.mxu0 %v2028
    %v2201 = vpop.f32.mrf.mxu0
    %v2202 = vadd.f32 0.0, %v2201
    %v2203 = vpop.f32.mrf.mxu0
    %v2204 = vpop.f32.mrf.mxu0
    %v2205 = vadd.f32 0.0, %v2204
    %v2206 = vpop.f32.mrf.mxu0
    %2207 = vmatprep.mubr.bf16.mxu0 0
    %2208 = vmatmul.mubr.bf16.gmra.mxu0 %v2029
    %v2209 = vpop.f32.mrf.mxu0
    %v2210 = vadd.f32 0.0, %v2209
    %v2211 = vpop.f32.mrf.mxu0
    %v2212 = vpop.f32.mrf.mxu0
    %v2213 = vadd.f32 0.0, %v2212
    %v2214 = vpop.f32.mrf.mxu0
    %2215 = vmatprep.mubr.bf16.mxu0 0
    %2216 = vmatmul.mubr.bf16.gmra.mxu0 %v2030
    %v2217 = vpop.f32.mrf.mxu0
    %v2218 = vadd.f32 0.0, %v2217
    %v2219 = vpop.f32.mrf.mxu0
    %v2220 = vpop.f32.mrf.mxu0
    %v2221 = vadd.f32 0.0, %v2220
    %v2222 = vpop.f32.mrf.mxu0
    %2223 = vmatprep.mubr.bf16.mxu0 0
    %2224 = vmatmul.mubr.bf16.gmra.mxu0 %v2031
    %v2225 = vpop.f32.mrf.mxu0
    %v2226 = vadd.f32 0.0, %v2225
    %v2227 = vpop.f32.mrf.mxu0
    %v2228 = vpop.f32.mrf.mxu0
    %v2229 = vadd.f32 0.0, %v2228
    %v2230 = vpop.f32.mrf.mxu0
    %2231 = vmatprep.mubr.bf16.mxu0 0
    %2232 = vmatmul.mubr.bf16.gmra.mxu0 %v2032
    %v2233 = vpop.f32.mrf.mxu0
    %v2234 = vadd.f32 0.0, %v2233
    %v2235 = vpop.f32.mrf.mxu0
    %v2236 = vpop.f32.mrf.mxu0
    %v2237 = vadd.f32 0.0, %v2236
    %v2238 = vpop.f32.mrf.mxu0
    %2239 = vdwg.mxu0
    %2240 = vst [vmem:[#allocation9] sm:$0xff] %v2130
    %2241 = vst [vmem:[#allocation9 + $0x8] sm:$0xff] %v2133
    %2242 = vst [vmem:[#allocation9 + $0x10] sm:$0xff] %v2138
    %2243 = vst [vmem:[#allocation9 + $0x18] sm:$0xff] %v2141
    %2244 = vst [vmem:[#allocation9 + $0x20] sm:$0xff] %v2146
    %2245 = vst [vmem:[#allocation9 + $0x28] sm:$0xff] %v2149
    %2246 = vst [vmem:[#allocation9 + $0x30] sm:$0xff] %v2154
    %2247 = vst [vmem:[#allocation9 + $0x38] sm:$0xff] %v2157
    %2248 = vst [vmem:[#allocation9 + $0x40] sm:$0xff] %v2162
    %2249 = vst [vmem:[#allocation9 + $0x48] sm:$0xff] %v2165
    %2250 = vst [vmem:[#allocation9 + $0x50] sm:$0xff] %v2170
    %2251 = vst [vmem:[#allocation9 + $0x58] sm:$0xff] %v2173
    %2252 = vst [vmem:[#allocation9 + $0x60] sm:$0xff] %v2178
    %2253 = vst [vmem:[#allocation9 + $0x68] sm:$0xff] %v2181
    %2254 = vst [vmem:[#allocation9 + $0x70] sm:$0xff] %v2186
    %2255 = vst [vmem:[#allocation9 + $0x78] sm:$0xff] %v2189
    %2256 = vst [vmem:[#allocation9 + $0x80] sm:$0xff] %v2194
    %2257 = vst [vmem:[#allocation9 + $0x88] sm:$0xff] %v2197
    %2258 = vst [vmem:[#allocation9 + $0x90] sm:$0xff] %v2202
    %2259 = vst [vmem:[#allocation9 + $0x98] sm:$0xff] %v2205
    %2260 = vst [vmem:[#allocation9 + $0xa0] sm:$0xff] %v2210
    %2261 = vst [vmem:[#allocation9 + $0xa8] sm:$0xff] %v2213
    %2262 = vst [vmem:[#allocation9 + $0xb0] sm:$0xff] %v2218
    %2263 = vst [vmem:[#allocation9 + $0xb8] sm:$0xff] %v2221
    %2264 = vst [vmem:[#allocation9 + $0xc0] sm:$0xff] %v2226
    %2265 = vst [vmem:[#allocation9 + $0xc8] sm:$0xff] %v2229
    %2266 = vst [vmem:[#allocation9 + $0xd0] sm:$0xff] %v2234
    %2267 = vst [vmem:[#allocation9 + $0xd8] sm:$0xff] %v2237
    %v2268 = vld [vmem:[#allocation2 + $0x70] sm:$0xf]
    %v2269 = vld [vmem:[#allocation2 + $0x74] sm:$0xf]
    %v2270 = vld [vmem:[#allocation2 + $0x78] sm:$0xf]
    %v2271 = vld [vmem:[#allocation2 + $0x7c] sm:$0xf]
    %v2272 = vld [vmem:[#allocation2 + $0x80] sm:$0xf]
    %v2273 = vld [vmem:[#allocation2 + $0x84] sm:$0xf]
    %v2274 = vld [vmem:[#allocation2 + $0x88] sm:$0xf]
    %v2275 = vld [vmem:[#allocation2 + $0x8c] sm:$0xf]
    %v2276 = vld [vmem:[#allocation2 + $0x90] sm:$0xf]
    %v2277 = vld [vmem:[#allocation2 + $0x94] sm:$0xf]
    %v2278 = vld [vmem:[#allocation2 + $0x98] sm:$0xf]
    %v2279 = vld [vmem:[#allocation2 + $0x9c] sm:$0xf]
    %v2280 = vld [vmem:[#allocation2 + $0xa0] sm:$0xf]
    %v2281 = vld [vmem:[#allocation2 + $0xa4] sm:$0xf]
    %v2282 = vld [vmem:[#allocation2 + $0xa8] sm:$0xf]
    %v2283 = vld [vmem:[#allocation2 + $0xac] sm:$0xf]
    %v2284 = vld [vmem:[#allocation2 + $0xb0] sm:$0xf]
    %v2285 = vld [vmem:[#allocation2 + $0xb4] sm:$0xf]
    %v2286 = vld [vmem:[#allocation2 + $0xb8] sm:$0xf]
    %v2287 = vld [vmem:[#allocation2 + $0xbc] sm:$0xf]
    %v2288 = vld [vmem:[#allocation2 + $0xc0] sm:$0xf]
    %v2289 = vld [vmem:[#allocation2 + $0xc4] sm:$0xf]
    %v2290 = vld [vmem:[#allocation2 + $0xc8] sm:$0xf]
    %v2291 = vld [vmem:[#allocation2 + $0xcc] sm:$0xf]
    %v2292 = vld [vmem:[#allocation2 + $0xd0] sm:$0xf]
    %v2293 = vld [vmem:[#allocation2 + $0xd4] sm:$0xf]
    %v2294 = vld [vmem:[#allocation2 + $0xd8] sm:$0xf]
    %v2295 = vld [vmem:[#allocation2 + $0xdc] sm:$0xf]
    %v2296 = vld [vmem:[#allocation8] sm:$0xf]
    %v2297 = vld [vmem:[#allocation8 + $0x4] sm:$0xf]
    %v2298 = vld [vmem:[#allocation8 + $0x8] sm:$0xf]
    %v2299 = vld [vmem:[#allocation8 + $0xc] sm:$0xf]
    %v2300 = vld [vmem:[#allocation8 + $0x10] sm:$0xf]
    %v2301 = vld [vmem:[#allocation8 + $0x14] sm:$0xf]
    %v2302 = vld [vmem:[#allocation8 + $0x18] sm:$0xf]
    %v2303 = vld [vmem:[#allocation8 + $0x1c] sm:$0xf]
    %v2304 = vld [vmem:[#allocation8 + $0x20] sm:$0xf]
    %v2305 = vld [vmem:[#allocation8 + $0x24] sm:$0xf]
    %v2306 = vld [vmem:[#allocation8 + $0x28] sm:$0xf]
    %v2307 = vld [vmem:[#allocation8 + $0x2c] sm:$0xf]
    %v2308 = vld [vmem:[#allocation8 + $0x30] sm:$0xf]
    %v2309 = vld [vmem:[#allocation8 + $0x34] sm:$0xf]
    %v2310 = vld [vmem:[#allocation8 + $0x38] sm:$0xf]
    %v2311 = vld [vmem:[#allocation8 + $0x3c] sm:$0xf]
    %v2340 = vunpack.c.l.b16 %v2268
    %v2341 = vunpack.c.l.b16 %v2269
    %v2342 = vunpack.c.l.b16 %v2270
    %v2343 = vunpack.c.l.b16 %v2271
    %v2344 = vunpack.c.l.b16 %v2272
    %v2345 = vunpack.c.l.b16 %v2273
    %v2346 = vunpack.c.l.b16 %v2274
    %v2347 = vunpack.c.l.b16 %v2275
    %v2348 = vunpack.c.l.b16 %v2276
    %v2349 = vunpack.c.l.b16 %v2277
    %v2350 = vunpack.c.l.b16 %v2278
    %v2351 = vunpack.c.l.b16 %v2279
    %v2352 = vunpack.c.l.b16 %v2280
    %v2353 = vunpack.c.l.b16 %v2281
    %v2354 = vunpack.c.l.b16 %v2282
    %v2355 = vunpack.c.l.b16 %v2283
    %v2356 = vunpack.c.l.b16 %v2284
    %v2357 = vunpack.c.l.b16 %v2285
    %v2358 = vunpack.c.l.b16 %v2286
    %v2359 = vunpack.c.l.b16 %v2287
    %v2360 = vunpack.c.l.b16 %v2288
    %v2361 = vunpack.c.l.b16 %v2289
    %v2362 = vunpack.c.l.b16 %v2290
    %v2363 = vunpack.c.l.b16 %v2291
    %v2364 = vunpack.c.l.b16 %v2292
    %v2365 = vunpack.c.l.b16 %v2293
    %v2366 = vunpack.c.l.b16 %v2294
    %v2367 = vunpack.c.l.b16 %v2295
    %v2368 = vpack.c.b16 %v2341, %v2340
    %v2369 = vpack.c.b16 %v2343, %v2342
    %v2370 = vpack.c.b16 %v2345, %v2344
    %v2371 = vpack.c.b16 %v2347, %v2346
    %v2372 = vpack.c.b16 %v2349, %v2348
    %v2373 = vpack.c.b16 %v2351, %v2350
    %v2374 = vpack.c.b16 %v2353, %v2352
    %v2375 = vpack.c.b16 %v2355, %v2354
    %v2376 = vpack.c.b16 %v2357, %v2356
    %v2377 = vpack.c.b16 %v2359, %v2358
    %v2378 = vpack.c.b16 %v2361, %v2360
    %v2379 = vpack.c.b16 %v2363, %v2362
    %v2380 = vpack.c.b16 %v2365, %v2364
    %v2381 = vpack.c.b16 %v2367, %v2366
    %v2412 = vunpack.c.l.b16 %v2296
    %v2413 = vunpack.c.l.b16 %v2297
    %v2414 = vunpack.c.l.b16 %v2298
    %v2415 = vunpack.c.l.b16 %v2299
    %v2416 = vunpack.c.l.b16 %v2300
    %v2417 = vunpack.c.l.b16 %v2301
    %v2418 = vunpack.c.l.b16 %v2302
    %v2419 = vunpack.c.l.b16 %v2303
    %v2420 = vunpack.c.l.b16 %v2304
    %v2421 = vunpack.c.l.b16 %v2305
    %v2422 = vunpack.c.l.b16 %v2306
    %v2423 = vunpack.c.l.b16 %v2307
    %v2424 = vunpack.c.l.b16 %v2308
    %v2425 = vunpack.c.l.b16 %v2309
    %v2426 = vunpack.c.l.b16 %v2310
    %v2427 = vunpack.c.l.b16 %v2311
    %v2428 = vpack.c.b16 %v2413, %v2412
    %v2429 = vpack.c.b16 %v2415, %v2414
    %v2430 = vpack.c.b16 %v2417, %v2416
    %v2431 = vpack.c.b16 %v2419, %v2418
    %v2432 = vpack.c.b16 %v2421, %v2420
    %v2433 = vpack.c.b16 %v2423, %v2422
    %v2434 = vpack.c.b16 %v2425, %v2424
    %v2435 = vpack.c.b16 %v2427, %v2426
    %2444 = vmatprep.subr.bf16.mxu0 0
    %2445 = vmatpush1.bf16.msra.mxu0 %v2435
    %2446 = vmatprep.subr.bf16.mxu0 0
    %2447 = vmatpush1.bf16.msra.mxu0 %v2434
    %2448 = vmatprep.subr.bf16.mxu0 0
    %2449 = vmatpush1.bf16.msra.mxu0 %v2433
    %2450 = vmatprep.subr.bf16.mxu0 0
    %2451 = vmatpush1.bf16.msra.mxu0 %v2432
    %2452 = vmatprep.subr.bf16.mxu0 0
    %2453 = vmatpush1.bf16.msra.mxu0 %v2431
    %2454 = vmatprep.subr.bf16.mxu0 0
    %2455 = vmatpush1.bf16.msra.mxu0 %v2430
    %2456 = vmatprep.subr.bf16.mxu0 0
    %2457 = vmatpush1.bf16.msra.mxu0 %v2429
    %2458 = vmatprep.subr.bf16.mxu0 0
    %2459 = vmatpush1.bf16.msra.mxu0 %v2428
    %2460 = vmatprep.subr.bf16.mxu0 0
    %2461 = vmatpush2.bf16.msra.mxu0 0
    %2462 = vmatprep.subr.bf16.mxu0 0
    %2463 = vmatpush2.bf16.msra.mxu0 0
    %2464 = vmatprep.subr.bf16.mxu0 0
    %2465 = vmatpush2.bf16.msra.mxu0 0
    %2466 = vmatprep.subr.bf16.mxu0 0
    %2467 = vmatpush2.bf16.msra.mxu0 0
    %2468 = vmatprep.subr.bf16.mxu0 0
    %2469 = vmatpush2.bf16.msra.mxu0 0
    %2470 = vmatprep.subr.bf16.mxu0 0
    %2471 = vmatpush2.bf16.msra.mxu0 0
    %2472 = vmatprep.subr.bf16.mxu0 0
    %2473 = vmatpush2.bf16.msra.mxu0 0
    %2474 = vmatprep.subr.bf16.mxu0 0
    %2475 = vmatpush2.bf16.msra.mxu0 0
    %2476 = vmatprep.mubr.bf16.mxu0 0
    %2477 = vmatmul.mubr.bf16.gmra.mxu0 %v2368
    %v2478 = vpop.f32.mrf.mxu0
    %v2479 = vadd.f32 0.0, %v2478
    %v2480 = vpop.f32.mrf.mxu0
    %v2481 = vpop.f32.mrf.mxu0
    %v2482 = vadd.f32 0.0, %v2481
    %v2483 = vpop.f32.mrf.mxu0
    %2484 = vmatprep.mubr.bf16.mxu0 0
    %2485 = vmatmul.mubr.bf16.gmra.mxu0 %v2369
    %v2486 = vpop.f32.mrf.mxu0
    %v2487 = vadd.f32 0.0, %v2486
    %v2488 = vpop.f32.mrf.mxu0
    %v2489 = vpop.f32.mrf.mxu0
    %v2490 = vadd.f32 0.0, %v2489
    %v2491 = vpop.f32.mrf.mxu0
    %2492 = vmatprep.mubr.bf16.mxu0 0
    %2493 = vmatmul.mubr.bf16.gmra.mxu0 %v2370
    %v2494 = vpop.f32.mrf.mxu0
    %v2495 = vadd.f32 0.0, %v2494
    %v2496 = vpop.f32.mrf.mxu0
    %v2497 = vpop.f32.mrf.mxu0
    %v2498 = vadd.f32 0.0, %v2497
    %v2499 = vpop.f32.mrf.mxu0
    %2500 = vmatprep.mubr.bf16.mxu0 0
    %2501 = vmatmul.mubr.bf16.gmra.mxu0 %v2371
    %v2502 = vpop.f32.mrf.mxu0
    %v2503 = vadd.f32 0.0, %v2502
    %v2504 = vpop.f32.mrf.mxu0
    %v2505 = vpop.f32.mrf.mxu0
    %v2506 = vadd.f32 0.0, %v2505
    %v2507 = vpop.f32.mrf.mxu0
    %2508 = vmatprep.mubr.bf16.mxu0 0
    %2509 = vmatmul.mubr.bf16.gmra.mxu0 %v2372
    %v2510 = vpop.f32.mrf.mxu0
    %v2511 = vadd.f32 0.0, %v2510
    %v2512 = vpop.f32.mrf.mxu0
    %v2513 = vpop.f32.mrf.mxu0
    %v2514 = vadd.f32 0.0, %v2513
    %v2515 = vpop.f32.mrf.mxu0
    %2516 = vmatprep.mubr.bf16.mxu0 0
    %2517 = vmatmul.mubr.bf16.gmra.mxu0 %v2373
    %v2518 = vpop.f32.mrf.mxu0
    %v2519 = vadd.f32 0.0, %v2518
    %v2520 = vpop.f32.mrf.mxu0
    %v2521 = vpop.f32.mrf.mxu0
    %v2522 = vadd.f32 0.0, %v2521
    %v2523 = vpop.f32.mrf.mxu0
    %2524 = vmatprep.mubr.bf16.mxu0 0
    %2525 = vmatmul.mubr.bf16.gmra.mxu0 %v2374
    %v2526 = vpop.f32.mrf.mxu0
    %v2527 = vadd.f32 0.0, %v2526
    %v2528 = vpop.f32.mrf.mxu0
    %v2529 = vpop.f32.mrf.mxu0
    %v2530 = vadd.f32 0.0, %v2529
    %v2531 = vpop.f32.mrf.mxu0
    %2532 = vmatprep.mubr.bf16.mxu0 0
    %2533 = vmatmul.mubr.bf16.gmra.mxu0 %v2375
    %v2534 = vpop.f32.mrf.mxu0
    %v2535 = vadd.f32 0.0, %v2534
    %v2536 = vpop.f32.mrf.mxu0
    %v2537 = vpop.f32.mrf.mxu0
    %v2538 = vadd.f32 0.0, %v2537
    %v2539 = vpop.f32.mrf.mxu0
    %2540 = vmatprep.mubr.bf16.mxu0 0
    %2541 = vmatmul.mubr.bf16.gmra.mxu0 %v2376
    %v2542 = vpop.f32.mrf.mxu0
    %v2543 = vadd.f32 0.0, %v2542
    %v2544 = vpop.f32.mrf.mxu0
    %v2545 = vpop.f32.mrf.mxu0
    %v2546 = vadd.f32 0.0, %v2545
    %v2547 = vpop.f32.mrf.mxu0
    %2548 = vmatprep.mubr.bf16.mxu0 0
    %2549 = vmatmul.mubr.bf16.gmra.mxu0 %v2377
    %v2550 = vpop.f32.mrf.mxu0
    %v2551 = vadd.f32 0.0, %v2550
    %v2552 = vpop.f32.mrf.mxu0
    %v2553 = vpop.f32.mrf.mxu0
    %v2554 = vadd.f32 0.0, %v2553
    %v2555 = vpop.f32.mrf.mxu0
    %2556 = vmatprep.mubr.bf16.mxu0 0
    %2557 = vmatmul.mubr.bf16.gmra.mxu0 %v2378
    %v2558 = vpop.f32.mrf.mxu0
    %v2559 = vadd.f32 0.0, %v2558
    %v2560 = vpop.f32.mrf.mxu0
    %v2561 = vpop.f32.mrf.mxu0
    %v2562 = vadd.f32 0.0, %v2561
    %v2563 = vpop.f32.mrf.mxu0
    %2564 = vmatprep.mubr.bf16.mxu0 0
    %2565 = vmatmul.mubr.bf16.gmra.mxu0 %v2379
    %v2566 = vpop.f32.mrf.mxu0
    %v2567 = vadd.f32 0.0, %v2566
    %v2568 = vpop.f32.mrf.mxu0
    %v2569 = vpop.f32.mrf.mxu0
    %v2570 = vadd.f32 0.0, %v2569
    %v2571 = vpop.f32.mrf.mxu0
    %2572 = vmatprep.mubr.bf16.mxu0 0
    %2573 = vmatmul.mubr.bf16.gmra.mxu0 %v2380
    %v2574 = vpop.f32.mrf.mxu0
    %v2575 = vadd.f32 0.0, %v2574
    %v2576 = vpop.f32.mrf.mxu0
    %v2577 = vpop.f32.mrf.mxu0
    %v2578 = vadd.f32 0.0, %v2577
    %v2579 = vpop.f32.mrf.mxu0
    %2580 = vmatprep.mubr.bf16.mxu0 0
    %2581 = vmatmul.mubr.bf16.gmra.mxu0 %v2381
    %v2582 = vpop.f32.mrf.mxu0
    %v2583 = vadd.f32 0.0, %v2582
    %v2584 = vpop.f32.mrf.mxu0
    %v2585 = vpop.f32.mrf.mxu0
    %v2586 = vadd.f32 0.0, %v2585
    %v2587 = vpop.f32.mrf.mxu0
    %2588 = vdwg.mxu0
    %2589 = vst [vmem:[#allocation9 + $0xe0] sm:$0xff] %v2479
    %2590 = vst [vmem:[#allocation9 + $0xe8] sm:$0xff] %v2482
    %2591 = vst [vmem:[#allocation9 + $0xf0] sm:$0xff] %v2487
    %2592 = vst [vmem:[#allocation9 + $0xf8] sm:$0xff] %v2490
    %2593 = vst [vmem:[#allocation9 + $0x100] sm:$0xff] %v2495
    %2594 = vst [vmem:[#allocation9 + $0x108] sm:$0xff] %v2498
    %2595 = vst [vmem:[#allocation9 + $0x110] sm:$0xff] %v2503
    %2596 = vst [vmem:[#allocation9 + $0x118] sm:$0xff] %v2506
    %2597 = vst [vmem:[#allocation9 + $0x120] sm:$0xff] %v2511
    %2598 = vst [vmem:[#allocation9 + $0x128] sm:$0xff] %v2514
    %2599 = vst [vmem:[#allocation9 + $0x130] sm:$0xff] %v2519
    %2600 = vst [vmem:[#allocation9 + $0x138] sm:$0xff] %v2522
    %2601 = vst [vmem:[#allocation9 + $0x140] sm:$0xff] %v2527
    %2602 = vst [vmem:[#allocation9 + $0x148] sm:$0xff] %v2530
    %2603 = vst [vmem:[#allocation9 + $0x150] sm:$0xff] %v2535
    %2604 = vst [vmem:[#allocation9 + $0x158] sm:$0xff] %v2538
    %2605 = vst [vmem:[#allocation9 + $0x160] sm:$0xff] %v2543
    %2606 = vst [vmem:[#allocation9 + $0x168] sm:$0xff] %v2546
    %2607 = vst [vmem:[#allocation9 + $0x170] sm:$0xff] %v2551
    %2608 = vst [vmem:[#allocation9 + $0x178] sm:$0xff] %v2554
    %2609 = vst [vmem:[#allocation9 + $0x180] sm:$0xff] %v2559
    %2610 = vst [vmem:[#allocation9 + $0x188] sm:$0xff] %v2562
    %2611 = vst [vmem:[#allocation9 + $0x190] sm:$0xff] %v2567
    %2612 = vst [vmem:[#allocation9 + $0x198] sm:$0xff] %v2570
    %2613 = vst [vmem:[#allocation9 + $0x1a0] sm:$0xff] %v2575
    %2614 = vst [vmem:[#allocation9 + $0x1a8] sm:$0xff] %v2578
    %2615 = vst [vmem:[#allocation9 + $0x1b0] sm:$0xff] %v2583
    %2616 = vst [vmem:[#allocation9 + $0x1b8] sm:$0xff] %v2586
    // Predicated region
    $region26: #{tpu_custom_call.1} parent=1 // pred_check
      _
    $region27: #{tpu_custom_call.1} parent=1 // pred_check_branch
      %2618 = sbr.rel (0) target = $region29
    $region28: #{tpu_custom_call.1} parent=1 // pred_region
      %s2620 = ssub.s32 7168, 7168
      %2621 = vsyncadd [#allocation5], %s2620
      %s2622 = sshll.u32 [#allocation9], 4
      %s2623 = int_to_ptr.vmem [resolvable:$true] %s2622
      %2628 = dma.vmem_to_hbm [thread:$0]  %s2623, 7168, %s3, [#allocation5], 128, 128, 8
    $region29: #{tpu_custom_call.1} parent=1 // pred_fallthru
      _
    // Predicated region
    $region30: #{tpu_custom_call.1} parent=1 // pred_check
      _
    $region31: #{tpu_custom_call.1} parent=1 // pred_check_branch
      %2630 = sbr.rel (0) target = $region33
    $region32: #{tpu_custom_call.1} parent=1 // pred_region
      %2631 = dma.done [#allocation5], 7168
    $region33: #{tpu_custom_call.1} parent=1 // pred_fallthru
      _
    %2632 = vsyncpa [#allocation4], 1
    %2633 = vsyncpa [#allocation7], 1
    %2634 = vsyncpa [#allocation5], 1

</llo_original>
